<compile_context>
chip_gen: v6e
topology: v6e:2x2x1
jax: 0.10.0
libtpu: 0.0.40
codegen_flags: <defaults>
</compile_context>

<pallas_src>
import functools
import numpy as np

import jax
import jax.numpy as jnp
from jax import lax
from jax.experimental import pallas as pl
from jax.experimental.pallas import tpu as pltpu

# ----------------------------- configuration (small, consistent with the module) ----
IMG_SIZE = (16, 16)
PATCH = 4
IN_CHANNELS = 2
HISTORY = 2
OUT_CHANNELS = 2
EMBED_DIM = 32
DEPTH = 2
DECODER_DEPTH = 2
NUM_HEADS = 4
MLP_RATIO = 4.0
LOW_RANK = 20
RANK_MULTI = 10

HEAD_DIM = EMBED_DIM // NUM_HEADS
GRID_H = IMG_SIZE[0] // PATCH
GRID_W = IMG_SIZE[1] // PATCH
NUM_PATCHES = GRID_H * GRID_W
A_DIM = min(NUM_PATCHES, LOW_RANK * RANK_MULTI)      # inner dim of we/wr params
TOTAL_IN = IN_CHANNELS * HISTORY
MLP_HIDDEN = int(EMBED_DIM * MLP_RATIO)
PATCH_DIM = TOTAL_IN * PATCH * PATCH                  # conv-as-matmul input width (64)
OUT_DIM = OUT_CHANNELS * PATCH * PATCH                # decoder head output width (32)
HR = NUM_HEADS * LOW_RANK                             # concatenated head-score width (80)
VEC_W = 128                                           # lane width of the bias/LN slab

# TODO(synk): the embed_len > low_rank*rank_multi token-subsampling branch (torch.linspace
# indices in gen_weights) is not implemented in the fused kernel; it is not hit at this
# config (num_patches=16 <= 200).
assert A_DIM == NUM_PATCHES


# ----------------------------- bias / LN vector slab layout ---------------------------
def _vec_row_names():
    names = ["pe_b"]
    for l in range(DEPTH):
        names += [f"n1_g{l}", f"n1_b{l}", f"qk_b{l}", f"cw_b{l}", f"proj_b{l}",
                  f"n2_g{l}", f"n2_b{l}", f"fc1_b{l}", f"fc2_b{l}"]
    names += ["norm_g", "norm_b"]
    names += [f"head_b{d}" for d in range(DECODER_DEPTH)]
    names += ["head_out_b"]
    return names


_VEC_ROW_NAMES = _vec_row_names()
VROW = {n: i for i, n in enumerate(_VEC_ROW_NAMES)}


# ----------------------------- in-kernel math helpers --------------------------------
def _layernorm(x, g, b):
    # PyTorch LayerNorm, eps=1e-5
    mean = jnp.mean(x, axis=-1, keepdims=True)
    var = jnp.mean(jnp.square(x - mean), axis=-1, keepdims=True)
    return (x - mean) * lax.rsqrt(var + 1e-5) * g + b


def _erf(x):
    # Abramowitz & Stegun 7.1.26 rational approximation (|abs err| <= ~1e-6 with the
    # EUP approx reciprocal); built only from ops with guaranteed Mosaic lowerings.
    p = 0.3275911
    a1, a2, a3, a4, a5 = 0.254829592, -0.284496736, 1.421413741, -1.453152027, 1.061405429
    ax = jnp.abs(x)
    t = pl.reciprocal(1.0 + p * ax, approx=True)          # EUP slot (free vs VALU divide)
    poly = ((((a5 * t + a4) * t + a3) * t + a2) * t + a1) * t
    y = 1.0 - poly * jnp.exp(-ax * ax)
    return jnp.where(x >= 0, y, -y)


def _gelu(x):
    # nn.GELU() default: exact erf-based GELU.
    return 0.5 * x * (1.0 + _erf(x * 0.7071067811865476))


# ----------------------------- the fused forward kernel ------------------------------
def _fused_vit_kernel(xp_ref, pos_ref, pew_ref, w3232_ref, qkw_ref, wewr_ref, cwbd_ref,
                      fc1_ref, fc2_ref, genmask_ref, qnones_ref, vecs_ref,
                      out_ref, *, bb):
    f32, bf = jnp.float32, jnp.bfloat16
    N, D = NUM_PATCHES, EMBED_DIM

    vec = vecs_ref[...]                                   # (24, 128) f32 bias/LN slab

    def vrow(name, width):
        i = VROW[name]
        return vec[i:i + 1, :width]                       # (1, width)

    gen_mask = genmask_ref[...]                           # (D, HR)  f32 block-diag 0/1
    qn_ones = qnones_ref[...]                             # (2D, 2D) bf16 block-diag 0/1

    # ---- patch embed (Conv2d kernel=stride=patch as matmul) + fixed sincos pos ----
    tok = (jnp.dot(xp_ref[...].astype(bf), pew_ref[...], preferred_element_type=f32)
           + vrow("pe_b", D) + pos_ref[...])              # (bb*N, D) f32

    for layer in range(DEPTH):                            # statically unrolled (DEPTH=2)
        # ---- PrimalAttention branch: tok = tok + proj(attn(norm1(tok))) ----
        y = _layernorm(tok, vrow(f"n1_g{layer}", D), vrow(f"n1_b{layer}", D))
        qk = (jnp.dot(y.astype(bf), qkw_ref[layer], preferred_element_type=f32)
              + vrow(f"qk_b{layer}", 2 * D))              # (bb*N, 2D)

        # grouped per-head L2 norm of q and k (F.normalize, eps=1e-12) in one MXU op.
        ss = jnp.dot((qk * qk).astype(bf), qn_ones, preferred_element_type=f32)
        qkn = qk * lax.rsqrt(jnp.maximum(ss, 1e-24))
        qn = qkn[:, :D]
        kn = qkn[:, D:]

        we_cat = wewr_ref[layer, 0]                       # (N, HR) bf16
        wr_cat = wewr_ref[layer, 1]
        esc_parts, rsc_parts = [], []
        for b in range(bb):                               # gen_weights is per image
            r0 = b * N
            y_bt = y[r0:r0 + N, :].T.astype(bf)           # (D, N)
            wef = jnp.dot(y_bt, we_cat, preferred_element_type=f32)      # (D, HR)
            wrf = jnp.dot(y_bt, wr_cat, preferred_element_type=f32)
            we_bd = (wef * gen_mask).astype(bf)           # keep head-diagonal blocks
            wr_bd = (wrf * gen_mask).astype(bf)
            esc_parts.append(jnp.dot(qn[r0:r0 + N, :].astype(bf), we_bd,
                                     preferred_element_type=f32))        # (N, HR)
            rsc_parts.append(jnp.dot(kn[r0:r0 + N, :].astype(bf), wr_bd,
                                     preferred_element_type=f32))
        esc = esc_parts[0] if bb == 1 else jnp.concatenate(esc_parts, axis=0)
        rsc = rsc_parts[0] if bb == 1 else jnp.concatenate(rsc_parts, axis=0)

        # concate_weight on cat([esc, rsc], -1) for all heads at once, via the pre-packed
        # block-diagonal (HR, D) weights; then the attention projection on the folded batch.
        head_out = (jnp.dot(esc.astype(bf), cwbd_ref[layer, 0], preferred_element_type=f32)
                    + jnp.dot(rsc.astype(bf), cwbd_ref[layer, 1], preferred_element_type=f32)
                    + vrow(f"cw_b{layer}", D))            # (bb*N, D)
        tok = tok + (jnp.dot(head_out.astype(bf), w3232_ref[layer],
                             preferred_element_type=f32)
                     + vrow(f"proj_b{layer}", D))

        # ---- MLP branch: tok = tok + fc2(gelu(fc1(norm2(tok)))) ----
        y2 = _layernorm(tok, vrow(f"n2_g{layer}", D), vrow(f"n2_b{layer}", D))
        h = _gelu(jnp.dot(y2.astype(bf), fc1_ref[layer], preferred_element_type=f32)
                  + vrow(f"fc1_b{layer}", MLP_HIDDEN))
        tok = tok + (jnp.dot(h.astype(bf), fc2_ref[layer], preferred_element_type=f32)
                     + vrow(f"fc2_b{layer}", D))

    # ---- final encoder norm + decoder head ----
    y = _layernorm(tok, vrow("norm_g", D), vrow("norm_b", D))
    for d in range(DECODER_DEPTH):                        # Linear -> GELU, unrolled
        y = _gelu(jnp.dot(y.astype(bf), w3232_ref[DEPTH + d],
                          preferred_element_type=f32) + vrow(f"head_b{d}", D))
    y = (jnp.dot(y.astype(bf), w3232_ref[DEPTH + DECODER_DEPTH],
                 preferred_element_type=f32) + vrow("head_out_b", OUT_DIM))

    out_ref[...] = y.astype(out_ref.dtype)                # (bb*N, OUT_DIM)


# ----------------------------- pallas_call wrapper ------------------------------------
def _full_spec(arr):
    zeros = (0,) * arr.ndim
    return pl.BlockSpec(arr.shape, lambda g, _z=zeros: _z)


def _choose_bb(batch):
    # Fold as many images as possible (<=8 => 128 MXU rows) into one grid step.
    bb = 1
    for d in range(1, min(batch, 8) + 1):
        if batch % d == 0:
            bb = d
    # v7x: if halving keeps >=4 images/step, prefer an even grid-step count so both
    # TensorCores of the "parallel" batch axis get work.
    if (batch // bb) % 2 == 1 and bb >= 8 and bb % 2 == 0:
        bb //= 2
    return bb


def _cost_estimate(batch, operands):
    N, D = NUM_PATCHES, EMBED_DIM
    per_layer = (2 * N * D * 2 * D                 # qk
                 + 2 * N * 2 * D * 2 * D           # grouped-norm sum-of-squares
                 + 2 * (2 * D * N * HR)            # gen_weights (we, wr)
                 + 2 * (2 * N * D * HR)            # e/r scores
                 + 2 * (2 * N * HR * D)            # concate_weight (block-diag)
                 + 2 * N * D * D                   # attn proj
                 + 2 * 2 * N * D * MLP_HIDDEN)     # mlp
    flops = batch * (2 * N * PATCH_DIM * D
                     + DEPTH * per_layer
                     + DECODER_DEPTH * 2 * N * D * D
                     + 2 * N * D * OUT_DIM)
    transcendentals = batch * N * (DEPTH * MLP_HIDDEN + DECODER_DEPTH * D)
    bytes_accessed = (sum(int(np.prod(o.shape)) * o.dtype.itemsize for o in operands)
                      + batch * N * OUT_DIM * 4)
    return pl.CostEstimate(flops=int(flops), transcendentals=int(transcendentals),
                           bytes_accessed=int(bytes_accessed))


def vit_forward_tokens(packed, xp_flat, pos_tiled, bb):
    """xp_flat: (B*N, PATCH_DIM) -> (B*N, OUT_DIM); whole ViT forward in one pallas_call."""
    BN = xp_flat.shape[0]
    rows = bb * NUM_PATCHES
    steps = BN // rows
    operands = [xp_flat, pos_tiled,
                packed["pe_w"], packed["w3232"], packed["qk_w"], packed["wewr"],
                packed["cw_bd"], packed["fc1_w"], packed["fc2_w"],
                packed["gen_mask"], packed["qn_ones"], packed["vecs"]]
    in_specs = ([pl.BlockSpec((rows, PATCH_DIM), lambda g: (g, 0))]
                + [_full_spec(op) for op in operands[1:]])
    return pl.pallas_call(
        functools.partial(_fused_vit_kernel, bb=bb),
        out_shape=jax.ShapeDtypeStruct((BN, OUT_DIM), jnp.float32),
        grid=(steps,),
        in_specs=in_specs,
        out_specs=pl.BlockSpec((rows, OUT_DIM), lambda g: (g, 0)),
        compiler_params=pltpu.CompilerParams(dimension_semantics=("parallel",)),
        cost_estimate=_cost_estimate(BN // NUM_PATCHES, operands),
    )(*operands)


# ----------------------------- pos embed / parameter init (deterministic, synthetic) --
def _get_1d_sincos(embed_dim, pos):
    omega = np.arange(embed_dim // 2, dtype=np.float64) / (embed_dim / 2.0)
    omega = 1.0 / 10000 ** omega
    out = np.einsum("m,d->md", pos.reshape(-1).astype(np.float64), omega)
    return np.concatenate([np.sin(out), np.cos(out)], axis=1)


def get_2d_sincos_pos_embed(embed_dim, grid_h, grid_w):
    gh = np.arange(grid_h, dtype=np.float32)
    gw = np.arange(grid_w, dtype=np.float32)
    grid = np.meshgrid(gw, gh)                              # w goes first (MAE convention)
    grid = np.stack(grid, axis=0).reshape(2, 1, grid_h, grid_w)
    emb_h = _get_1d_sincos(embed_dim // 2, grid[0])
    emb_w = _get_1d_sincos(embed_dim // 2, grid[1])
    return np.concatenate([emb_h, emb_w], axis=1).astype(np.float32)   # (h*w, D)


def trunc_normal(key, shape, std=0.02):
    return (std * jax.random.truncated_normal(key, -2.0, 2.0, shape)).astype(jnp.float32)


def orthogonal_heads(key, num_heads, a, r):
    keys = jax.random.split(key, num_heads)
    mats = []
    for h in range(num_heads):
        g = jax.random.normal(keys[h], (max(a, r), min(a, r)), dtype=jnp.float32)
        qm, _ = jnp.linalg.qr(g)
        mats.append(qm if a >= r else qm.T)
    return jnp.stack(mats)                                  # (H, a, r)


def init_params(key):
    keys = iter(jax.random.split(key, 64))
    nk = lambda: next(keys)
    stack = lambda fn: jnp.stack([fn(nk()) for _ in range(DEPTH)])

    # Note for checkpoint porting: linear weights here are stored (in, out), i.e. the
    # transpose of PyTorch nn.Linear.weight, and concate_weight is pre-split into its
    # escore (cw_e) and rscore (cw_r) halves.
    return dict(
        pe_w=trunc_normal(nk(), (PATCH_DIM, EMBED_DIM)),
        pe_b=jnp.zeros((EMBED_DIM,), jnp.float32),
        pos_embed=jnp.asarray(get_2d_sincos_pos_embed(EMBED_DIM, GRID_H, GRID_W)),
        n1_g=jnp.ones((DEPTH, EMBED_DIM), jnp.float32),
        n1_b=jnp.zeros((DEPTH, EMBED_DIM), jnp.float32),
        qk_w=stack(lambda k: trunc_normal(k, (EMBED_DIM, 2 * EMBED_DIM))),  # qk_bias=True
        qk_b=jnp.zeros((DEPTH, 2 * EMBED_DIM), jnp.float32),
        we=stack(lambda k: orthogonal_heads(k, NUM_HEADS, A_DIM, LOW_RANK)),
        wr=stack(lambda k: orthogonal_heads(k, NUM_HEADS, A_DIM, LOW_RANK)),
        cw_e=stack(lambda k: trunc_normal(k, (LOW_RANK, HEAD_DIM))),
        cw_r=stack(lambda k: trunc_normal(k, (LOW_RANK, HEAD_DIM))),
        cw_b=jnp.zeros((DEPTH, HEAD_DIM), jnp.float32),
        proj_w=stack(lambda k: trunc_normal(k, (EMBED_DIM, EMBED_DIM))),
        proj_b=jnp.zeros((DEPTH, EMBED_DIM), jnp.float32),
        n2_g=jnp.ones((DEPTH, EMBED_DIM), jnp.float32),
        n2_b=jnp.zeros((DEPTH, EMBED_DIM), jnp.float32),
        fc1_w=stack(lambda k: trunc_normal(k, (EMBED_DIM, MLP_HIDDEN))),
        fc1_b=jnp.zeros((DEPTH, MLP_HIDDEN), jnp.float32),
        fc2_w=stack(lambda k: trunc_normal(k, (MLP_HIDDEN, EMBED_DIM))),
        fc2_b=jnp.zeros((DEPTH, EMBED_DIM), jnp.float32),
        norm_g=jnp.ones((EMBED_DIM,), jnp.float32),
        norm_b=jnp.zeros((EMBED_DIM,), jnp.float32),
        head_w=jnp.stack([trunc_normal(nk(), (EMBED_DIM, EMBED_DIM))
                          for _ in range(DECODER_DEPTH)]),
        head_b=jnp.zeros((DECODER_DEPTH, EMBED_DIM), jnp.float32),
        head_out_w=trunc_normal(nk(), (EMBED_DIM, OUT_DIM)),
        head_out_b=jnp.zeros((OUT_DIM,), jnp.float32),
    )


# ----------------------------- host-side packing of kernel operands --------------------
def _block_diag_ones(nblocks, bh, bw):
    m = np.zeros((nblocks * bh, nblocks * bw), np.float32)
    for i in range(nblocks):
        m[i * bh:(i + 1) * bh, i * bw:(i + 1) * bw] = 1.0
    return m


def pack_params(p):
    bf = jnp.bfloat16

    # (DEPTH + DECODER_DEPTH + 1, 32, 32): [proj_w per layer, head_w per decoder, head_out_w]
    w3232 = jnp.concatenate([p["proj_w"], p["head_w"], p["head_out_w"][None]],
                            axis=0).astype(bf)

    # we/wr concatenated over heads along the last dim: (DEPTH, N, H*R)
    wecat = jnp.transpose(p["we"], (0, 2, 1, 3)).reshape(DEPTH, A_DIM, HR)
    wrcat = jnp.transpose(p["wr"], (0, 2, 1, 3)).reshape(DEPTH, A_DIM, HR)
    wewr = jnp.stack([wecat, wrcat], axis=1).astype(bf)       # (DEPTH, 2, N, HR)

    def bdiag(cw):  # (DEPTH, R, hd) -> (DEPTH, H*R, D) block-diagonal (shared across heads)
        out = jnp.zeros((DEPTH, HR, EMBED_DIM), jnp.float32)
        for h in range(NUM_HEADS):
            out = out.at[:, h * LOW_RANK:(h + 1) * LOW_RANK,
                         h * HEAD_DIM:(h + 1) * HEAD_DIM].set(cw)
        return out
    cw_bd = jnp.stack([bdiag(p["cw_e"]), bdiag(p["cw_r"])], axis=1).astype(bf)

    gen_mask = jnp.asarray(_block_diag_ones(NUM_HEADS, HEAD_DIM, LOW_RANK))          # f32
    qn_ones = jnp.asarray(_block_diag_ones(2 * NUM_HEADS, HEAD_DIM, HEAD_DIM)).astype(bf)

    rvals = {"pe_b": p["pe_b"], "norm_g": p["norm_g"], "norm_b": p["norm_b"],
             "head_out_b": p["head_out_b"]}
    for l in range(DEPTH):
        rvals[f"n1_g{l}"] = p["n1_g"][l]
        rvals[f"n1_b{l}"] = p["n1_b"][l]
        rvals[f"qk_b{l}"] = p["qk_b"][l]
        rvals[f"cw_b{l}"] = jnp.tile(p["cw_b"][l].reshape(-1), NUM_HEADS)   # per-head tiled
        rvals[f"proj_b{l}"] = p["proj_b"][l]
        rvals[f"n2_g{l}"] = p["n2_g"][l]
        rvals[f"n2_b{l}"] = p["n2_b"][l]
        rvals[f"fc1_b{l}"] = p["fc1_b"][l]
        rvals[f"fc2_b{l}"] = p["fc2_b"][l]
    for d in range(DECODER_DEPTH):
        rvals[f"head_b{d}"] = p["head_b"][d]

    def pad128(v):
        v = jnp.reshape(v, (-1,)).astype(jnp.float32)
        return jnp.pad(v, (0, VEC_W - v.shape[0]))
    vecs = jnp.stack([pad128(rvals[n]) for n in _VEC_ROW_NAMES])          # (24, 128) f32

    return dict(pe_w=p["pe_w"].astype(bf), w3232=w3232, qk_w=p["qk_w"].astype(bf),
                wewr=wewr, cw_bd=cw_bd,
                fc1_w=p["fc1_w"].astype(bf), fc2_w=p["fc2_w"].astype(bf),
                gen_mask=gen_mask, qn_ones=qn_ones, vecs=vecs,
                pos=p["pos_embed"].astype(jnp.float32))


# ----------------------------- host-side glue + forward -------------------------------
def unpatchify(x):
    B = x.shape[0]
    x = x.reshape(B, GRID_H, GRID_W, PATCH, PATCH, OUT_CHANNELS)
    x = jnp.einsum("nhwpqc->nchpwq", x)
    return x.reshape(B, OUT_CHANNELS, GRID_H * PATCH, GRID_W * PATCH)


@jax.jit
def forward(packed, x):
    if x.ndim == 5:                                   # (B, T, C, H, W) -> (B, T*C, H, W)
        x = x.reshape(x.shape[0], -1, x.shape[3], x.shape[4])
    B, C, H, W = x.shape
    h, w, p = H // PATCH, W // PATCH, PATCH
    # Conv2d(kernel=stride=patch) == patch extraction (host reshape) + in-kernel matmul.
    xp = (x.reshape(B, C, h, p, w, p)
           .transpose(0, 2, 4, 1, 3, 5)
           .reshape(B * h * w, C * p * p))            # (B*N, PATCH_DIM)
    bb = _choose_bb(B)
    pos_tiled = jnp.tile(packed["pos"], (bb, 1))      # (bb*N, D)
    y = vit_forward_tokens(packed, xp, pos_tiled, bb)  # (B*N, OUT_DIM)
    return unpatchify(y.reshape(B, NUM_PATCHES, OUT_DIM))


# ----------------------------- main ----------------------------------------------------
if __name__ == "__main__":
    key = jax.random.PRNGKey(0)
    pkey, xkey = jax.random.split(key)
    params = init_params(pkey)
    packed = pack_params(params)
    # Input: NCHW, channels = in_channels * history (the module's post-flatten layout).
    x = jax.random.normal(xkey, (2, TOTAL_IN, IMG_SIZE[0], IMG_SIZE[1]), dtype=jnp.float32)
    out = jax.block_until_ready(forward(packed, x))
    assert out.shape == (2, OUT_CHANNELS, IMG_SIZE[0], IMG_SIZE[1]), out.shape
    assert bool(jnp.all(jnp.isfinite(out)))
    print("KERNEL_OK")
</pallas_src>

<mosaic_0001>
module attributes {stable_mosaic.version = 11 : i64} {
  func.func @_fused_vit_kernel(%arg0: i32, %arg1: memref<32x64xf32, #tpu.memory_space<vmem>>, %arg2: memref<32x32xf32, #tpu.memory_space<vmem>>, %arg3: memref<64x32xbf16, #tpu.memory_space<vmem>>, %arg4: memref<5x32x32xbf16, #tpu.memory_space<vmem>>, %arg5: memref<2x32x64xbf16, #tpu.memory_space<vmem>>, %arg6: memref<2x2x16x80xbf16, #tpu.memory_space<vmem>>, %arg7: memref<2x2x80x32xbf16, #tpu.memory_space<vmem>>, %arg8: memref<2x32x128xbf16, #tpu.memory_space<vmem>>, %arg9: memref<2x128x32xbf16, #tpu.memory_space<vmem>>, %arg10: memref<32x80xf32, #tpu.memory_space<vmem>>, %arg11: memref<64x64xbf16, #tpu.memory_space<vmem>>, %arg12: memref<24x128xf32, #tpu.memory_space<vmem>>, %arg13: memref<32x32xf32, #tpu.memory_space<vmem>>) attributes {dimension_semantics = [#tpu.dimension_semantics<parallel>], iteration_bounds = array<i64: 1>, scalar_prefetch = 0 : i64, scratch_operands = 0 : i64, tpu.core_type = #tpu.core_type<tc>, window_params = [{transform_indices = @transform_0, window_bounds = array<i64: 32, 64>}, {pipeline_mode = #tpu.pipeline_mode<synchronous>, transform_indices = @transform_1, window_bounds = array<i64: 32, 32>}, {pipeline_mode = #tpu.pipeline_mode<synchronous>, transform_indices = @transform_2, window_bounds = array<i64: 64, 32>}, {pipeline_mode = #tpu.pipeline_mode<synchronous>, transform_indices = @transform_3, window_bounds = array<i64: 5, 32, 32>}, {pipeline_mode = #tpu.pipeline_mode<synchronous>, transform_indices = @transform_4, window_bounds = array<i64: 2, 32, 64>}, {pipeline_mode = #tpu.pipeline_mode<synchronous>, transform_indices = @transform_5, window_bounds = array<i64: 2, 2, 16, 80>}, {pipeline_mode = #tpu.pipeline_mode<synchronous>, transform_indices = @transform_6, window_bounds = array<i64: 2, 2, 80, 32>}, {pipeline_mode = #tpu.pipeline_mode<synchronous>, transform_indices = @transform_7, window_bounds = array<i64: 2, 32, 128>}, {pipeline_mode = #tpu.pipeline_mode<synchronous>, transform_indices = @transform_8, window_bounds = array<i64: 2, 128, 32>}, {pipeline_mode = #tpu.pipeline_mode<synchronous>, transform_indices = @transform_9, window_bounds = array<i64: 32, 80>}, {pipeline_mode = #tpu.pipeline_mode<synchronous>, transform_indices = @transform_10, window_bounds = array<i64: 64, 64>}, {pipeline_mode = #tpu.pipeline_mode<synchronous>, transform_indices = @transform_11, window_bounds = array<i64: 24, 128>}, {transform_indices = @transform_12, window_bounds = array<i64: 32, 32>}]} {
    %c0 = arith.constant 0 : index
    %c0_0 = arith.constant 0 : index
    %0 = vector.load %arg12[%c0, %c0_0] : memref<24x128xf32, #tpu.memory_space<vmem>>, vector<24x128xf32>
    %c0_1 = arith.constant 0 : index
    %c0_2 = arith.constant 0 : index
    %1 = vector.load %arg10[%c0_1, %c0_2] : memref<32x80xf32, #tpu.memory_space<vmem>>, vector<32x80xf32>
    %c0_3 = arith.constant 0 : index
    %c0_4 = arith.constant 0 : index
    %2 = vector.load %arg11[%c0_3, %c0_4] : memref<64x64xbf16, #tpu.memory_space<vmem>>, vector<64x64xbf16>
    %c0_5 = arith.constant 0 : index
    %c0_6 = arith.constant 0 : index
    %3 = vector.load %arg1[%c0_5, %c0_6] : memref<32x64xf32, #tpu.memory_space<vmem>>, vector<32x64xf32>
    %4 = arith.truncf %3 : vector<32x64xf32> to vector<32x64xbf16>
    %c0_7 = arith.constant 0 : index
    %c0_8 = arith.constant 0 : index
    %5 = vector.load %arg3[%c0_7, %c0_8] : memref<64x32xbf16, #tpu.memory_space<vmem>>, vector<64x32xbf16>
    %cst = arith.constant dense<0.000000e+00> : vector<32x32xf32>
    %6 = tpu.matmul %4, %5, %cst {dimension_numbers = #tpu.dot_dimension_numbers<[1], [0], [0], [1], [0, 0, 1, 1], [], []>} : vector<32x64xbf16>, vector<64x32xbf16>, vector<32x32xf32> -> vector<32x32xf32>
    %7 = vector.extract_strided_slice %0 {offsets = [0, 0], sizes = [1, 32], strides = [1, 1]} : vector<24x128xf32> to vector<1x32xf32>
    %8 = vector.broadcast %7 : vector<1x32xf32> to vector<32x32xf32>
    %9 = arith.addf %6, %8 : vector<32x32xf32>
    %c0_9 = arith.constant 0 : index
    %c0_10 = arith.constant 0 : index
    %10 = vector.load %arg2[%c0_9, %c0_10] : memref<32x32xf32, #tpu.memory_space<vmem>>, vector<32x32xf32>
    %11 = arith.addf %9, %10 : vector<32x32xf32>
    %12 = vector.extract_strided_slice %0 {offsets = [1, 0], sizes = [1, 32], strides = [1, 1]} : vector<24x128xf32> to vector<1x32xf32>
    %13 = vector.extract_strided_slice %0 {offsets = [2, 0], sizes = [1, 32], strides = [1, 1]} : vector<24x128xf32> to vector<1x32xf32>
    %cst_11 = arith.constant dense<0.000000e+00> : vector<32xf32>
    %14 = vector.multi_reduction <add>, %11, %cst_11 [1] : vector<32x32xf32> to vector<32xf32>
    %15 = vector.shape_cast %14 : vector<32xf32> to vector<32x1xf32>
    %cst_12 = arith.constant 3.200000e+01 : f32
    %16 = vector.broadcast %cst_12 : f32 to vector<32x1xf32>
    %17 = arith.divf %15, %16 : vector<32x1xf32>
    %18 = vector.broadcast %17 : vector<32x1xf32> to vector<32x32xf32>
    %19 = arith.subf %11, %18 : vector<32x32xf32>
    %20 = arith.mulf %19, %19 : vector<32x32xf32>
    %cst_13 = arith.constant dense<0.000000e+00> : vector<32xf32>
    %21 = vector.multi_reduction <add>, %20, %cst_13 [1] : vector<32x32xf32> to vector<32xf32>
    %22 = vector.shape_cast %21 : vector<32xf32> to vector<32x1xf32>
    %cst_14 = arith.constant 3.200000e+01 : f32
    %23 = vector.broadcast %cst_14 : f32 to vector<32x1xf32>
    %24 = arith.divf %22, %23 : vector<32x1xf32>
    %25 = vector.broadcast %17 : vector<32x1xf32> to vector<32x32xf32>
    %26 = arith.subf %11, %25 : vector<32x32xf32>
    %cst_15 = arith.constant 9.99999974E-6 : f32
    %27 = vector.broadcast %cst_15 : f32 to vector<32x1xf32>
    %28 = arith.addf %24, %27 : vector<32x1xf32>
    %29 = math.rsqrt %28 : vector<32x1xf32>
    %30 = vector.broadcast %29 : vector<32x1xf32> to vector<32x32xf32>
    %31 = arith.mulf %26, %30 : vector<32x32xf32>
    %32 = vector.broadcast %12 : vector<1x32xf32> to vector<32x32xf32>
    %33 = arith.mulf %31, %32 : vector<32x32xf32>
    %34 = vector.broadcast %13 : vector<1x32xf32> to vector<32x32xf32>
    %35 = arith.addf %33, %34 : vector<32x32xf32>
    %36 = arith.truncf %35 : vector<32x32xf32> to vector<32x32xbf16>
    %c0_16 = arith.constant 0 : index
    %c0_17 = arith.constant 0 : index
    %c0_18 = arith.constant 0 : index
    %37 = vector.load %arg5[%c0_16, %c0_17, %c0_18] : memref<2x32x64xbf16, #tpu.memory_space<vmem>>, vector<1x32x64xbf16>
    %38 = vector.shape_cast %37 : vector<1x32x64xbf16> to vector<32x64xbf16>
    %cst_19 = arith.constant dense<0.000000e+00> : vector<32x64xf32>
    %39 = tpu.matmul %36, %38, %cst_19 {dimension_numbers = #tpu.dot_dimension_numbers<[1], [0], [0], [1], [0, 0, 1, 1], [], []>} : vector<32x32xbf16>, vector<32x64xbf16>, vector<32x64xf32> -> vector<32x64xf32>
    %40 = vector.extract_strided_slice %0 {offsets = [3, 0], sizes = [1, 64], strides = [1, 1]} : vector<24x128xf32> to vector<1x64xf32>
    %41 = vector.broadcast %40 : vector<1x64xf32> to vector<32x64xf32>
    %42 = arith.addf %39, %41 : vector<32x64xf32>
    %43 = arith.mulf %42, %42 : vector<32x64xf32>
    %44 = arith.truncf %43 : vector<32x64xf32> to vector<32x64xbf16>
    %cst_20 = arith.constant dense<0.000000e+00> : vector<32x64xf32>
    %45 = tpu.matmul %44, %2, %cst_20 {dimension_numbers = #tpu.dot_dimension_numbers<[1], [0], [0], [1], [0, 0, 1, 1], [], []>} : vector<32x64xbf16>, vector<64x64xbf16>, vector<32x64xf32> -> vector<32x64xf32>
    %cst_21 = arith.constant 1.000000e-24 : f32
    %46 = vector.broadcast %cst_21 : f32 to vector<32x64xf32>
    %47 = arith.maximumf %45, %46 : vector<32x64xf32>
    %48 = math.rsqrt %47 : vector<32x64xf32>
    %49 = arith.mulf %42, %48 : vector<32x64xf32>
    %50 = vector.extract_strided_slice %49 {offsets = [0, 0], sizes = [32, 32], strides = [1, 1]} : vector<32x64xf32> to vector<32x32xf32>
    %51 = vector.extract_strided_slice %49 {offsets = [0, 32], sizes = [32, 32], strides = [1, 1]} : vector<32x64xf32> to vector<32x32xf32>
    %c0_22 = arith.constant 0 : index
    %c0_23 = arith.constant 0 : index
    %c0_24 = arith.constant 0 : index
    %c0_25 = arith.constant 0 : index
    %52 = vector.load %arg6[%c0_22, %c0_23, %c0_24, %c0_25] : memref<2x2x16x80xbf16, #tpu.memory_space<vmem>>, vector<1x1x16x80xbf16>
    %53 = vector.shape_cast %52 : vector<1x1x16x80xbf16> to vector<16x80xbf16>
    %c0_26 = arith.constant 0 : index
    %c1 = arith.constant 1 : index
    %c0_27 = arith.constant 0 : index
    %c0_28 = arith.constant 0 : index
    %54 = vector.load %arg6[%c0_26, %c1, %c0_27, %c0_28] : memref<2x2x16x80xbf16, #tpu.memory_space<vmem>>, vector<1x1x16x80xbf16>
    %55 = vector.shape_cast %54 : vector<1x1x16x80xbf16> to vector<16x80xbf16>
    %56 = vector.extract_strided_slice %35 {offsets = [0, 0], sizes = [16, 32], strides = [1, 1]} : vector<32x32xf32> to vector<16x32xf32>
    %57 = tpu.transpose %56, [1, 0] : vector<16x32xf32> -> vector<32x16xf32>
    %58 = arith.truncf %57 : vector<32x16xf32> to vector<32x16xbf16>
    %cst_29 = arith.constant dense<0.000000e+00> : vector<32x80xf32>
    %59 = tpu.matmul %58, %53, %cst_29 {dimension_numbers = #tpu.dot_dimension_numbers<[1], [0], [0], [1], [0, 0, 1, 1], [], []>} : vector<32x16xbf16>, vector<16x80xbf16>, vector<32x80xf32> -> vector<32x80xf32>
    %cst_30 = arith.constant dense<0.000000e+00> : vector<32x80xf32>
    %60 = tpu.matmul %58, %55, %cst_30 {dimension_numbers = #tpu.dot_dimension_numbers<[1], [0], [0], [1], [0, 0, 1, 1], [], []>} : vector<32x16xbf16>, vector<16x80xbf16>, vector<32x80xf32> -> vector<32x80xf32>
    %61 = arith.mulf %59, %1 : vector<32x80xf32>
    %62 = arith.truncf %61 : vector<32x80xf32> to vector<32x80xbf16>
    %63 = arith.mulf %60, %1 : vector<32x80xf32>
    %64 = arith.truncf %63 : vector<32x80xf32> to vector<32x80xbf16>
    %65 = vector.extract_strided_slice %50 {offsets = [0, 0], sizes = [16, 32], strides = [1, 1]} : vector<32x32xf32> to vector<16x32xf32>
    %66 = arith.truncf %65 : vector<16x32xf32> to vector<16x32xbf16>
    %cst_31 = arith.constant dense<0.000000e+00> : vector<16x80xf32>
    %67 = tpu.matmul %66, %62, %cst_31 {dimension_numbers = #tpu.dot_dimension_numbers<[1], [0], [0], [1], [0, 0, 1, 1], [], []>} : vector<16x32xbf16>, vector<32x80xbf16>, vector<16x80xf32> -> vector<16x80xf32>
    %68 = vector.extract_strided_slice %51 {offsets = [0, 0], sizes = [16, 32], strides = [1, 1]} : vector<32x32xf32> to vector<16x32xf32>
    %69 = arith.truncf %68 : vector<16x32xf32> to vector<16x32xbf16>
    %cst_32 = arith.constant dense<0.000000e+00> : vector<16x80xf32>
    %70 = tpu.matmul %69, %64, %cst_32 {dimension_numbers = #tpu.dot_dimension_numbers<[1], [0], [0], [1], [0, 0, 1, 1], [], []>} : vector<16x32xbf16>, vector<32x80xbf16>, vector<16x80xf32> -> vector<16x80xf32>
    %71 = vector.extract_strided_slice %35 {offsets = [16, 0], sizes = [16, 32], strides = [1, 1]} : vector<32x32xf32> to vector<16x32xf32>
    %72 = tpu.transpose %71, [1, 0] : vector<16x32xf32> -> vector<32x16xf32>
    %73 = arith.truncf %72 : vector<32x16xf32> to vector<32x16xbf16>
    %cst_33 = arith.constant dense<0.000000e+00> : vector<32x80xf32>
    %74 = tpu.matmul %73, %53, %cst_33 {dimension_numbers = #tpu.dot_dimension_numbers<[1], [0], [0], [1], [0, 0, 1, 1], [], []>} : vector<32x16xbf16>, vector<16x80xbf16>, vector<32x80xf32> -> vector<32x80xf32>
    %cst_34 = arith.constant dense<0.000000e+00> : vector<32x80xf32>
    %75 = tpu.matmul %73, %55, %cst_34 {dimension_numbers = #tpu.dot_dimension_numbers<[1], [0], [0], [1], [0, 0, 1, 1], [], []>} : vector<32x16xbf16>, vector<16x80xbf16>, vector<32x80xf32> -> vector<32x80xf32>
    %76 = arith.mulf %74, %1 : vector<32x80xf32>
    %77 = arith.truncf %76 : vector<32x80xf32> to vector<32x80xbf16>
    %78 = arith.mulf %75, %1 : vector<32x80xf32>
    %79 = arith.truncf %78 : vector<32x80xf32> to vector<32x80xbf16>
    %80 = vector.extract_strided_slice %50 {offsets = [16, 0], sizes = [16, 32], strides = [1, 1]} : vector<32x32xf32> to vector<16x32xf32>
    %81 = arith.truncf %80 : vector<16x32xf32> to vector<16x32xbf16>
    %cst_35 = arith.constant dense<0.000000e+00> : vector<16x80xf32>
    %82 = tpu.matmul %81, %77, %cst_35 {dimension_numbers = #tpu.dot_dimension_numbers<[1], [0], [0], [1], [0, 0, 1, 1], [], []>} : vector<16x32xbf16>, vector<32x80xbf16>, vector<16x80xf32> -> vector<16x80xf32>
    %83 = vector.extract_strided_slice %51 {offsets = [16, 0], sizes = [16, 32], strides = [1, 1]} : vector<32x32xf32> to vector<16x32xf32>
    %84 = arith.truncf %83 : vector<16x32xf32> to vector<16x32xbf16>
    %cst_36 = arith.constant dense<0.000000e+00> : vector<16x80xf32>
    %85 = tpu.matmul %84, %79, %cst_36 {dimension_numbers = #tpu.dot_dimension_numbers<[1], [0], [0], [1], [0, 0, 1, 1], [], []>} : vector<16x32xbf16>, vector<32x80xbf16>, vector<16x80xf32> -> vector<16x80xf32>
    %86 = tpu.concatenate %67, %82 in 0 : vector<16x80xf32>, vector<16x80xf32> -> vector<32x80xf32>
    %87 = tpu.concatenate %70, %85 in 0 : vector<16x80xf32>, vector<16x80xf32> -> vector<32x80xf32>
    %88 = arith.truncf %86 : vector<32x80xf32> to vector<32x80xbf16>
    %c0_37 = arith.constant 0 : index
    %c0_38 = arith.constant 0 : index
    %c0_39 = arith.constant 0 : index
    %c0_40 = arith.constant 0 : index
    %89 = vector.load %arg7[%c0_37, %c0_38, %c0_39, %c0_40] : memref<2x2x80x32xbf16, #tpu.memory_space<vmem>>, vector<1x1x80x32xbf16>
    %90 = vector.shape_cast %89 : vector<1x1x80x32xbf16> to vector<80x32xbf16>
    %cst_41 = arith.constant dense<0.000000e+00> : vector<32x32xf32>
    %91 = tpu.matmul %88, %90, %cst_41 {dimension_numbers = #tpu.dot_dimension_numbers<[1], [0], [0], [1], [0, 0, 1, 1], [], []>} : vector<32x80xbf16>, vector<80x32xbf16>, vector<32x32xf32> -> vector<32x32xf32>
    %92 = arith.truncf %87 : vector<32x80xf32> to vector<32x80xbf16>
    %c0_42 = arith.constant 0 : index
    %c1_43 = arith.constant 1 : index
    %c0_44 = arith.constant 0 : index
    %c0_45 = arith.constant 0 : index
    %93 = vector.load %arg7[%c0_42, %c1_43, %c0_44, %c0_45] : memref<2x2x80x32xbf16, #tpu.memory_space<vmem>>, vector<1x1x80x32xbf16>
    %94 = vector.shape_cast %93 : vector<1x1x80x32xbf16> to vector<80x32xbf16>
    %cst_46 = arith.constant dense<0.000000e+00> : vector<32x32xf32>
    %95 = tpu.matmul %92, %94, %cst_46 {dimension_numbers = #tpu.dot_dimension_numbers<[1], [0], [0], [1], [0, 0, 1, 1], [], []>} : vector<32x80xbf16>, vector<80x32xbf16>, vector<32x32xf32> -> vector<32x32xf32>
    %96 = arith.addf %91, %95 : vector<32x32xf32>
    %97 = vector.extract_strided_slice %0 {offsets = [4, 0], sizes = [1, 32], strides = [1, 1]} : vector<24x128xf32> to vector<1x32xf32>
    %98 = vector.broadcast %97 : vector<1x32xf32> to vector<32x32xf32>
    %99 = arith.addf %96, %98 : vector<32x32xf32>
    %100 = arith.truncf %99 : vector<32x32xf32> to vector<32x32xbf16>
    %c0_47 = arith.constant 0 : index
    %c0_48 = arith.constant 0 : index
    %c0_49 = arith.constant 0 : index
    %101 = vector.load %arg4[%c0_47, %c0_48, %c0_49] : memref<5x32x32xbf16, #tpu.memory_space<vmem>>, vector<1x32x32xbf16>
    %102 = vector.shape_cast %101 : vector<1x32x32xbf16> to vector<32x32xbf16>
    %cst_50 = arith.constant dense<0.000000e+00> : vector<32x32xf32>
    %103 = tpu.matmul %100, %102, %cst_50 {dimension_numbers = #tpu.dot_dimension_numbers<[1], [0], [0], [1], [0, 0, 1, 1], [], []>} : vector<32x32xbf16>, vector<32x32xbf16>, vector<32x32xf32> -> vector<32x32xf32>
    %104 = vector.extract_strided_slice %0 {offsets = [5, 0], sizes = [1, 32], strides = [1, 1]} : vector<24x128xf32> to vector<1x32xf32>
    %105 = vector.broadcast %104 : vector<1x32xf32> to vector<32x32xf32>
    %106 = arith.addf %103, %105 : vector<32x32xf32>
    %107 = arith.addf %11, %106 : vector<32x32xf32>
    %108 = vector.extract_strided_slice %0 {offsets = [6, 0], sizes = [1, 32], strides = [1, 1]} : vector<24x128xf32> to vector<1x32xf32>
    %109 = vector.extract_strided_slice %0 {offsets = [7, 0], sizes = [1, 32], strides = [1, 1]} : vector<24x128xf32> to vector<1x32xf32>
    %cst_51 = arith.constant dense<0.000000e+00> : vector<32xf32>
    %110 = vector.multi_reduction <add>, %107, %cst_51 [1] : vector<32x32xf32> to vector<32xf32>
    %111 = vector.shape_cast %110 : vector<32xf32> to vector<32x1xf32>
    %cst_52 = arith.constant 3.200000e+01 : f32
    %112 = vector.broadcast %cst_52 : f32 to vector<32x1xf32>
    %113 = arith.divf %111, %112 : vector<32x1xf32>
    %114 = vector.broadcast %113 : vector<32x1xf32> to vector<32x32xf32>
    %115 = arith.subf %107, %114 : vector<32x32xf32>
    %116 = arith.mulf %115, %115 : vector<32x32xf32>
    %cst_53 = arith.constant dense<0.000000e+00> : vector<32xf32>
    %117 = vector.multi_reduction <add>, %116, %cst_53 [1] : vector<32x32xf32> to vector<32xf32>
    %118 = vector.shape_cast %117 : vector<32xf32> to vector<32x1xf32>
    %cst_54 = arith.constant 3.200000e+01 : f32
    %119 = vector.broadcast %cst_54 : f32 to vector<32x1xf32>
    %120 = arith.divf %118, %119 : vector<32x1xf32>
    %121 = vector.broadcast %113 : vector<32x1xf32> to vector<32x32xf32>
    %122 = arith.subf %107, %121 : vector<32x32xf32>
    %cst_55 = arith.constant 9.99999974E-6 : f32
    %123 = vector.broadcast %cst_55 : f32 to vector<32x1xf32>
    %124 = arith.addf %120, %123 : vector<32x1xf32>
    %125 = math.rsqrt %124 : vector<32x1xf32>
    %126 = vector.broadcast %125 : vector<32x1xf32> to vector<32x32xf32>
    %127 = arith.mulf %122, %126 : vector<32x32xf32>
    %128 = vector.broadcast %108 : vector<1x32xf32> to vector<32x32xf32>
    %129 = arith.mulf %127, %128 : vector<32x32xf32>
    %130 = vector.broadcast %109 : vector<1x32xf32> to vector<32x32xf32>
    %131 = arith.addf %129, %130 : vector<32x32xf32>
    %132 = arith.truncf %131 : vector<32x32xf32> to vector<32x32xbf16>
    %c0_56 = arith.constant 0 : index
    %c0_57 = arith.constant 0 : index
    %c0_58 = arith.constant 0 : index
    %133 = vector.load %arg8[%c0_56, %c0_57, %c0_58] : memref<2x32x128xbf16, #tpu.memory_space<vmem>>, vector<1x32x128xbf16>
    %134 = vector.shape_cast %133 : vector<1x32x128xbf16> to vector<32x128xbf16>
    %cst_59 = arith.constant dense<0.000000e+00> : vector<32x128xf32>
    %135 = tpu.matmul %132, %134, %cst_59 {dimension_numbers = #tpu.dot_dimension_numbers<[1], [0], [0], [1], [0, 0, 1, 1], [], []>} : vector<32x32xbf16>, vector<32x128xbf16>, vector<32x128xf32> -> vector<32x128xf32>
    %136 = vector.extract_strided_slice %0 {offsets = [8, 0], sizes = [1, 128], strides = [1, 1]} : vector<24x128xf32> to vector<1x128xf32>
    %137 = vector.broadcast %136 : vector<1x128xf32> to vector<32x128xf32>
    %138 = arith.addf %135, %137 : vector<32x128xf32>
    %cst_60 = arith.constant 5.000000e-01 : f32
    %139 = vector.broadcast %cst_60 : f32 to vector<32x128xf32>
    %140 = arith.mulf %139, %138 : vector<32x128xf32>
    %cst_61 = arith.constant 0.707106769 : f32
    %141 = vector.broadcast %cst_61 : f32 to vector<32x128xf32>
    %142 = arith.mulf %138, %141 : vector<32x128xf32>
    %143 = math.absf %142 : vector<32x128xf32>
    %cst_62 = arith.constant 0.327591091 : f32
    %144 = vector.broadcast %cst_62 : f32 to vector<32x128xf32>
    %145 = arith.mulf %144, %143 : vector<32x128xf32>
    %cst_63 = arith.constant 1.000000e+00 : f32
    %146 = vector.broadcast %cst_63 : f32 to vector<32x128xf32>
    %147 = arith.addf %146, %145 : vector<32x128xf32>
    %148 = tpu.reciprocal %147 {approx = true} : vector<32x128xf32> -> vector<32x128xf32>
    %cst_64 = arith.constant 1.06140542 : f32
    %149 = vector.broadcast %cst_64 : f32 to vector<32x128xf32>
    %150 = arith.mulf %149, %148 : vector<32x128xf32>
    %cst_65 = arith.constant -1.45315206 : f32
    %151 = vector.broadcast %cst_65 : f32 to vector<32x128xf32>
    %152 = arith.addf %150, %151 : vector<32x128xf32>
    %153 = arith.mulf %152, %148 : vector<32x128xf32>
    %cst_66 = arith.constant 1.42141378 : f32
    %154 = vector.broadcast %cst_66 : f32 to vector<32x128xf32>
    %155 = arith.addf %153, %154 : vector<32x128xf32>
    %156 = arith.mulf %155, %148 : vector<32x128xf32>
    %cst_67 = arith.constant -0.284496725 : f32
    %157 = vector.broadcast %cst_67 : f32 to vector<32x128xf32>
    %158 = arith.addf %156, %157 : vector<32x128xf32>
    %159 = arith.mulf %158, %148 : vector<32x128xf32>
    %cst_68 = arith.constant 0.254829586 : f32
    %160 = vector.broadcast %cst_68 : f32 to vector<32x128xf32>
    %161 = arith.addf %159, %160 : vector<32x128xf32>
    %162 = arith.mulf %161, %148 : vector<32x128xf32>
    %cst_69 = arith.constant 0.000000e+00 : f32
    %163 = vector.broadcast %cst_69 : f32 to vector<32x128xf32>
    %164 = arith.subf %163, %143 : vector<32x128xf32>
    %165 = arith.mulf %164, %143 : vector<32x128xf32>
    %166 = math.exp %165 : vector<32x128xf32>
    %167 = arith.mulf %162, %166 : vector<32x128xf32>
    %cst_70 = arith.constant 1.000000e+00 : f32
    %168 = vector.broadcast %cst_70 : f32 to vector<32x128xf32>
    %169 = arith.subf %168, %167 : vector<32x128xf32>
    %cst_71 = arith.constant 0.000000e+00 : f32
    %170 = vector.broadcast %cst_71 : f32 to vector<32x128xf32>
    %171 = arith.cmpf oge, %142, %170 : vector<32x128xf32>
    %cst_72 = arith.constant 0.000000e+00 : f32
    %172 = vector.broadcast %cst_72 : f32 to vector<32x128xf32>
    %173 = arith.subf %172, %169 : vector<32x128xf32>
    %174 = arith.select %171, %169, %173 : vector<32x128xi1>, vector<32x128xf32>
    %cst_73 = arith.constant 1.000000e+00 : f32
    %175 = vector.broadcast %cst_73 : f32 to vector<32x128xf32>
    %176 = arith.addf %175, %174 : vector<32x128xf32>
    %177 = arith.mulf %140, %176 : vector<32x128xf32>
    %178 = arith.truncf %177 : vector<32x128xf32> to vector<32x128xbf16>
    %c0_74 = arith.constant 0 : index
    %c0_75 = arith.constant 0 : index
    %c0_76 = arith.constant 0 : index
    %179 = vector.load %arg9[%c0_74, %c0_75, %c0_76] : memref<2x128x32xbf16, #tpu.memory_space<vmem>>, vector<1x128x32xbf16>
    %180 = vector.shape_cast %179 : vector<1x128x32xbf16> to vector<128x32xbf16>
    %cst_77 = arith.constant dense<0.000000e+00> : vector<32x32xf32>
    %181 = tpu.matmul %178, %180, %cst_77 {dimension_numbers = #tpu.dot_dimension_numbers<[1], [0], [0], [1], [0, 0, 1, 1], [], []>} : vector<32x128xbf16>, vector<128x32xbf16>, vector<32x32xf32> -> vector<32x32xf32>
    %182 = vector.extract_strided_slice %0 {offsets = [9, 0], sizes = [1, 32], strides = [1, 1]} : vector<24x128xf32> to vector<1x32xf32>
    %183 = vector.broadcast %182 : vector<1x32xf32> to vector<32x32xf32>
    %184 = arith.addf %181, %183 : vector<32x32xf32>
    %185 = arith.addf %107, %184 : vector<32x32xf32>
    %186 = vector.extract_strided_slice %0 {offsets = [10, 0], sizes = [1, 32], strides = [1, 1]} : vector<24x128xf32> to vector<1x32xf32>
    %187 = vector.extract_strided_slice %0 {offsets = [11, 0], sizes = [1, 32], strides = [1, 1]} : vector<24x128xf32> to vector<1x32xf32>
    %cst_78 = arith.constant dense<0.000000e+00> : vector<32xf32>
    %188 = vector.multi_reduction <add>, %185, %cst_78 [1] : vector<32x32xf32> to vector<32xf32>
    %189 = vector.shape_cast %188 : vector<32xf32> to vector<32x1xf32>
    %cst_79 = arith.constant 3.200000e+01 : f32
    %190 = vector.broadcast %cst_79 : f32 to vector<32x1xf32>
    %191 = arith.divf %189, %190 : vector<32x1xf32>
    %192 = vector.broadcast %191 : vector<32x1xf32> to vector<32x32xf32>
    %193 = arith.subf %185, %192 : vector<32x32xf32>
    %194 = arith.mulf %193, %193 : vector<32x32xf32>
    %cst_80 = arith.constant dense<0.000000e+00> : vector<32xf32>
    %195 = vector.multi_reduction <add>, %194, %cst_80 [1] : vector<32x32xf32> to vector<32xf32>
    %196 = vector.shape_cast %195 : vector<32xf32> to vector<32x1xf32>
    %cst_81 = arith.constant 3.200000e+01 : f32
    %197 = vector.broadcast %cst_81 : f32 to vector<32x1xf32>
    %198 = arith.divf %196, %197 : vector<32x1xf32>
    %199 = vector.broadcast %191 : vector<32x1xf32> to vector<32x32xf32>
    %200 = arith.subf %185, %199 : vector<32x32xf32>
    %cst_82 = arith.constant 9.99999974E-6 : f32
    %201 = vector.broadcast %cst_82 : f32 to vector<32x1xf32>
    %202 = arith.addf %198, %201 : vector<32x1xf32>
    %203 = math.rsqrt %202 : vector<32x1xf32>
    %204 = vector.broadcast %203 : vector<32x1xf32> to vector<32x32xf32>
    %205 = arith.mulf %200, %204 : vector<32x32xf32>
    %206 = vector.broadcast %186 : vector<1x32xf32> to vector<32x32xf32>
    %207 = arith.mulf %205, %206 : vector<32x32xf32>
    %208 = vector.broadcast %187 : vector<1x32xf32> to vector<32x32xf32>
    %209 = arith.addf %207, %208 : vector<32x32xf32>
    %210 = arith.truncf %209 : vector<32x32xf32> to vector<32x32xbf16>
    %c1_83 = arith.constant 1 : index
    %c0_84 = arith.constant 0 : index
    %c0_85 = arith.constant 0 : index
    %211 = vector.load %arg5[%c1_83, %c0_84, %c0_85] : memref<2x32x64xbf16, #tpu.memory_space<vmem>>, vector<1x32x64xbf16>
    %212 = vector.shape_cast %211 : vector<1x32x64xbf16> to vector<32x64xbf16>
    %cst_86 = arith.constant dense<0.000000e+00> : vector<32x64xf32>
    %213 = tpu.matmul %210, %212, %cst_86 {dimension_numbers = #tpu.dot_dimension_numbers<[1], [0], [0], [1], [0, 0, 1, 1], [], []>} : vector<32x32xbf16>, vector<32x64xbf16>, vector<32x64xf32> -> vector<32x64xf32>
    %214 = vector.extract_strided_slice %0 {offsets = [12, 0], sizes = [1, 64], strides = [1, 1]} : vector<24x128xf32> to vector<1x64xf32>
    %215 = vector.broadcast %214 : vector<1x64xf32> to vector<32x64xf32>
    %216 = arith.addf %213, %215 : vector<32x64xf32>
    %217 = arith.mulf %216, %216 : vector<32x64xf32>
    %218 = arith.truncf %217 : vector<32x64xf32> to vector<32x64xbf16>
    %cst_87 = arith.constant dense<0.000000e+00> : vector<32x64xf32>
    %219 = tpu.matmul %218, %2, %cst_87 {dimension_numbers = #tpu.dot_dimension_numbers<[1], [0], [0], [1], [0, 0, 1, 1], [], []>} : vector<32x64xbf16>, vector<64x64xbf16>, vector<32x64xf32> -> vector<32x64xf32>
    %cst_88 = arith.constant 1.000000e-24 : f32
    %220 = vector.broadcast %cst_88 : f32 to vector<32x64xf32>
    %221 = arith.maximumf %219, %220 : vector<32x64xf32>
    %222 = math.rsqrt %221 : vector<32x64xf32>
    %223 = arith.mulf %216, %222 : vector<32x64xf32>
    %224 = vector.extract_strided_slice %223 {offsets = [0, 0], sizes = [32, 32], strides = [1, 1]} : vector<32x64xf32> to vector<32x32xf32>
    %225 = vector.extract_strided_slice %223 {offsets = [0, 32], sizes = [32, 32], strides = [1, 1]} : vector<32x64xf32> to vector<32x32xf32>
    %c1_89 = arith.constant 1 : index
    %c0_90 = arith.constant 0 : index
    %c0_91 = arith.constant 0 : index
    %c0_92 = arith.constant 0 : index
    %226 = vector.load %arg6[%c1_89, %c0_90, %c0_91, %c0_92] : memref<2x2x16x80xbf16, #tpu.memory_space<vmem>>, vector<1x1x16x80xbf16>
    %227 = vector.shape_cast %226 : vector<1x1x16x80xbf16> to vector<16x80xbf16>
    %c1_93 = arith.constant 1 : index
    %c1_94 = arith.constant 1 : index
    %c0_95 = arith.constant 0 : index
    %c0_96 = arith.constant 0 : index
    %228 = vector.load %arg6[%c1_93, %c1_94, %c0_95, %c0_96] : memref<2x2x16x80xbf16, #tpu.memory_space<vmem>>, vector<1x1x16x80xbf16>
    %229 = vector.shape_cast %228 : vector<1x1x16x80xbf16> to vector<16x80xbf16>
    %230 = vector.extract_strided_slice %209 {offsets = [0, 0], sizes = [16, 32], strides = [1, 1]} : vector<32x32xf32> to vector<16x32xf32>
    %231 = tpu.transpose %230, [1, 0] : vector<16x32xf32> -> vector<32x16xf32>
    %232 = arith.truncf %231 : vector<32x16xf32> to vector<32x16xbf16>
    %cst_97 = arith.constant dense<0.000000e+00> : vector<32x80xf32>
    %233 = tpu.matmul %232, %227, %cst_97 {dimension_numbers = #tpu.dot_dimension_numbers<[1], [0], [0], [1], [0, 0, 1, 1], [], []>} : vector<32x16xbf16>, vector<16x80xbf16>, vector<32x80xf32> -> vector<32x80xf32>
    %cst_98 = arith.constant dense<0.000000e+00> : vector<32x80xf32>
    %234 = tpu.matmul %232, %229, %cst_98 {dimension_numbers = #tpu.dot_dimension_numbers<[1], [0], [0], [1], [0, 0, 1, 1], [], []>} : vector<32x16xbf16>, vector<16x80xbf16>, vector<32x80xf32> -> vector<32x80xf32>
    %235 = arith.mulf %233, %1 : vector<32x80xf32>
    %236 = arith.truncf %235 : vector<32x80xf32> to vector<32x80xbf16>
    %237 = arith.mulf %234, %1 : vector<32x80xf32>
    %238 = arith.truncf %237 : vector<32x80xf32> to vector<32x80xbf16>
    %239 = vector.extract_strided_slice %224 {offsets = [0, 0], sizes = [16, 32], strides = [1, 1]} : vector<32x32xf32> to vector<16x32xf32>
    %240 = arith.truncf %239 : vector<16x32xf32> to vector<16x32xbf16>
    %cst_99 = arith.constant dense<0.000000e+00> : vector<16x80xf32>
    %241 = tpu.matmul %240, %236, %cst_99 {dimension_numbers = #tpu.dot_dimension_numbers<[1], [0], [0], [1], [0, 0, 1, 1], [], []>} : vector<16x32xbf16>, vector<32x80xbf16>, vector<16x80xf32> -> vector<16x80xf32>
    %242 = vector.extract_strided_slice %225 {offsets = [0, 0], sizes = [16, 32], strides = [1, 1]} : vector<32x32xf32> to vector<16x32xf32>
    %243 = arith.truncf %242 : vector<16x32xf32> to vector<16x32xbf16>
    %cst_100 = arith.constant dense<0.000000e+00> : vector<16x80xf32>
    %244 = tpu.matmul %243, %238, %cst_100 {dimension_numbers = #tpu.dot_dimension_numbers<[1], [0], [0], [1], [0, 0, 1, 1], [], []>} : vector<16x32xbf16>, vector<32x80xbf16>, vector<16x80xf32> -> vector<16x80xf32>
    %245 = vector.extract_strided_slice %209 {offsets = [16, 0], sizes = [16, 32], strides = [1, 1]} : vector<32x32xf32> to vector<16x32xf32>
    %246 = tpu.transpose %245, [1, 0] : vector<16x32xf32> -> vector<32x16xf32>
    %247 = arith.truncf %246 : vector<32x16xf32> to vector<32x16xbf16>
    %cst_101 = arith.constant dense<0.000000e+00> : vector<32x80xf32>
    %248 = tpu.matmul %247, %227, %cst_101 {dimension_numbers = #tpu.dot_dimension_numbers<[1], [0], [0], [1], [0, 0, 1, 1], [], []>} : vector<32x16xbf16>, vector<16x80xbf16>, vector<32x80xf32> -> vector<32x80xf32>
    %cst_102 = arith.constant dense<0.000000e+00> : vector<32x80xf32>
    %249 = tpu.matmul %247, %229, %cst_102 {dimension_numbers = #tpu.dot_dimension_numbers<[1], [0], [0], [1], [0, 0, 1, 1], [], []>} : vector<32x16xbf16>, vector<16x80xbf16>, vector<32x80xf32> -> vector<32x80xf32>
    %250 = arith.mulf %248, %1 : vector<32x80xf32>
    %251 = arith.truncf %250 : vector<32x80xf32> to vector<32x80xbf16>
    %252 = arith.mulf %249, %1 : vector<32x80xf32>
    %253 = arith.truncf %252 : vector<32x80xf32> to vector<32x80xbf16>
    %254 = vector.extract_strided_slice %224 {offsets = [16, 0], sizes = [16, 32], strides = [1, 1]} : vector<32x32xf32> to vector<16x32xf32>
    %255 = arith.truncf %254 : vector<16x32xf32> to vector<16x32xbf16>
    %cst_103 = arith.constant dense<0.000000e+00> : vector<16x80xf32>
    %256 = tpu.matmul %255, %251, %cst_103 {dimension_numbers = #tpu.dot_dimension_numbers<[1], [0], [0], [1], [0, 0, 1, 1], [], []>} : vector<16x32xbf16>, vector<32x80xbf16>, vector<16x80xf32> -> vector<16x80xf32>
    %257 = vector.extract_strided_slice %225 {offsets = [16, 0], sizes = [16, 32], strides = [1, 1]} : vector<32x32xf32> to vector<16x32xf32>
    %258 = arith.truncf %257 : vector<16x32xf32> to vector<16x32xbf16>
    %cst_104 = arith.constant dense<0.000000e+00> : vector<16x80xf32>
    %259 = tpu.matmul %258, %253, %cst_104 {dimension_numbers = #tpu.dot_dimension_numbers<[1], [0], [0], [1], [0, 0, 1, 1], [], []>} : vector<16x32xbf16>, vector<32x80xbf16>, vector<16x80xf32> -> vector<16x80xf32>
    %260 = tpu.concatenate %241, %256 in 0 : vector<16x80xf32>, vector<16x80xf32> -> vector<32x80xf32>
    %261 = tpu.concatenate %244, %259 in 0 : vector<16x80xf32>, vector<16x80xf32> -> vector<32x80xf32>
    %262 = arith.truncf %260 : vector<32x80xf32> to vector<32x80xbf16>
    %c1_105 = arith.constant 1 : index
    %c0_106 = arith.constant 0 : index
    %c0_107 = arith.constant 0 : index
    %c0_108 = arith.constant 0 : index
    %263 = vector.load %arg7[%c1_105, %c0_106, %c0_107, %c0_108] : memref<2x2x80x32xbf16, #tpu.memory_space<vmem>>, vector<1x1x80x32xbf16>
    %264 = vector.shape_cast %263 : vector<1x1x80x32xbf16> to vector<80x32xbf16>
    %cst_109 = arith.constant dense<0.000000e+00> : vector<32x32xf32>
    %265 = tpu.matmul %262, %264, %cst_109 {dimension_numbers = #tpu.dot_dimension_numbers<[1], [0], [0], [1], [0, 0, 1, 1], [], []>} : vector<32x80xbf16>, vector<80x32xbf16>, vector<32x32xf32> -> vector<32x32xf32>
    %266 = arith.truncf %261 : vector<32x80xf32> to vector<32x80xbf16>
    %c1_110 = arith.constant 1 : index
    %c1_111 = arith.constant 1 : index
    %c0_112 = arith.constant 0 : index
    %c0_113 = arith.constant 0 : index
    %267 = vector.load %arg7[%c1_110, %c1_111, %c0_112, %c0_113] : memref<2x2x80x32xbf16, #tpu.memory_space<vmem>>, vector<1x1x80x32xbf16>
    %268 = vector.shape_cast %267 : vector<1x1x80x32xbf16> to vector<80x32xbf16>
    %cst_114 = arith.constant dense<0.000000e+00> : vector<32x32xf32>
    %269 = tpu.matmul %266, %268, %cst_114 {dimension_numbers = #tpu.dot_dimension_numbers<[1], [0], [0], [1], [0, 0, 1, 1], [], []>} : vector<32x80xbf16>, vector<80x32xbf16>, vector<32x32xf32> -> vector<32x32xf32>
    %270 = arith.addf %265, %269 : vector<32x32xf32>
    %271 = vector.extract_strided_slice %0 {offsets = [13, 0], sizes = [1, 32], strides = [1, 1]} : vector<24x128xf32> to vector<1x32xf32>
    %272 = vector.broadcast %271 : vector<1x32xf32> to vector<32x32xf32>
    %273 = arith.addf %270, %272 : vector<32x32xf32>
    %274 = arith.truncf %273 : vector<32x32xf32> to vector<32x32xbf16>
    %c1_115 = arith.constant 1 : index
    %c0_116 = arith.constant 0 : index
    %c0_117 = arith.constant 0 : index
    %275 = vector.load %arg4[%c1_115, %c0_116, %c0_117] : memref<5x32x32xbf16, #tpu.memory_space<vmem>>, vector<1x32x32xbf16>
    %276 = vector.shape_cast %275 : vector<1x32x32xbf16> to vector<32x32xbf16>
    %cst_118 = arith.constant dense<0.000000e+00> : vector<32x32xf32>
    %277 = tpu.matmul %274, %276, %cst_118 {dimension_numbers = #tpu.dot_dimension_numbers<[1], [0], [0], [1], [0, 0, 1, 1], [], []>} : vector<32x32xbf16>, vector<32x32xbf16>, vector<32x32xf32> -> vector<32x32xf32>
    %278 = vector.extract_strided_slice %0 {offsets = [14, 0], sizes = [1, 32], strides = [1, 1]} : vector<24x128xf32> to vector<1x32xf32>
    %279 = vector.broadcast %278 : vector<1x32xf32> to vector<32x32xf32>
    %280 = arith.addf %277, %279 : vector<32x32xf32>
    %281 = arith.addf %185, %280 : vector<32x32xf32>
    %282 = vector.extract_strided_slice %0 {offsets = [15, 0], sizes = [1, 32], strides = [1, 1]} : vector<24x128xf32> to vector<1x32xf32>
    %283 = vector.extract_strided_slice %0 {offsets = [16, 0], sizes = [1, 32], strides = [1, 1]} : vector<24x128xf32> to vector<1x32xf32>
    %cst_119 = arith.constant dense<0.000000e+00> : vector<32xf32>
    %284 = vector.multi_reduction <add>, %281, %cst_119 [1] : vector<32x32xf32> to vector<32xf32>
    %285 = vector.shape_cast %284 : vector<32xf32> to vector<32x1xf32>
    %cst_120 = arith.constant 3.200000e+01 : f32
    %286 = vector.broadcast %cst_120 : f32 to vector<32x1xf32>
    %287 = arith.divf %285, %286 : vector<32x1xf32>
    %288 = vector.broadcast %287 : vector<32x1xf32> to vector<32x32xf32>
    %289 = arith.subf %281, %288 : vector<32x32xf32>
    %290 = arith.mulf %289, %289 : vector<32x32xf32>
    %cst_121 = arith.constant dense<0.000000e+00> : vector<32xf32>
    %291 = vector.multi_reduction <add>, %290, %cst_121 [1] : vector<32x32xf32> to vector<32xf32>
    %292 = vector.shape_cast %291 : vector<32xf32> to vector<32x1xf32>
    %cst_122 = arith.constant 3.200000e+01 : f32
    %293 = vector.broadcast %cst_122 : f32 to vector<32x1xf32>
    %294 = arith.divf %292, %293 : vector<32x1xf32>
    %295 = vector.broadcast %287 : vector<32x1xf32> to vector<32x32xf32>
    %296 = arith.subf %281, %295 : vector<32x32xf32>
    %cst_123 = arith.constant 9.99999974E-6 : f32
    %297 = vector.broadcast %cst_123 : f32 to vector<32x1xf32>
    %298 = arith.addf %294, %297 : vector<32x1xf32>
    %299 = math.rsqrt %298 : vector<32x1xf32>
    %300 = vector.broadcast %299 : vector<32x1xf32> to vector<32x32xf32>
    %301 = arith.mulf %296, %300 : vector<32x32xf32>
    %302 = vector.broadcast %282 : vector<1x32xf32> to vector<32x32xf32>
    %303 = arith.mulf %301, %302 : vector<32x32xf32>
    %304 = vector.broadcast %283 : vector<1x32xf32> to vector<32x32xf32>
    %305 = arith.addf %303, %304 : vector<32x32xf32>
    %306 = arith.truncf %305 : vector<32x32xf32> to vector<32x32xbf16>
    %c1_124 = arith.constant 1 : index
    %c0_125 = arith.constant 0 : index
    %c0_126 = arith.constant 0 : index
    %307 = vector.load %arg8[%c1_124, %c0_125, %c0_126] : memref<2x32x128xbf16, #tpu.memory_space<vmem>>, vector<1x32x128xbf16>
    %308 = vector.shape_cast %307 : vector<1x32x128xbf16> to vector<32x128xbf16>
    %cst_127 = arith.constant dense<0.000000e+00> : vector<32x128xf32>
    %309 = tpu.matmul %306, %308, %cst_127 {dimension_numbers = #tpu.dot_dimension_numbers<[1], [0], [0], [1], [0, 0, 1, 1], [], []>} : vector<32x32xbf16>, vector<32x128xbf16>, vector<32x128xf32> -> vector<32x128xf32>
    %310 = vector.extract_strided_slice %0 {offsets = [17, 0], sizes = [1, 128], strides = [1, 1]} : vector<24x128xf32> to vector<1x128xf32>
    %311 = vector.broadcast %310 : vector<1x128xf32> to vector<32x128xf32>
    %312 = arith.addf %309, %311 : vector<32x128xf32>
    %cst_128 = arith.constant 5.000000e-01 : f32
    %313 = vector.broadcast %cst_128 : f32 to vector<32x128xf32>
    %314 = arith.mulf %313, %312 : vector<32x128xf32>
    %cst_129 = arith.constant 0.707106769 : f32
    %315 = vector.broadcast %cst_129 : f32 to vector<32x128xf32>
    %316 = arith.mulf %312, %315 : vector<32x128xf32>
    %317 = math.absf %316 : vector<32x128xf32>
    %cst_130 = arith.constant 0.327591091 : f32
    %318 = vector.broadcast %cst_130 : f32 to vector<32x128xf32>
    %319 = arith.mulf %318, %317 : vector<32x128xf32>
    %cst_131 = arith.constant 1.000000e+00 : f32
    %320 = vector.broadcast %cst_131 : f32 to vector<32x128xf32>
    %321 = arith.addf %320, %319 : vector<32x128xf32>
    %322 = tpu.reciprocal %321 {approx = true} : vector<32x128xf32> -> vector<32x128xf32>
    %cst_132 = arith.constant 1.06140542 : f32
    %323 = vector.broadcast %cst_132 : f32 to vector<32x128xf32>
    %324 = arith.mulf %323, %322 : vector<32x128xf32>
    %cst_133 = arith.constant -1.45315206 : f32
    %325 = vector.broadcast %cst_133 : f32 to vector<32x128xf32>
    %326 = arith.addf %324, %325 : vector<32x128xf32>
    %327 = arith.mulf %326, %322 : vector<32x128xf32>
    %cst_134 = arith.constant 1.42141378 : f32
    %328 = vector.broadcast %cst_134 : f32 to vector<32x128xf32>
    %329 = arith.addf %327, %328 : vector<32x128xf32>
    %330 = arith.mulf %329, %322 : vector<32x128xf32>
    %cst_135 = arith.constant -0.284496725 : f32
    %331 = vector.broadcast %cst_135 : f32 to vector<32x128xf32>
    %332 = arith.addf %330, %331 : vector<32x128xf32>
    %333 = arith.mulf %332, %322 : vector<32x128xf32>
    %cst_136 = arith.constant 0.254829586 : f32
    %334 = vector.broadcast %cst_136 : f32 to vector<32x128xf32>
    %335 = arith.addf %333, %334 : vector<32x128xf32>
    %336 = arith.mulf %335, %322 : vector<32x128xf32>
    %cst_137 = arith.constant 0.000000e+00 : f32
    %337 = vector.broadcast %cst_137 : f32 to vector<32x128xf32>
    %338 = arith.subf %337, %317 : vector<32x128xf32>
    %339 = arith.mulf %338, %317 : vector<32x128xf32>
    %340 = math.exp %339 : vector<32x128xf32>
    %341 = arith.mulf %336, %340 : vector<32x128xf32>
    %cst_138 = arith.constant 1.000000e+00 : f32
    %342 = vector.broadcast %cst_138 : f32 to vector<32x128xf32>
    %343 = arith.subf %342, %341 : vector<32x128xf32>
    %cst_139 = arith.constant 0.000000e+00 : f32
    %344 = vector.broadcast %cst_139 : f32 to vector<32x128xf32>
    %345 = arith.cmpf oge, %316, %344 : vector<32x128xf32>
    %cst_140 = arith.constant 0.000000e+00 : f32
    %346 = vector.broadcast %cst_140 : f32 to vector<32x128xf32>
    %347 = arith.subf %346, %343 : vector<32x128xf32>
    %348 = arith.select %345, %343, %347 : vector<32x128xi1>, vector<32x128xf32>
    %cst_141 = arith.constant 1.000000e+00 : f32
    %349 = vector.broadcast %cst_141 : f32 to vector<32x128xf32>
    %350 = arith.addf %349, %348 : vector<32x128xf32>
    %351 = arith.mulf %314, %350 : vector<32x128xf32>
    %352 = arith.truncf %351 : vector<32x128xf32> to vector<32x128xbf16>
    %c1_142 = arith.constant 1 : index
    %c0_143 = arith.constant 0 : index
    %c0_144 = arith.constant 0 : index
    %353 = vector.load %arg9[%c1_142, %c0_143, %c0_144] : memref<2x128x32xbf16, #tpu.memory_space<vmem>>, vector<1x128x32xbf16>
    %354 = vector.shape_cast %353 : vector<1x128x32xbf16> to vector<128x32xbf16>
    %cst_145 = arith.constant dense<0.000000e+00> : vector<32x32xf32>
    %355 = tpu.matmul %352, %354, %cst_145 {dimension_numbers = #tpu.dot_dimension_numbers<[1], [0], [0], [1], [0, 0, 1, 1], [], []>} : vector<32x128xbf16>, vector<128x32xbf16>, vector<32x32xf32> -> vector<32x32xf32>
    %356 = vector.extract_strided_slice %0 {offsets = [18, 0], sizes = [1, 32], strides = [1, 1]} : vector<24x128xf32> to vector<1x32xf32>
    %357 = vector.broadcast %356 : vector<1x32xf32> to vector<32x32xf32>
    %358 = arith.addf %355, %357 : vector<32x32xf32>
    %359 = arith.addf %281, %358 : vector<32x32xf32>
    %360 = vector.extract_strided_slice %0 {offsets = [19, 0], sizes = [1, 32], strides = [1, 1]} : vector<24x128xf32> to vector<1x32xf32>
    %361 = vector.extract_strided_slice %0 {offsets = [20, 0], sizes = [1, 32], strides = [1, 1]} : vector<24x128xf32> to vector<1x32xf32>
    %cst_146 = arith.constant dense<0.000000e+00> : vector<32xf32>
    %362 = vector.multi_reduction <add>, %359, %cst_146 [1] : vector<32x32xf32> to vector<32xf32>
    %363 = vector.shape_cast %362 : vector<32xf32> to vector<32x1xf32>
    %cst_147 = arith.constant 3.200000e+01 : f32
    %364 = vector.broadcast %cst_147 : f32 to vector<32x1xf32>
    %365 = arith.divf %363, %364 : vector<32x1xf32>
    %366 = vector.broadcast %365 : vector<32x1xf32> to vector<32x32xf32>
    %367 = arith.subf %359, %366 : vector<32x32xf32>
    %368 = arith.mulf %367, %367 : vector<32x32xf32>
    %cst_148 = arith.constant dense<0.000000e+00> : vector<32xf32>
    %369 = vector.multi_reduction <add>, %368, %cst_148 [1] : vector<32x32xf32> to vector<32xf32>
    %370 = vector.shape_cast %369 : vector<32xf32> to vector<32x1xf32>
    %cst_149 = arith.constant 3.200000e+01 : f32
    %371 = vector.broadcast %cst_149 : f32 to vector<32x1xf32>
    %372 = arith.divf %370, %371 : vector<32x1xf32>
    %373 = vector.broadcast %365 : vector<32x1xf32> to vector<32x32xf32>
    %374 = arith.subf %359, %373 : vector<32x32xf32>
    %cst_150 = arith.constant 9.99999974E-6 : f32
    %375 = vector.broadcast %cst_150 : f32 to vector<32x1xf32>
    %376 = arith.addf %372, %375 : vector<32x1xf32>
    %377 = math.rsqrt %376 : vector<32x1xf32>
    %378 = vector.broadcast %377 : vector<32x1xf32> to vector<32x32xf32>
    %379 = arith.mulf %374, %378 : vector<32x32xf32>
    %380 = vector.broadcast %360 : vector<1x32xf32> to vector<32x32xf32>
    %381 = arith.mulf %379, %380 : vector<32x32xf32>
    %382 = vector.broadcast %361 : vector<1x32xf32> to vector<32x32xf32>
    %383 = arith.addf %381, %382 : vector<32x32xf32>
    %384 = arith.truncf %383 : vector<32x32xf32> to vector<32x32xbf16>
    %c2 = arith.constant 2 : index
    %c0_151 = arith.constant 0 : index
    %c0_152 = arith.constant 0 : index
    %385 = vector.load %arg4[%c2, %c0_151, %c0_152] : memref<5x32x32xbf16, #tpu.memory_space<vmem>>, vector<1x32x32xbf16>
    %386 = vector.shape_cast %385 : vector<1x32x32xbf16> to vector<32x32xbf16>
    %cst_153 = arith.constant dense<0.000000e+00> : vector<32x32xf32>
    %387 = tpu.matmul %384, %386, %cst_153 {dimension_numbers = #tpu.dot_dimension_numbers<[1], [0], [0], [1], [0, 0, 1, 1], [], []>} : vector<32x32xbf16>, vector<32x32xbf16>, vector<32x32xf32> -> vector<32x32xf32>
    %388 = vector.extract_strided_slice %0 {offsets = [21, 0], sizes = [1, 32], strides = [1, 1]} : vector<24x128xf32> to vector<1x32xf32>
    %389 = vector.broadcast %388 : vector<1x32xf32> to vector<32x32xf32>
    %390 = arith.addf %387, %389 : vector<32x32xf32>
    %cst_154 = arith.constant 5.000000e-01 : f32
    %391 = vector.broadcast %cst_154 : f32 to vector<32x32xf32>
    %392 = arith.mulf %391, %390 : vector<32x32xf32>
    %cst_155 = arith.constant 0.707106769 : f32
    %393 = vector.broadcast %cst_155 : f32 to vector<32x32xf32>
    %394 = arith.mulf %390, %393 : vector<32x32xf32>
    %395 = math.absf %394 : vector<32x32xf32>
    %cst_156 = arith.constant 0.327591091 : f32
    %396 = vector.broadcast %cst_156 : f32 to vector<32x32xf32>
    %397 = arith.mulf %396, %395 : vector<32x32xf32>
    %cst_157 = arith.constant 1.000000e+00 : f32
    %398 = vector.broadcast %cst_157 : f32 to vector<32x32xf32>
    %399 = arith.addf %398, %397 : vector<32x32xf32>
    %400 = tpu.reciprocal %399 {approx = true} : vector<32x32xf32> -> vector<32x32xf32>
    %cst_158 = arith.constant 1.06140542 : f32
    %401 = vector.broadcast %cst_158 : f32 to vector<32x32xf32>
    %402 = arith.mulf %401, %400 : vector<32x32xf32>
    %cst_159 = arith.constant -1.45315206 : f32
    %403 = vector.broadcast %cst_159 : f32 to vector<32x32xf32>
    %404 = arith.addf %402, %403 : vector<32x32xf32>
    %405 = arith.mulf %404, %400 : vector<32x32xf32>
    %cst_160 = arith.constant 1.42141378 : f32
    %406 = vector.broadcast %cst_160 : f32 to vector<32x32xf32>
    %407 = arith.addf %405, %406 : vector<32x32xf32>
    %408 = arith.mulf %407, %400 : vector<32x32xf32>
    %cst_161 = arith.constant -0.284496725 : f32
    %409 = vector.broadcast %cst_161 : f32 to vector<32x32xf32>
    %410 = arith.addf %408, %409 : vector<32x32xf32>
    %411 = arith.mulf %410, %400 : vector<32x32xf32>
    %cst_162 = arith.constant 0.254829586 : f32
    %412 = vector.broadcast %cst_162 : f32 to vector<32x32xf32>
    %413 = arith.addf %411, %412 : vector<32x32xf32>
    %414 = arith.mulf %413, %400 : vector<32x32xf32>
    %cst_163 = arith.constant 0.000000e+00 : f32
    %415 = vector.broadcast %cst_163 : f32 to vector<32x32xf32>
    %416 = arith.subf %415, %395 : vector<32x32xf32>
    %417 = arith.mulf %416, %395 : vector<32x32xf32>
    %418 = math.exp %417 : vector<32x32xf32>
    %419 = arith.mulf %414, %418 : vector<32x32xf32>
    %cst_164 = arith.constant 1.000000e+00 : f32
    %420 = vector.broadcast %cst_164 : f32 to vector<32x32xf32>
    %421 = arith.subf %420, %419 : vector<32x32xf32>
    %cst_165 = arith.constant 0.000000e+00 : f32
    %422 = vector.broadcast %cst_165 : f32 to vector<32x32xf32>
    %423 = arith.cmpf oge, %394, %422 : vector<32x32xf32>
    %cst_166 = arith.constant 0.000000e+00 : f32
    %424 = vector.broadcast %cst_166 : f32 to vector<32x32xf32>
    %425 = arith.subf %424, %421 : vector<32x32xf32>
    %426 = arith.select %423, %421, %425 : vector<32x32xi1>, vector<32x32xf32>
    %cst_167 = arith.constant 1.000000e+00 : f32
    %427 = vector.broadcast %cst_167 : f32 to vector<32x32xf32>
    %428 = arith.addf %427, %426 : vector<32x32xf32>
    %429 = arith.mulf %392, %428 : vector<32x32xf32>
    %430 = arith.truncf %429 : vector<32x32xf32> to vector<32x32xbf16>
    %c3 = arith.constant 3 : index
    %c0_168 = arith.constant 0 : index
    %c0_169 = arith.constant 0 : index
    %431 = vector.load %arg4[%c3, %c0_168, %c0_169] : memref<5x32x32xbf16, #tpu.memory_space<vmem>>, vector<1x32x32xbf16>
    %432 = vector.shape_cast %431 : vector<1x32x32xbf16> to vector<32x32xbf16>
    %cst_170 = arith.constant dense<0.000000e+00> : vector<32x32xf32>
    %433 = tpu.matmul %430, %432, %cst_170 {dimension_numbers = #tpu.dot_dimension_numbers<[1], [0], [0], [1], [0, 0, 1, 1], [], []>} : vector<32x32xbf16>, vector<32x32xbf16>, vector<32x32xf32> -> vector<32x32xf32>
    %434 = vector.extract_strided_slice %0 {offsets = [22, 0], sizes = [1, 32], strides = [1, 1]} : vector<24x128xf32> to vector<1x32xf32>
    %435 = vector.broadcast %434 : vector<1x32xf32> to vector<32x32xf32>
    %436 = arith.addf %433, %435 : vector<32x32xf32>
    %cst_171 = arith.constant 5.000000e-01 : f32
    %437 = vector.broadcast %cst_171 : f32 to vector<32x32xf32>
    %438 = arith.mulf %437, %436 : vector<32x32xf32>
    %cst_172 = arith.constant 0.707106769 : f32
    %439 = vector.broadcast %cst_172 : f32 to vector<32x32xf32>
    %440 = arith.mulf %436, %439 : vector<32x32xf32>
    %441 = math.absf %440 : vector<32x32xf32>
    %cst_173 = arith.constant 0.327591091 : f32
    %442 = vector.broadcast %cst_173 : f32 to vector<32x32xf32>
    %443 = arith.mulf %442, %441 : vector<32x32xf32>
    %cst_174 = arith.constant 1.000000e+00 : f32
    %444 = vector.broadcast %cst_174 : f32 to vector<32x32xf32>
    %445 = arith.addf %444, %443 : vector<32x32xf32>
    %446 = tpu.reciprocal %445 {approx = true} : vector<32x32xf32> -> vector<32x32xf32>
    %cst_175 = arith.constant 1.06140542 : f32
    %447 = vector.broadcast %cst_175 : f32 to vector<32x32xf32>
    %448 = arith.mulf %447, %446 : vector<32x32xf32>
    %cst_176 = arith.constant -1.45315206 : f32
    %449 = vector.broadcast %cst_176 : f32 to vector<32x32xf32>
    %450 = arith.addf %448, %449 : vector<32x32xf32>
    %451 = arith.mulf %450, %446 : vector<32x32xf32>
    %cst_177 = arith.constant 1.42141378 : f32
    %452 = vector.broadcast %cst_177 : f32 to vector<32x32xf32>
    %453 = arith.addf %451, %452 : vector<32x32xf32>
    %454 = arith.mulf %453, %446 : vector<32x32xf32>
    %cst_178 = arith.constant -0.284496725 : f32
    %455 = vector.broadcast %cst_178 : f32 to vector<32x32xf32>
    %456 = arith.addf %454, %455 : vector<32x32xf32>
    %457 = arith.mulf %456, %446 : vector<32x32xf32>
    %cst_179 = arith.constant 0.254829586 : f32
    %458 = vector.broadcast %cst_179 : f32 to vector<32x32xf32>
    %459 = arith.addf %457, %458 : vector<32x32xf32>
    %460 = arith.mulf %459, %446 : vector<32x32xf32>
    %cst_180 = arith.constant 0.000000e+00 : f32
    %461 = vector.broadcast %cst_180 : f32 to vector<32x32xf32>
    %462 = arith.subf %461, %441 : vector<32x32xf32>
    %463 = arith.mulf %462, %441 : vector<32x32xf32>
    %464 = math.exp %463 : vector<32x32xf32>
    %465 = arith.mulf %460, %464 : vector<32x32xf32>
    %cst_181 = arith.constant 1.000000e+00 : f32
    %466 = vector.broadcast %cst_181 : f32 to vector<32x32xf32>
    %467 = arith.subf %466, %465 : vector<32x32xf32>
    %cst_182 = arith.constant 0.000000e+00 : f32
    %468 = vector.broadcast %cst_182 : f32 to vector<32x32xf32>
    %469 = arith.cmpf oge, %440, %468 : vector<32x32xf32>
    %cst_183 = arith.constant 0.000000e+00 : f32
    %470 = vector.broadcast %cst_183 : f32 to vector<32x32xf32>
    %471 = arith.subf %470, %467 : vector<32x32xf32>
    %472 = arith.select %469, %467, %471 : vector<32x32xi1>, vector<32x32xf32>
    %cst_184 = arith.constant 1.000000e+00 : f32
    %473 = vector.broadcast %cst_184 : f32 to vector<32x32xf32>
    %474 = arith.addf %473, %472 : vector<32x32xf32>
    %475 = arith.mulf %438, %474 : vector<32x32xf32>
    %476 = arith.truncf %475 : vector<32x32xf32> to vector<32x32xbf16>
    %c4 = arith.constant 4 : index
    %c0_185 = arith.constant 0 : index
    %c0_186 = arith.constant 0 : index
    %477 = vector.load %arg4[%c4, %c0_185, %c0_186] : memref<5x32x32xbf16, #tpu.memory_space<vmem>>, vector<1x32x32xbf16>
    %478 = vector.shape_cast %477 : vector<1x32x32xbf16> to vector<32x32xbf16>
    %cst_187 = arith.constant dense<0.000000e+00> : vector<32x32xf32>
    %479 = tpu.matmul %476, %478, %cst_187 {dimension_numbers = #tpu.dot_dimension_numbers<[1], [0], [0], [1], [0, 0, 1, 1], [], []>} : vector<32x32xbf16>, vector<32x32xbf16>, vector<32x32xf32> -> vector<32x32xf32>
    %480 = vector.extract_strided_slice %0 {offsets = [23, 0], sizes = [1, 32], strides = [1, 1]} : vector<24x128xf32> to vector<1x32xf32>
    %481 = vector.broadcast %480 : vector<1x32xf32> to vector<32x32xf32>
    %482 = arith.addf %479, %481 : vector<32x32xf32>
    %c0_188 = arith.constant 0 : index
    %c0_189 = arith.constant 0 : index
    %483 = vector.load %arg13[%c0_188, %c0_189] : memref<32x32xf32, #tpu.memory_space<vmem>>, vector<32x32xf32>
    tpu.vector_store %arg13[%c0_188, %c0_189], %482 {strides = array<i32>} : memref<32x32xf32, #tpu.memory_space<vmem>>, vector<32x32xf32>,
    return
  }
  func.func @transform_0(%arg0: i32) -> (i32, i32) {
    %c0_i32 = arith.constant 0 : i32
    %c0_i32_0 = arith.constant 0 : i32
    return %arg0, %c0_i32 : i32, i32
  }
  func.func @transform_1(%arg0: i32) -> (i32, i32) {
    %c0_i32 = arith.constant 0 : i32
    %c0_i32_0 = arith.constant 0 : i32
    %c0_i32_1 = arith.constant 0 : i32
    return %c0_i32, %c0_i32_0 : i32, i32
  }
  func.func @transform_2(%arg0: i32) -> (i32, i32) {
    %c0_i32 = arith.constant 0 : i32
    %c0_i32_0 = arith.constant 0 : i32
    %c0_i32_1 = arith.constant 0 : i32
    return %c0_i32, %c0_i32_0 : i32, i32
  }
  func.func @transform_3(%arg0: i32) -> (i32, i32, i32) {
    %c0_i32 = arith.constant 0 : i32
    %c0_i32_0 = arith.constant 0 : i32
    %c0_i32_1 = arith.constant 0 : i32
    %c0_i32_2 = arith.constant 0 : i32
    return %c0_i32, %c0_i32_0, %c0_i32_1 : i32, i32, i32
  }
  func.func @transform_4(%arg0: i32) -> (i32, i32, i32) {
    %c0_i32 = arith.constant 0 : i32
    %c0_i32_0 = arith.constant 0 : i32
    %c0_i32_1 = arith.constant 0 : i32
    %c0_i32_2 = arith.constant 0 : i32
    return %c0_i32, %c0_i32_0, %c0_i32_1 : i32, i32, i32
  }
  func.func @transform_5(%arg0: i32) -> (i32, i32, i32, i32) {
    %c0_i32 = arith.constant 0 : i32
    %c0_i32_0 = arith.constant 0 : i32
    %c0_i32_1 = arith.constant 0 : i32
    %c0_i32_2 = arith.constant 0 : i32
    %c0_i32_3 = arith.constant 0 : i32
    return %c0_i32, %c0_i32_0, %c0_i32_1, %c0_i32_2 : i32, i32, i32, i32
  }
  func.func @transform_6(%arg0: i32) -> (i32, i32, i32, i32) {
    %c0_i32 = arith.constant 0 : i32
    %c0_i32_0 = arith.constant 0 : i32
    %c0_i32_1 = arith.constant 0 : i32
    %c0_i32_2 = arith.constant 0 : i32
    %c0_i32_3 = arith.constant 0 : i32
    return %c0_i32, %c0_i32_0, %c0_i32_1, %c0_i32_2 : i32, i32, i32, i32
  }
  func.func @transform_7(%arg0: i32) -> (i32, i32, i32) {
    %c0_i32 = arith.constant 0 : i32
    %c0_i32_0 = arith.constant 0 : i32
    %c0_i32_1 = arith.constant 0 : i32
    %c0_i32_2 = arith.constant 0 : i32
    return %c0_i32, %c0_i32_0, %c0_i32_1 : i32, i32, i32
  }
  func.func @transform_8(%arg0: i32) -> (i32, i32, i32) {
    %c0_i32 = arith.constant 0 : i32
    %c0_i32_0 = arith.constant 0 : i32
    %c0_i32_1 = arith.constant 0 : i32
    %c0_i32_2 = arith.constant 0 : i32
    return %c0_i32, %c0_i32_0, %c0_i32_1 : i32, i32, i32
  }
  func.func @transform_9(%arg0: i32) -> (i32, i32) {
    %c0_i32 = arith.constant 0 : i32
    %c0_i32_0 = arith.constant 0 : i32
    %c0_i32_1 = arith.constant 0 : i32
    return %c0_i32, %c0_i32_0 : i32, i32
  }
  func.func @transform_10(%arg0: i32) -> (i32, i32) {
    %c0_i32 = arith.constant 0 : i32
    %c0_i32_0 = arith.constant 0 : i32
    %c0_i32_1 = arith.constant 0 : i32
    return %c0_i32, %c0_i32_0 : i32, i32
  }
  func.func @transform_11(%arg0: i32) -> (i32, i32) {
    %c0_i32 = arith.constant 0 : i32
    %c0_i32_0 = arith.constant 0 : i32
    %c0_i32_1 = arith.constant 0 : i32
    return %c0_i32, %c0_i32_0 : i32, i32
  }
  func.func @transform_12(%arg0: i32) -> (i32, i32) {
    %c0_i32 = arith.constant 0 : i32
    %c0_i32_0 = arith.constant 0 : i32
    return %arg0, %c0_i32 : i32, i32
  }
}

</mosaic_0001>

<llo_original>
// kernel: forward.1
$region0: #{forward.1}
  #allocation0 [shape = 'u32[]', space=smem, size = 0x4, offset = 0x4, fixed_abs, tag = 'smem constant byte address 0x4 - core index']
  #allocation1 [shape = 'u32[144,128]{1,0:T(1,128)}', space=vmem, size = 0x12000, scoped, tag = 'internal scratch']
  %s0 = inlined_call_operand.vmem [shape: f32[32,64], index: 0, kind: input, shape index: {}]
  %s1 = inlined_call_operand.vmem [shape: f32[32,32], index: 1, kind: input, shape index: {}]
  %s2 = inlined_call_operand.vmem [shape: bf16[64,32], index: 2, kind: input, shape index: {}]
  %s3 = inlined_call_operand.vmem [shape: bf16[5,32,32], index: 3, kind: input, shape index: {}]
  %s4 = inlined_call_operand.vmem [shape: bf16[2,32,64], index: 4, kind: input, shape index: {}]
  %s5 = inlined_call_operand.vmem [shape: bf16[2,2,16,80], index: 5, kind: input, shape index: {}]
  %s6 = inlined_call_operand.vmem [shape: bf16[2,2,80,32], index: 6, kind: input, shape index: {}]
  %s7 = inlined_call_operand.vmem [shape: bf16[2,32,128], index: 7, kind: input, shape index: {}]
  %s8 = inlined_call_operand.vmem [shape: bf16[2,128,32], index: 8, kind: input, shape index: {}]
  %s9 = inlined_call_operand.vmem [shape: f32[32,80], index: 9, kind: input, shape index: {}]
  %s10 = inlined_call_operand.vmem [shape: bf16[64,64], index: 10, kind: input, shape index: {}]
  %s11 = inlined_call_operand.vmem [shape: f32[24,128], index: 11, kind: input, shape index: {}]
  %s12 = inlined_call_operand.vmem [shape: f32[32,32], index: 12, kind: output, shape index: {}]
  %s13 = sld [smem:[#allocation0]]
  $region58: #{forward.1} parent=0
    _
  %s15 = ssub.s32 1, %s13
  %s16 = scalar_select 0, %s15, %s13
  // Predicated region
  $region2: #{forward.1} parent=0 // pred_check
    _
  $region3: #{forward.1} parent=0 // pred_check_branch
    %18 = sbr.rel (0) target = $region5
  $region4: #{forward.1} parent=0 // pred_region
    _
  $region5: #{forward.1} parent=0 // pred_fallthru
    _
  // Predicated region
  $region6: #{forward.1} parent=0 // pred_check
    _
  $region7: #{forward.1} parent=0 // pred_check_branch
    %20 = sbr.rel (0) target = $region9
  $region8: #{forward.1} parent=0 // pred_region
    _
  $region9: #{forward.1} parent=0 // pred_fallthru
    _
  // Predicated region
  $region10: #{forward.1} parent=0 // pred_check
    _
  $region11: #{forward.1} parent=0 // pred_check_branch
    %22 = sbr.rel (0) target = $region13
  $region12: #{forward.1} parent=0 // pred_region
    _
  $region13: #{forward.1} parent=0 // pred_fallthru
    _
  // Predicated region
  $region14: #{forward.1} parent=0 // pred_check
    _
  $region15: #{forward.1} parent=0 // pred_check_branch
    %24 = sbr.rel (0) target = $region17
  $region16: #{forward.1} parent=0 // pred_region
    _
  $region17: #{forward.1} parent=0 // pred_fallthru
    _
  // Predicated region
  $region18: #{forward.1} parent=0 // pred_check
    _
  $region19: #{forward.1} parent=0 // pred_check_branch
    %26 = sbr.rel (0) target = $region21
  $region20: #{forward.1} parent=0 // pred_region
    _
  $region21: #{forward.1} parent=0 // pred_fallthru
    _
  // Predicated region
  $region22: #{forward.1} parent=0 // pred_check
    _
  $region23: #{forward.1} parent=0 // pred_check_branch
    %28 = sbr.rel (0) target = $region25
  $region24: #{forward.1} parent=0 // pred_region
    _
  $region25: #{forward.1} parent=0 // pred_fallthru
    _
  // Predicated region
  $region26: #{forward.1} parent=0 // pred_check
    _
  $region27: #{forward.1} parent=0 // pred_check_branch
    %30 = sbr.rel (0) target = $region29
  $region28: #{forward.1} parent=0 // pred_region
    _
  $region29: #{forward.1} parent=0 // pred_fallthru
    _
  // Predicated region
  $region30: #{forward.1} parent=0 // pred_check
    _
  $region31: #{forward.1} parent=0 // pred_check_branch
    %32 = sbr.rel (0) target = $region33
  $region32: #{forward.1} parent=0 // pred_region
    _
  $region33: #{forward.1} parent=0 // pred_fallthru
    _
  // Predicated region
  $region34: #{forward.1} parent=0 // pred_check
    _
  $region35: #{forward.1} parent=0 // pred_check_branch
    %34 = sbr.rel (0) target = $region37
  $region36: #{forward.1} parent=0 // pred_region
    _
  $region37: #{forward.1} parent=0 // pred_fallthru
    _
  // Predicated region
  $region38: #{forward.1} parent=0 // pred_check
    _
  $region39: #{forward.1} parent=0 // pred_check_branch
    %36 = sbr.rel (0) target = $region41
  $region40: #{forward.1} parent=0 // pred_region
    _
  $region41: #{forward.1} parent=0 // pred_fallthru
    _
  // Predicated region
  $region42: #{forward.1} parent=0 // pred_check
    _
  $region43: #{forward.1} parent=0 // pred_check_branch
    %38 = sbr.rel (0) target = $region45
  $region44: #{forward.1} parent=0 // pred_region
    _
  $region45: #{forward.1} parent=0 // pred_fallthru
    _
  // Predicated region
  $region46: #{forward.1} parent=0 // pred_check
    _
  $region47: #{forward.1} parent=0 // pred_check_branch
    %40 = sbr.rel (0) target = $region49
  $region48: #{forward.1} parent=0 // pred_region
    _
  $region49: #{forward.1} parent=0 // pred_fallthru
    _
  %v42 = vld [vmem:[%s11] sm:$0xff]
  %v43 = vld [vmem:[%s11 + $0x8] sm:$0xff]
  %v44 = vld [vmem:[%s11 + $0x10] sm:$0xff]
  %v45 = vld [vmem:[%s9] sm:$0xff]
  %v46 = vld [vmem:[%s9 + $0x8] sm:$0xff]
  %v47 = vld [vmem:[%s9 + $0x10] sm:$0xff]
  %v48 = vld [vmem:[%s9 + $0x18] sm:$0xff]
  %v49 = vld [vmem:[%s10] sm:$0xf]
  %v50 = vld [vmem:[%s10 + $0x4] sm:$0xf]
  %v51 = vld [vmem:[%s10 + $0x8] sm:$0xf]
  %v52 = vld [vmem:[%s10 + $0xc] sm:$0xf]
  %v53 = vld [vmem:[%s10 + $0x10] sm:$0xf]
  %v54 = vld [vmem:[%s10 + $0x14] sm:$0xf]
  %v55 = vld [vmem:[%s10 + $0x18] sm:$0xf]
  %v56 = vld [vmem:[%s10 + $0x1c] sm:$0xf]
  %v57 = vld [vmem:[%s0] sm:$0xff]
  %v58 = vld [vmem:[%s0 + $0x8] sm:$0xff]
  %v59 = vld [vmem:[%s0 + $0x10] sm:$0xff]
  %v60 = vld [vmem:[%s0 + $0x18] sm:$0xff]
  %v61 = vpack.c.bf16 %v58, %v57
  %v62 = vpack.c.bf16 %v60, %v59
  %v63 = vld [vmem:[%s2] sm:$0xf]
  %v64 = vld [vmem:[%s2 + $0x4] sm:$0xf]
  %v65 = vld [vmem:[%s2 + $0x8] sm:$0xf]
  %v66 = vld [vmem:[%s2 + $0xc] sm:$0xf]
  %v67 = vld [vmem:[%s2 + $0x10] sm:$0xf]
  %v68 = vld [vmem:[%s2 + $0x14] sm:$0xf]
  %v69 = vld [vmem:[%s2 + $0x18] sm:$0xf]
  %v70 = vld [vmem:[%s2 + $0x1c] sm:$0xf]
  %v71 = vlaneseq
  %v72 = vshrl.u32 %v71, 7
  %v73 = vsub.s32 0, %v72
  %v74 = vrot.slane %v42, %v73
  %v83 = vunpack.c.l.b16 %v63
  %v84 = vunpack.c.l.b16 %v64
  %v85 = vunpack.c.l.b16 %v65
  %v86 = vunpack.c.l.b16 %v66
  %v87 = vunpack.c.l.b16 %v67
  %v88 = vunpack.c.l.b16 %v68
  %v89 = vunpack.c.l.b16 %v69
  %v90 = vunpack.c.l.b16 %v70
  %v91 = vpack.c.b16 %v84, %v83
  %v92 = vpack.c.b16 %v86, %v85
  %v93 = vpack.c.b16 %v88, %v87
  %v94 = vpack.c.b16 %v90, %v89
  %vm99 = vcmask 523264
  %v101 = vsel %vm99, %v61, 0
  %v104 = vsel %vm99, %v62, 0
  %106 = vmatprep.subr.bf16.mxu0 0
  %107 = vmatpush1.bf16.msra.mxu0 0
  %108 = vmatprep.subr.bf16.mxu0 0
  %109 = vmatpush1.bf16.msra.mxu0 0
  %110 = vmatprep.subr.bf16.mxu0 0
  %111 = vmatpush1.bf16.msra.mxu0 0
  %112 = vmatprep.subr.bf16.mxu0 0
  %113 = vmatpush1.bf16.msra.mxu0 0
  %114 = vmatprep.subr.bf16.mxu0 0
  %115 = vmatpush1.bf16.msra.mxu0 %v94
  %116 = vmatprep.subr.bf16.mxu0 0
  %117 = vmatpush1.bf16.msra.mxu0 %v93
  %118 = vmatprep.subr.bf16.mxu0 0
  %119 = vmatpush1.bf16.msra.mxu0 %v92
  %120 = vmatprep.subr.bf16.mxu0 0
  %121 = vmatpush1.bf16.msra.mxu0 %v91
  %122 = vmatprep.subr.bf16.mxu0 0
  %123 = vmatpush2.bf16.msra.mxu0 0
  %124 = vmatprep.subr.bf16.mxu0 0
  %125 = vmatpush2.bf16.msra.mxu0 0
  %126 = vmatprep.subr.bf16.mxu0 0
  %127 = vmatpush2.bf16.msra.mxu0 0
  %128 = vmatprep.subr.bf16.mxu0 0
  %129 = vmatpush2.bf16.msra.mxu0 0
  %130 = vmatprep.subr.bf16.mxu0 0
  %131 = vmatpush2.bf16.msra.mxu0 0
  %132 = vmatprep.subr.bf16.mxu0 0
  %133 = vmatpush2.bf16.msra.mxu0 0
  %134 = vmatprep.subr.bf16.mxu0 0
  %135 = vmatpush2.bf16.msra.mxu0 0
  %136 = vmatprep.subr.bf16.mxu0 0
  %137 = vmatpush2.bf16.msra.mxu0 0
  %138 = vmatprep.mubr.bf16.mxu0 0
  %139 = vmatmul.mubr.bf16.gmra.mxu0 %v101
  %v140 = vpop.f32.mrf.mxu0
  %v141 = vadd.f32 %v74, %v140
  %v142 = vpop.f32.mrf.mxu0
  %v143 = vpop.f32.mrf.mxu0
  %v144 = vadd.f32 %v74, %v143
  %v145 = vpop.f32.mrf.mxu0
  %146 = vmatprep.mubr.bf16.mxu0 0
  %147 = vmatmul.mubr.bf16.gmra.mxu0 %v104
  %v148 = vpop.f32.mrf.mxu0
  %v149 = vadd.f32 %v74, %v148
  %v150 = vpop.f32.mrf.mxu0
  %v151 = vpop.f32.mrf.mxu0
  %v152 = vadd.f32 %v74, %v151
  %v153 = vpop.f32.mrf.mxu0
  %154 = vdwg.mxu0
  %v155 = vld [vmem:[%s1] sm:$0xff]
  %v156 = vld [vmem:[%s1 + $0x8] sm:$0xff]
  %v157 = vld [vmem:[%s1 + $0x10] sm:$0xff]
  %v158 = vld [vmem:[%s1 + $0x18] sm:$0xff]
  %v159 = vadd.f32 %v141, %v155
  %v160 = vadd.f32 %v144, %v156
  %v161 = vadd.f32 %v149, %v157
  %v162 = vadd.f32 %v152, %v158
  %vm163 = vcmask 261120
  %v164 = vsel %vm163, %v159, 0.0
  %165 = vadd.xlane.f32.xlu0 %v164
  %v166 = vpop.xlane.xlu0 %165
  %v167 = vsel %vm163, %v160, 0.0
  %168 = vadd.xlane.f32.xlu0 %v167
  %v169 = vpop.xlane.xlu0 %168
  %v170 = vsel %vm163, %v161, 0.0
  %171 = vadd.xlane.f32.xlu0 %v170
  %v172 = vpop.xlane.xlu0 %171
  %v173 = vsel %vm163, %v162, 0.0
  %174 = vadd.xlane.f32.xlu0 %v173
  %v175 = vpop.xlane.xlu0 %174
  %v176 = vrcp.pop 32.0
  %v177 = vmul.f32 %v166, %v176
  %v178 = vmul.f32 %v169, %v176
  %v179 = vmul.f32 %v172, %v176
  %v180 = vmul.f32 %v175, %v176
  %v181 = vsub.f32 %v159, %v177
  %v182 = vsub.f32 %v160, %v178
  %v183 = vsub.f32 %v161, %v179
  %v184 = vsub.f32 %v162, %v180
  %v185 = vmul.f32 %v181, %v181
  %v186 = vmul.f32 %v182, %v182
  %v187 = vmul.f32 %v183, %v183
  %v188 = vmul.f32 %v184, %v184
  %v189 = vsel %vm163, %v185, 0.0
  %190 = vadd.xlane.f32.xlu0 %v189
  %v191 = vpop.xlane.xlu0 %190
  %v192 = vsel %vm163, %v186, 0.0
  %193 = vadd.xlane.f32.xlu0 %v192
  %v194 = vpop.xlane.xlu0 %193
  %v195 = vsel %vm163, %v187, 0.0
  %196 = vadd.xlane.f32.xlu0 %v195
  %v197 = vpop.xlane.xlu0 %196
  %v198 = vsel %vm163, %v188, 0.0
  %199 = vadd.xlane.f32.xlu0 %v198
  %v200 = vpop.xlane.xlu0 %199
  %v201 = vmul.f32 %v191, %v176
  %v202 = vmul.f32 %v194, %v176
  %v203 = vmul.f32 %v197, %v176
  %v204 = vmul.f32 %v200, %v176
  %v205 = vadd.f32 %v201, 1e-05
  %v206 = vadd.f32 %v202, 1e-05
  %v207 = vadd.f32 %v203, 1e-05
  %v208 = vadd.f32 %v204, 1e-05
  %v209 = vrsqrt.pop %v205
  %v210 = vrsqrt.pop %v206
  %v211 = vrsqrt.pop %v207
  %v212 = vrsqrt.pop %v208
  %v213 = vmul.f32 %v181, %v209
  %v214 = vmul.f32 %v182, %v210
  %v215 = vmul.f32 %v183, %v211
  %v216 = vmul.f32 %v184, %v212
  %v217 = vlaneseq
  %v218 = vshrl.u32 %v217, 7
  %v219 = vsub.s32 1, %v218
  %v220 = vrot.slane %v42, %v219
  %v221 = vmul.f32 %v213, %v220
  %v222 = vmul.f32 %v214, %v220
  %v223 = vmul.f32 %v215, %v220
  %v224 = vmul.f32 %v216, %v220
  %v225 = vlaneseq
  %v226 = vshrl.u32 %v225, 7
  %v227 = vsub.s32 2, %v226
  %v228 = vrot.slane %v42, %v227
  %v229 = vadd.f32 %v221, %v228
  %v230 = vadd.f32 %v222, %v228
  %v231 = vadd.f32 %v223, %v228
  %v232 = vadd.f32 %v224, %v228
  %v233 = vpack.c.bf16 %v230, %v229
  %v234 = vpack.c.bf16 %v232, %v231
  %v235 = vld [vmem:[%s4] sm:$0xf]
  %v236 = vld [vmem:[%s4 + $0x4] sm:$0xf]
  %v237 = vld [vmem:[%s4 + $0x8] sm:$0xf]
  %v238 = vld [vmem:[%s4 + $0xc] sm:$0xf]
  %v239 = vlaneseq
  %v240 = vshrl.u32 %v239, 7
  %v241 = vsub.s32 3, %v240
  %v242 = vrot.slane %v42, %v241
  %v247 = vunpack.c.l.b16 %v235
  %v248 = vunpack.c.l.b16 %v236
  %v249 = vunpack.c.l.b16 %v237
  %v250 = vunpack.c.l.b16 %v238
  %v251 = vpack.c.b16 %v248, %v247
  %v252 = vpack.c.b16 %v250, %v249
  %v256 = vsel %vm163, %v233, 0
  %v259 = vsel %vm163, %v234, 0
  %261 = vmatprep.subr.bf16.mxu0 0
  %262 = vmatpush1.bf16.msra.mxu0 0
  %263 = vmatprep.subr.bf16.mxu0 0
  %264 = vmatpush1.bf16.msra.mxu0 0
  %265 = vmatprep.subr.bf16.mxu0 0
  %266 = vmatpush1.bf16.msra.mxu0 0
  %267 = vmatprep.subr.bf16.mxu0 0
  %268 = vmatpush1.bf16.msra.mxu0 0
  %269 = vmatprep.subr.bf16.mxu0 0
  %270 = vmatpush1.bf16.msra.mxu0 0
  %271 = vmatprep.subr.bf16.mxu0 0
  %272 = vmatpush1.bf16.msra.mxu0 0
  %273 = vmatprep.subr.bf16.mxu0 0
  %274 = vmatpush1.bf16.msra.mxu0 %v252
  %275 = vmatprep.subr.bf16.mxu0 0
  %276 = vmatpush1.bf16.msra.mxu0 %v251
  %277 = vmatprep.subr.bf16.mxu0 0
  %278 = vmatpush2.bf16.msra.mxu0 0
  %279 = vmatprep.subr.bf16.mxu0 0
  %280 = vmatpush2.bf16.msra.mxu0 0
  %281 = vmatprep.subr.bf16.mxu0 0
  %282 = vmatpush2.bf16.msra.mxu0 0
  %283 = vmatprep.subr.bf16.mxu0 0
  %284 = vmatpush2.bf16.msra.mxu0 0
  %285 = vmatprep.subr.bf16.mxu0 0
  %286 = vmatpush2.bf16.msra.mxu0 0
  %287 = vmatprep.subr.bf16.mxu0 0
  %288 = vmatpush2.bf16.msra.mxu0 0
  %289 = vmatprep.subr.bf16.mxu0 0
  %290 = vmatpush2.bf16.msra.mxu0 0
  %291 = vmatprep.subr.bf16.mxu0 0
  %292 = vmatpush2.bf16.msra.mxu0 0
  %293 = vmatprep.mubr.bf16.mxu0 0
  %294 = vmatmul.mubr.bf16.gmra.mxu0 %v256
  %v295 = vpop.f32.mrf.mxu0
  %v296 = vadd.f32 %v242, %v295
  %v297 = vpop.f32.mrf.mxu0
  %v298 = vpop.f32.mrf.mxu0
  %v299 = vadd.f32 %v242, %v298
  %v300 = vpop.f32.mrf.mxu0
  %301 = vmatprep.mubr.bf16.mxu0 0
  %302 = vmatmul.mubr.bf16.gmra.mxu0 %v259
  %v303 = vpop.f32.mrf.mxu0
  %v304 = vadd.f32 %v242, %v303
  %v305 = vpop.f32.mrf.mxu0
  %v306 = vpop.f32.mrf.mxu0
  %v307 = vadd.f32 %v242, %v306
  %v308 = vpop.f32.mrf.mxu0
  %309 = vdwg.mxu0
  %v310 = vmul.f32 %v296, %v296
  %v311 = vmul.f32 %v299, %v299
  %v312 = vmul.f32 %v304, %v304
  %v313 = vmul.f32 %v307, %v307
  %v314 = vpack.c.bf16 %v311, %v310
  %v315 = vpack.c.bf16 %v313, %v312
  %v324 = vunpack.c.l.b16 %v49
  %v325 = vunpack.c.l.b16 %v50
  %v326 = vunpack.c.l.b16 %v51
  %v327 = vunpack.c.l.b16 %v52
  %v328 = vunpack.c.l.b16 %v53
  %v329 = vunpack.c.l.b16 %v54
  %v330 = vunpack.c.l.b16 %v55
  %v331 = vunpack.c.l.b16 %v56
  %v332 = vpack.c.b16 %v325, %v324
  %v333 = vpack.c.b16 %v327, %v326
  %v334 = vpack.c.b16 %v329, %v328
  %v335 = vpack.c.b16 %v331, %v330
  %v341 = vsel %vm99, %v314, 0
  %v344 = vsel %vm99, %v315, 0
  %346 = vmatprep.subr.bf16.mxu0 0
  %347 = vmatpush1.bf16.msra.mxu0 0
  %348 = vmatprep.subr.bf16.mxu0 0
  %349 = vmatpush1.bf16.msra.mxu0 0
  %350 = vmatprep.subr.bf16.mxu0 0
  %351 = vmatpush1.bf16.msra.mxu0 0
  %352 = vmatprep.subr.bf16.mxu0 0
  %353 = vmatpush1.bf16.msra.mxu0 0
  %354 = vmatprep.subr.bf16.mxu0 0
  %355 = vmatpush1.bf16.msra.mxu0 %v335
  %356 = vmatprep.subr.bf16.mxu0 0
  %357 = vmatpush1.bf16.msra.mxu0 %v334
  %358 = vmatprep.subr.bf16.mxu0 0
  %359 = vmatpush1.bf16.msra.mxu0 %v333
  %360 = vmatprep.subr.bf16.mxu0 0
  %361 = vmatpush1.bf16.msra.mxu0 %v332
  %362 = vmatprep.subr.bf16.mxu0 0
  %363 = vmatpush2.bf16.msra.mxu0 0
  %364 = vmatprep.subr.bf16.mxu0 0
  %365 = vmatpush2.bf16.msra.mxu0 0
  %366 = vmatprep.subr.bf16.mxu0 0
  %367 = vmatpush2.bf16.msra.mxu0 0
  %368 = vmatprep.subr.bf16.mxu0 0
  %369 = vmatpush2.bf16.msra.mxu0 0
  %370 = vmatprep.subr.bf16.mxu0 0
  %371 = vmatpush2.bf16.msra.mxu0 0
  %372 = vmatprep.subr.bf16.mxu0 0
  %373 = vmatpush2.bf16.msra.mxu0 0
  %374 = vmatprep.subr.bf16.mxu0 0
  %375 = vmatpush2.bf16.msra.mxu0 0
  %376 = vmatprep.subr.bf16.mxu0 0
  %377 = vmatpush2.bf16.msra.mxu0 0
  %378 = vmatprep.mubr.bf16.mxu0 0
  %379 = vmatmul.mubr.bf16.gmra.mxu0 %v341
  %v380 = vpop.f32.mrf.mxu0
  %v381 = vadd.f32 0.0, %v380
  %v382 = vpop.f32.mrf.mxu0
  %v383 = vpop.f32.mrf.mxu0
  %v384 = vadd.f32 0.0, %v383
  %v385 = vpop.f32.mrf.mxu0
  %386 = vmatprep.mubr.bf16.mxu0 0
  %387 = vmatmul.mubr.bf16.gmra.mxu0 %v344
  %v388 = vpop.f32.mrf.mxu0
  %v389 = vadd.f32 0.0, %v388
  %v390 = vpop.f32.mrf.mxu0
  %v391 = vpop.f32.mrf.mxu0
  %v392 = vadd.f32 0.0, %v391
  %v393 = vpop.f32.mrf.mxu0
  %394 = vdwg.mxu0
  %v395 = vmax.f32 %v381, 1e-24
  %v396 = vmax.f32 %v384, 1e-24
  %v397 = vmax.f32 %v389, 1e-24
  %v398 = vmax.f32 %v392, 1e-24
  %v399 = vrsqrt.pop %v395
  %v400 = vrsqrt.pop %v396
  %v401 = vrsqrt.pop %v397
  %v402 = vrsqrt.pop %v398
  %v403 = vmul.f32 %v296, %v399
  %v404 = vmul.f32 %v299, %v400
  %v405 = vmul.f32 %v304, %v401
  %v406 = vmul.f32 %v307, %v402
  %v407 = vld [vmem:[%s5] sm:$0xf]
  %v408 = vld [vmem:[%s5 + $0x4] sm:$0xf]
  %s409 = scalar_lea.vmem %s5, 8
  %v410 = vld [vmem:[%s409] sm:$0xf]
  %v411 = vld [vmem:[%s409 + $0x4] sm:$0xf]
  %412 = vxpose.xlu0.b32.start [1/16] %v229, 128
  %413 = vxpose.xlu0.b32.cont [2/16] %v230, 128
  %414 = vxpose.xlu0.b32.cont [3/16] 0.0, 128
  %415 = vxpose.xlu0.b32.cont [4/16] 0.0, 128
  %416 = vxpose.xlu0.b32.cont [5/16] 0.0, 128
  %417 = vxpose.xlu0.b32.cont [6/16] 0.0, 128
  %418 = vxpose.xlu0.b32.cont [7/16] 0.0, 128
  %419 = vxpose.xlu0.b32.cont [8/16] 0.0, 128
  %420 = vxpose.xlu0.b32.cont [9/16] 0.0, 128
  %421 = vxpose.xlu0.b32.cont [10/16] 0.0, 128
  %422 = vxpose.xlu0.b32.cont [11/16] 0.0, 128
  %423 = vxpose.xlu0.b32.cont [12/16] 0.0, 128
  %424 = vxpose.xlu0.b32.cont [13/16] 0.0, 128
  %425 = vxpose.xlu0.b32.cont [14/16] 0.0, 128
  %426 = vxpose.xlu0.b32.cont [15/16] 0.0, 128
  %427 = vxpose.xlu0.b32.end [16/16] 0.0, 128
  %v428 = vpop.trf.xlu0
  %v429 = vpop.trf.xlu0
  %v430 = vpop.trf.xlu0
  %v431 = vpop.trf.xlu0
  %v432 = vpop.trf.xlu0
  %v433 = vpop.trf.xlu0
  %v434 = vpop.trf.xlu0
  %v435 = vpop.trf.xlu0
  %v436 = vpop.trf.xlu0
  %v437 = vpop.trf.xlu0
  %v438 = vpop.trf.xlu0
  %v439 = vpop.trf.xlu0
  %v440 = vpop.trf.xlu0
  %v441 = vpop.trf.xlu0
  %v442 = vpop.trf.xlu0
  %v443 = vpop.trf.xlu0
  %v444 = vpack.c.bf16 %v429, %v428
  %v445 = vpack.c.bf16 %v431, %v430
  %v448 = vunpack.c.l.b16 %v407
  %v449 = vunpack.c.l.b16 %v408
  %v450 = vpack.c.b16 %v449, %v448
  %vm452 = vcmask 130048
  %v454 = vsel %vm452, %v444, 0
  %v457 = vsel %vm452, %v445, 0
  %459 = vmatprep.subr.bf16.mxu0 0
  %460 = vmatpush1.bf16.msra.mxu0 0
  %461 = vmatprep.subr.bf16.mxu0 0
  %462 = vmatpush1.bf16.msra.mxu0 0
  %463 = vmatprep.subr.bf16.mxu0 0
  %464 = vmatpush1.bf16.msra.mxu0 0
  %465 = vmatprep.subr.bf16.mxu0 0
  %466 = vmatpush1.bf16.msra.mxu0 0
  %467 = vmatprep.subr.bf16.mxu0 0
  %468 = vmatpush1.bf16.msra.mxu0 0
  %469 = vmatprep.subr.bf16.mxu0 0
  %470 = vmatpush1.bf16.msra.mxu0 0
  %471 = vmatprep.subr.bf16.mxu0 0
  %472 = vmatpush1.bf16.msra.mxu0 0
  %473 = vmatprep.subr.bf16.mxu0 0
  %474 = vmatpush1.bf16.msra.mxu0 %v450
  %475 = vmatprep.subr.bf16.mxu0 0
  %476 = vmatpush2.bf16.msra.mxu0 0
  %477 = vmatprep.subr.bf16.mxu0 0
  %478 = vmatpush2.bf16.msra.mxu0 0
  %479 = vmatprep.subr.bf16.mxu0 0
  %480 = vmatpush2.bf16.msra.mxu0 0
  %481 = vmatprep.subr.bf16.mxu0 0
  %482 = vmatpush2.bf16.msra.mxu0 0
  %483 = vmatprep.subr.bf16.mxu0 0
  %484 = vmatpush2.bf16.msra.mxu0 0
  %485 = vmatprep.subr.bf16.mxu0 0
  %486 = vmatpush2.bf16.msra.mxu0 0
  %487 = vmatprep.subr.bf16.mxu0 0
  %488 = vmatpush2.bf16.msra.mxu0 0
  %489 = vmatprep.subr.bf16.mxu0 0
  %490 = vmatpush2.bf16.msra.mxu0 0
  %491 = vmatprep.mubr.bf16.mxu0 0
  %492 = vmatmul.mubr.bf16.gmra.mxu0 %v454
  %v493 = vpop.f32.mrf.mxu0
  %v494 = vadd.f32 0.0, %v493
  %v495 = vpop.f32.mrf.mxu0
  %v496 = vpop.f32.mrf.mxu0
  %v497 = vadd.f32 0.0, %v496
  %v498 = vpop.f32.mrf.mxu0
  %499 = vmatprep.mubr.bf16.mxu0 0
  %500 = vmatmul.mubr.bf16.gmra.mxu0 %v457
  %v501 = vpop.f32.mrf.mxu0
  %v502 = vadd.f32 0.0, %v501
  %v503 = vpop.f32.mrf.mxu0
  %v504 = vpop.f32.mrf.mxu0
  %v505 = vadd.f32 0.0, %v504
  %v506 = vpop.f32.mrf.mxu0
  %507 = vdwg.mxu0
  %v510 = vunpack.c.l.b16 %v410
  %v511 = vunpack.c.l.b16 %v411
  %v512 = vpack.c.b16 %v511, %v510
  %514 = vmatprep.subr.bf16.mxu0 0
  %515 = vmatpush1.bf16.msra.mxu0 0
  %516 = vmatprep.subr.bf16.mxu0 0
  %517 = vmatpush1.bf16.msra.mxu0 0
  %518 = vmatprep.subr.bf16.mxu0 0
  %519 = vmatpush1.bf16.msra.mxu0 0
  %520 = vmatprep.subr.bf16.mxu0 0
  %521 = vmatpush1.bf16.msra.mxu0 0
  %522 = vmatprep.subr.bf16.mxu0 0
  %523 = vmatpush1.bf16.msra.mxu0 0
  %524 = vmatprep.subr.bf16.mxu0 0
  %525 = vmatpush1.bf16.msra.mxu0 0
  %526 = vmatprep.subr.bf16.mxu0 0
  %527 = vmatpush1.bf16.msra.mxu0 0
  %528 = vmatprep.subr.bf16.mxu0 0
  %529 = vmatpush1.bf16.msra.mxu0 %v512
  %530 = vmatprep.subr.bf16.mxu0 0
  %531 = vmatpush2.bf16.msra.mxu0 0
  %532 = vmatprep.subr.bf16.mxu0 0
  %533 = vmatpush2.bf16.msra.mxu0 0
  %534 = vmatprep.subr.bf16.mxu0 0
  %535 = vmatpush2.bf16.msra.mxu0 0
  %536 = vmatprep.subr.bf16.mxu0 0
  %537 = vmatpush2.bf16.msra.mxu0 0
  %538 = vmatprep.subr.bf16.mxu0 0
  %539 = vmatpush2.bf16.msra.mxu0 0
  %540 = vmatprep.subr.bf16.mxu0 0
  %541 = vmatpush2.bf16.msra.mxu0 0
  %542 = vmatprep.subr.bf16.mxu0 0
  %543 = vmatpush2.bf16.msra.mxu0 0
  %544 = vmatprep.subr.bf16.mxu0 0
  %545 = vmatpush2.bf16.msra.mxu0 0
  %546 = vmatprep.mubr.bf16.mxu0 0
  %547 = vmatmul.mubr.bf16.gmra.mxu0 %v454
  %v548 = vpop.f32.mrf.mxu0
  %v549 = vadd.f32 0.0, %v548
  %v550 = vpop.f32.mrf.mxu0
  %v551 = vpop.f32.mrf.mxu0
  %v552 = vadd.f32 0.0, %v551
  %v553 = vpop.f32.mrf.mxu0
  %554 = vmatprep.mubr.bf16.mxu0 0
  %555 = vmatmul.mubr.bf16.gmra.mxu0 %v457
  %v556 = vpop.f32.mrf.mxu0
  %v557 = vadd.f32 0.0, %v556
  %v558 = vpop.f32.mrf.mxu0
  %v559 = vpop.f32.mrf.mxu0
  %v560 = vadd.f32 0.0, %v559
  %v561 = vpop.f32.mrf.mxu0
  %562 = vdwg.mxu0
  %v563 = vmul.f32 %v494, %v45
  %v564 = vmul.f32 %v497, %v46
  %v565 = vmul.f32 %v502, %v47
  %v566 = vmul.f32 %v505, %v48
  %v567 = vpack.c.bf16 %v564, %v563
  %v568 = vpack.c.bf16 %v566, %v565
  %v569 = vmul.f32 %v549, %v45
  %v570 = vmul.f32 %v552, %v46
  %v571 = vmul.f32 %v557, %v47
  %v572 = vmul.f32 %v560, %v48
  %v573 = vpack.c.bf16 %v570, %v569
  %v574 = vpack.c.bf16 %v572, %v571
  %v575 = vpack.c.bf16 %v404, %v403
  %v577 = vsel %vm163, %v575, 0
  %579 = vmatprep.subr.bf16.mxu0 0
  %580 = vmatpush1.bf16.msra.mxu0 0
  %581 = vmatprep.subr.bf16.mxu0 0
  %582 = vmatpush1.bf16.msra.mxu0 0
  %583 = vmatprep.subr.bf16.mxu0 0
  %584 = vmatpush1.bf16.msra.mxu0 0
  %585 = vmatprep.subr.bf16.mxu0 0
  %586 = vmatpush1.bf16.msra.mxu0 0
  %587 = vmatprep.subr.bf16.mxu0 0
  %588 = vmatpush1.bf16.msra.mxu0 0
  %589 = vmatprep.subr.bf16.mxu0 0
  %590 = vmatpush1.bf16.msra.mxu0 0
  %591 = vmatprep.subr.bf16.mxu0 0
  %592 = vmatpush1.bf16.msra.mxu0 %v568
  %593 = vmatprep.subr.bf16.mxu0 0
  %594 = vmatpush1.bf16.msra.mxu0 %v567
  %595 = vmatprep.subr.bf16.mxu0 0
  %596 = vmatpush2.bf16.msra.mxu0 0
  %597 = vmatprep.subr.bf16.mxu0 0
  %598 = vmatpush2.bf16.msra.mxu0 0
  %599 = vmatprep.subr.bf16.mxu0 0
  %600 = vmatpush2.bf16.msra.mxu0 0
  %601 = vmatprep.subr.bf16.mxu0 0
  %602 = vmatpush2.bf16.msra.mxu0 0
  %603 = vmatprep.subr.bf16.mxu0 0
  %604 = vmatpush2.bf16.msra.mxu0 0
  %605 = vmatprep.subr.bf16.mxu0 0
  %606 = vmatpush2.bf16.msra.mxu0 0
  %607 = vmatprep.subr.bf16.mxu0 0
  %608 = vmatpush2.bf16.msra.mxu0 0
  %609 = vmatprep.subr.bf16.mxu0 0
  %610 = vmatpush2.bf16.msra.mxu0 0
  %611 = vmatprep.mubr.bf16.mxu0 0
  %612 = vmatmul.mubr.bf16.gmra.mxu0 %v577
  %v613 = vpop.f32.mrf.mxu0
  %v614 = vadd.f32 0.0, %v613
  %v615 = vpop.f32.mrf.mxu0
  %v616 = vpop.f32.mrf.mxu0
  %v617 = vadd.f32 0.0, %v616
  %v618 = vpop.f32.mrf.mxu0
  %619 = vdwg.mxu0
  %621 = vrot.lane.b32.xlu0 %v575, 96
  %v622 = vpop.permute.xlu0 %621
  %v624 = vsel %vm163, %v622, 0
  %626 = vmatprep.subr.bf16.mxu0 0
  %627 = vmatpush1.bf16.msra.mxu0 0
  %628 = vmatprep.subr.bf16.mxu0 0
  %629 = vmatpush1.bf16.msra.mxu0 0
  %630 = vmatprep.subr.bf16.mxu0 0
  %631 = vmatpush1.bf16.msra.mxu0 0
  %632 = vmatprep.subr.bf16.mxu0 0
  %633 = vmatpush1.bf16.msra.mxu0 0
  %634 = vmatprep.subr.bf16.mxu0 0
  %635 = vmatpush1.bf16.msra.mxu0 0
  %636 = vmatprep.subr.bf16.mxu0 0
  %637 = vmatpush1.bf16.msra.mxu0 0
  %638 = vmatprep.subr.bf16.mxu0 0
  %639 = vmatpush1.bf16.msra.mxu0 %v574
  %640 = vmatprep.subr.bf16.mxu0 0
  %641 = vmatpush1.bf16.msra.mxu0 %v573
  %642 = vmatprep.subr.bf16.mxu0 0
  %643 = vmatpush2.bf16.msra.mxu0 0
  %644 = vmatprep.subr.bf16.mxu0 0
  %645 = vmatpush2.bf16.msra.mxu0 0
  %646 = vmatprep.subr.bf16.mxu0 0
  %647 = vmatpush2.bf16.msra.mxu0 0
  %648 = vmatprep.subr.bf16.mxu0 0
  %649 = vmatpush2.bf16.msra.mxu0 0
  %650 = vmatprep.subr.bf16.mxu0 0
  %651 = vmatpush2.bf16.msra.mxu0 0
  %652 = vmatprep.subr.bf16.mxu0 0
  %653 = vmatpush2.bf16.msra.mxu0 0
  %654 = vmatprep.subr.bf16.mxu0 0
  %655 = vmatpush2.bf16.msra.mxu0 0
  %656 = vmatprep.subr.bf16.mxu0 0
  %657 = vmatpush2.bf16.msra.mxu0 0
  %658 = vmatprep.mubr.bf16.mxu0 0
  %659 = vmatmul.mubr.bf16.gmra.mxu0 %v624
  %v660 = vpop.f32.mrf.mxu0
  %v661 = vadd.f32 0.0, %v660
  %v662 = vpop.f32.mrf.mxu0
  %v663 = vpop.f32.mrf.mxu0
  %v664 = vadd.f32 0.0, %v663
  %v665 = vpop.f32.mrf.mxu0
  %666 = vdwg.mxu0
  %667 = vxpose.xlu0.b32.start [1/16] %v231, 128
  %668 = vxpose.xlu0.b32.cont [2/16] %v232, 128
  %669 = vxpose.xlu0.b32.cont [3/16] 0.0, 128
  %670 = vxpose.xlu0.b32.cont [4/16] 0.0, 128
  %671 = vxpose.xlu0.b32.cont [5/16] 0.0, 128
  %672 = vxpose.xlu0.b32.cont [6/16] 0.0, 128
  %673 = vxpose.xlu0.b32.cont [7/16] 0.0, 128
  %674 = vxpose.xlu0.b32.cont [8/16] 0.0, 128
  %675 = vxpose.xlu0.b32.cont [9/16] 0.0, 128
  %676 = vxpose.xlu0.b32.cont [10/16] 0.0, 128
  %677 = vxpose.xlu0.b32.cont [11/16] 0.0, 128
  %678 = vxpose.xlu0.b32.cont [12/16] 0.0, 128
  %679 = vxpose.xlu0.b32.cont [13/16] 0.0, 128
  %680 = vxpose.xlu0.b32.cont [14/16] 0.0, 128
  %681 = vxpose.xlu0.b32.cont [15/16] 0.0, 128
  %682 = vxpose.xlu0.b32.end [16/16] 0.0, 128
  %v683 = vpop.trf.xlu0
  %v684 = vpop.trf.xlu0
  %v685 = vpop.trf.xlu0
  %v686 = vpop.trf.xlu0
  %v687 = vpop.trf.xlu0
  %v688 = vpop.trf.xlu0
  %v689 = vpop.trf.xlu0
  %v690 = vpop.trf.xlu0
  %v691 = vpop.trf.xlu0
  %v692 = vpop.trf.xlu0
  %v693 = vpop.trf.xlu0
  %v694 = vpop.trf.xlu0
  %v695 = vpop.trf.xlu0
  %v696 = vpop.trf.xlu0
  %v697 = vpop.trf.xlu0
  %v698 = vpop.trf.xlu0
  %v699 = vpack.c.bf16 %v684, %v683
  %v700 = vpack.c.bf16 %v686, %v685
  %v702 = vsel %vm452, %v699, 0
  %v705 = vsel %vm452, %v700, 0
  %707 = vmatprep.subr.bf16.mxu0 0
  %708 = vmatpush1.bf16.msra.mxu0 0
  %709 = vmatprep.subr.bf16.mxu0 0
  %710 = vmatpush1.bf16.msra.mxu0 0
  %711 = vmatprep.subr.bf16.mxu0 0
  %712 = vmatpush1.bf16.msra.mxu0 0
  %713 = vmatprep.subr.bf16.mxu0 0
  %714 = vmatpush1.bf16.msra.mxu0 0
  %715 = vmatprep.subr.bf16.mxu0 0
  %716 = vmatpush1.bf16.msra.mxu0 0
  %717 = vmatprep.subr.bf16.mxu0 0
  %718 = vmatpush1.bf16.msra.mxu0 0
  %719 = vmatprep.subr.bf16.mxu0 0
  %720 = vmatpush1.bf16.msra.mxu0 0
  %721 = vmatprep.subr.bf16.mxu0 0
  %722 = vmatpush1.bf16.msra.mxu0 %v450
  %723 = vmatprep.subr.bf16.mxu0 0
  %724 = vmatpush2.bf16.msra.mxu0 0
  %725 = vmatprep.subr.bf16.mxu0 0
  %726 = vmatpush2.bf16.msra.mxu0 0
  %727 = vmatprep.subr.bf16.mxu0 0
  %728 = vmatpush2.bf16.msra.mxu0 0
  %729 = vmatprep.subr.bf16.mxu0 0
  %730 = vmatpush2.bf16.msra.mxu0 0
  %731 = vmatprep.subr.bf16.mxu0 0
  %732 = vmatpush2.bf16.msra.mxu0 0
  %733 = vmatprep.subr.bf16.mxu0 0
  %734 = vmatpush2.bf16.msra.mxu0 0
  %735 = vmatprep.subr.bf16.mxu0 0
  %736 = vmatpush2.bf16.msra.mxu0 0
  %737 = vmatprep.subr.bf16.mxu0 0
  %738 = vmatpush2.bf16.msra.mxu0 0
  %739 = vmatprep.mubr.bf16.mxu0 0
  %740 = vmatmul.mubr.bf16.gmra.mxu0 %v702
  %v741 = vpop.f32.mrf.mxu0
  %v742 = vadd.f32 0.0, %v741
  %v743 = vpop.f32.mrf.mxu0
  %v744 = vpop.f32.mrf.mxu0
  %v745 = vadd.f32 0.0, %v744
  %v746 = vpop.f32.mrf.mxu0
  %747 = vmatprep.mubr.bf16.mxu0 0
  %748 = vmatmul.mubr.bf16.gmra.mxu0 %v705
  %v749 = vpop.f32.mrf.mxu0
  %v750 = vadd.f32 0.0, %v749
  %v751 = vpop.f32.mrf.mxu0
  %v752 = vpop.f32.mrf.mxu0
  %v753 = vadd.f32 0.0, %v752
  %v754 = vpop.f32.mrf.mxu0
  %755 = vdwg.mxu0
  %756 = vmatprep.subr.bf16.mxu0 0
  %757 = vmatpush1.bf16.msra.mxu0 0
  %758 = vmatprep.subr.bf16.mxu0 0
  %759 = vmatpush1.bf16.msra.mxu0 0
  %760 = vmatprep.subr.bf16.mxu0 0
  %761 = vmatpush1.bf16.msra.mxu0 0
  %762 = vmatprep.subr.bf16.mxu0 0
  %763 = vmatpush1.bf16.msra.mxu0 0
  %764 = vmatprep.subr.bf16.mxu0 0
  %765 = vmatpush1.bf16.msra.mxu0 0
  %766 = vmatprep.subr.bf16.mxu0 0
  %767 = vmatpush1.bf16.msra.mxu0 0
  %768 = vmatprep.subr.bf16.mxu0 0
  %769 = vmatpush1.bf16.msra.mxu0 0
  %770 = vmatprep.subr.bf16.mxu0 0
  %771 = vmatpush1.bf16.msra.mxu0 %v512
  %772 = vmatprep.subr.bf16.mxu0 0
  %773 = vmatpush2.bf16.msra.mxu0 0
  %774 = vmatprep.subr.bf16.mxu0 0
  %775 = vmatpush2.bf16.msra.mxu0 0
  %776 = vmatprep.subr.bf16.mxu0 0
  %777 = vmatpush2.bf16.msra.mxu0 0
  %778 = vmatprep.subr.bf16.mxu0 0
  %779 = vmatpush2.bf16.msra.mxu0 0
  %780 = vmatprep.subr.bf16.mxu0 0
  %781 = vmatpush2.bf16.msra.mxu0 0
  %782 = vmatprep.subr.bf16.mxu0 0
  %783 = vmatpush2.bf16.msra.mxu0 0
  %784 = vmatprep.subr.bf16.mxu0 0
  %785 = vmatpush2.bf16.msra.mxu0 0
  %786 = vmatprep.subr.bf16.mxu0 0
  %787 = vmatpush2.bf16.msra.mxu0 0
  %788 = vmatprep.mubr.bf16.mxu0 0
  %789 = vmatmul.mubr.bf16.gmra.mxu0 %v702
  %v790 = vpop.f32.mrf.mxu0
  %v791 = vadd.f32 0.0, %v790
  %v792 = vpop.f32.mrf.mxu0
  %v793 = vpop.f32.mrf.mxu0
  %v794 = vadd.f32 0.0, %v793
  %v795 = vpop.f32.mrf.mxu0
  %796 = vmatprep.mubr.bf16.mxu0 0
  %797 = vmatmul.mubr.bf16.gmra.mxu0 %v705
  %v798 = vpop.f32.mrf.mxu0
  %v799 = vadd.f32 0.0, %v798
  %v800 = vpop.f32.mrf.mxu0
  %v801 = vpop.f32.mrf.mxu0
  %v802 = vadd.f32 0.0, %v801
  %v803 = vpop.f32.mrf.mxu0
  %804 = vdwg.mxu0
  %v805 = vmul.f32 %v742, %v45
  %v806 = vmul.f32 %v745, %v46
  %v807 = vmul.f32 %v750, %v47
  %v808 = vmul.f32 %v753, %v48
  %v809 = vpack.c.bf16 %v806, %v805
  %v810 = vpack.c.bf16 %v808, %v807
  %v811 = vmul.f32 %v791, %v45
  %v812 = vmul.f32 %v794, %v46
  %v813 = vmul.f32 %v799, %v47
  %v814 = vmul.f32 %v802, %v48
  %v815 = vpack.c.bf16 %v812, %v811
  %v816 = vpack.c.bf16 %v814, %v813
  %v817 = vpack.c.bf16 %v406, %v405
  %v819 = vsel %vm163, %v817, 0
  %821 = vmatprep.subr.bf16.mxu0 0
  %822 = vmatpush1.bf16.msra.mxu0 0
  %823 = vmatprep.subr.bf16.mxu0 0
  %824 = vmatpush1.bf16.msra.mxu0 0
  %825 = vmatprep.subr.bf16.mxu0 0
  %826 = vmatpush1.bf16.msra.mxu0 0
  %827 = vmatprep.subr.bf16.mxu0 0
  %828 = vmatpush1.bf16.msra.mxu0 0
  %829 = vmatprep.subr.bf16.mxu0 0
  %830 = vmatpush1.bf16.msra.mxu0 0
  %831 = vmatprep.subr.bf16.mxu0 0
  %832 = vmatpush1.bf16.msra.mxu0 0
  %833 = vmatprep.subr.bf16.mxu0 0
  %834 = vmatpush1.bf16.msra.mxu0 %v810
  %835 = vmatprep.subr.bf16.mxu0 0
  %836 = vmatpush1.bf16.msra.mxu0 %v809
  %837 = vmatprep.subr.bf16.mxu0 0
  %838 = vmatpush2.bf16.msra.mxu0 0
  %839 = vmatprep.subr.bf16.mxu0 0
  %840 = vmatpush2.bf16.msra.mxu0 0
  %841 = vmatprep.subr.bf16.mxu0 0
  %842 = vmatpush2.bf16.msra.mxu0 0
  %843 = vmatprep.subr.bf16.mxu0 0
  %844 = vmatpush2.bf16.msra.mxu0 0
  %845 = vmatprep.subr.bf16.mxu0 0
  %846 = vmatpush2.bf16.msra.mxu0 0
  %847 = vmatprep.subr.bf16.mxu0 0
  %848 = vmatpush2.bf16.msra.mxu0 0
  %849 = vmatprep.subr.bf16.mxu0 0
  %850 = vmatpush2.bf16.msra.mxu0 0
  %851 = vmatprep.subr.bf16.mxu0 0
  %852 = vmatpush2.bf16.msra.mxu0 0
  %853 = vmatprep.mubr.bf16.mxu0 0
  %854 = vmatmul.mubr.bf16.gmra.mxu0 %v819
  %v855 = vpop.f32.mrf.mxu0
  %v856 = vadd.f32 0.0, %v855
  %v857 = vpop.f32.mrf.mxu0
  %v858 = vpop.f32.mrf.mxu0
  %v859 = vadd.f32 0.0, %v858
  %v860 = vpop.f32.mrf.mxu0
  %861 = vdwg.mxu0
  %863 = vrot.lane.b32.xlu0 %v817, 96
  %v864 = vpop.permute.xlu0 %863
  %v866 = vsel %vm163, %v864, 0
  %868 = vmatprep.subr.bf16.mxu0 0
  %869 = vmatpush1.bf16.msra.mxu0 0
  %870 = vmatprep.subr.bf16.mxu0 0
  %871 = vmatpush1.bf16.msra.mxu0 0
  %872 = vmatprep.subr.bf16.mxu0 0
  %873 = vmatpush1.bf16.msra.mxu0 0
  %874 = vmatprep.subr.bf16.mxu0 0
  %875 = vmatpush1.bf16.msra.mxu0 0
  %876 = vmatprep.subr.bf16.mxu0 0
  %877 = vmatpush1.bf16.msra.mxu0 0
  %878 = vmatprep.subr.bf16.mxu0 0
  %879 = vmatpush1.bf16.msra.mxu0 0
  %880 = vmatprep.subr.bf16.mxu0 0
  %881 = vmatpush1.bf16.msra.mxu0 %v816
  %882 = vmatprep.subr.bf16.mxu0 0
  %883 = vmatpush1.bf16.msra.mxu0 %v815
  %884 = vmatprep.subr.bf16.mxu0 0
  %885 = vmatpush2.bf16.msra.mxu0 0
  %886 = vmatprep.subr.bf16.mxu0 0
  %887 = vmatpush2.bf16.msra.mxu0 0
  %888 = vmatprep.subr.bf16.mxu0 0
  %889 = vmatpush2.bf16.msra.mxu0 0
  %890 = vmatprep.subr.bf16.mxu0 0
  %891 = vmatpush2.bf16.msra.mxu0 0
  %892 = vmatprep.subr.bf16.mxu0 0
  %893 = vmatpush2.bf16.msra.mxu0 0
  %894 = vmatprep.subr.bf16.mxu0 0
  %895 = vmatpush2.bf16.msra.mxu0 0
  %896 = vmatprep.subr.bf16.mxu0 0
  %897 = vmatpush2.bf16.msra.mxu0 0
  %898 = vmatprep.subr.bf16.mxu0 0
  %899 = vmatpush2.bf16.msra.mxu0 0
  %900 = vmatprep.mubr.bf16.mxu0 0
  %901 = vmatmul.mubr.bf16.gmra.mxu0 %v866
  %v902 = vpop.f32.mrf.mxu0
  %v903 = vadd.f32 0.0, %v902
  %v904 = vpop.f32.mrf.mxu0
  %v905 = vpop.f32.mrf.mxu0
  %v906 = vadd.f32 0.0, %v905
  %v907 = vpop.f32.mrf.mxu0
  %908 = vdwg.mxu0
  %v909 = vpack.c.bf16 %v617, %v614
  %v910 = vpack.c.bf16 %v859, %v856
  %v911 = vld [vmem:[%s6] sm:$0xf]
  %v912 = vld [vmem:[%s6 + $0x4] sm:$0xf]
  %v913 = vld [vmem:[%s6 + $0x8] sm:$0xf]
  %v914 = vld [vmem:[%s6 + $0xc] sm:$0xf]
  %v915 = vld [vmem:[%s6 + $0x10] sm:$0xf]
  %v916 = vld [vmem:[%s6 + $0x14] sm:$0xf]
  %v917 = vld [vmem:[%s6 + $0x18] sm:$0xf]
  %v918 = vld [vmem:[%s6 + $0x1c] sm:$0xf]
  %v919 = vld [vmem:[%s6 + $0x20] sm:$0xf]
  %v920 = vld [vmem:[%s6 + $0x24] sm:$0xf]
  %v921 = vpack.c.bf16 %v664, %v661
  %v922 = vpack.c.bf16 %v906, %v903
  %s923 = scalar_lea.vmem %s6, 40
  %v924 = vld [vmem:[%s923] sm:$0xf]
  %v925 = vld [vmem:[%s923 + $0x4] sm:$0xf]
  %v926 = vld [vmem:[%s923 + $0x8] sm:$0xf]
  %v927 = vld [vmem:[%s923 + $0xc] sm:$0xf]
  %v928 = vld [vmem:[%s923 + $0x10] sm:$0xf]
  %v929 = vld [vmem:[%s923 + $0x14] sm:$0xf]
  %v930 = vld [vmem:[%s923 + $0x18] sm:$0xf]
  %v931 = vld [vmem:[%s923 + $0x1c] sm:$0xf]
  %v932 = vld [vmem:[%s923 + $0x20] sm:$0xf]
  %v933 = vld [vmem:[%s923 + $0x24] sm:$0xf]
  %v944 = vunpack.c.l.b16 %v924
  %v945 = vunpack.c.l.b16 %v925
  %v946 = vunpack.c.l.b16 %v926
  %v947 = vunpack.c.l.b16 %v927
  %v948 = vunpack.c.l.b16 %v928
  %v949 = vunpack.c.l.b16 %v929
  %v950 = vunpack.c.l.b16 %v930
  %v951 = vunpack.c.l.b16 %v931
  %v952 = vunpack.c.l.b16 %v932
  %v953 = vunpack.c.l.b16 %v933
  %v954 = vpack.c.b16 %v945, %v944
  %v955 = vpack.c.b16 %v947, %v946
  %v956 = vpack.c.b16 %v949, %v948
  %v957 = vpack.c.b16 %v951, %v950
  %v958 = vpack.c.b16 %v953, %v952
  %vm964 = vcmask 654336
  %v966 = vsel %vm964, %v921, 0
  %v969 = vsel %vm964, %v922, 0
  %971 = vmatprep.subr.bf16.mxu0 0
  %972 = vmatpush1.bf16.msra.mxu0 0
  %973 = vmatprep.subr.bf16.mxu0 0
  %974 = vmatpush1.bf16.msra.mxu0 0
  %975 = vmatprep.subr.bf16.mxu0 0
  %976 = vmatpush1.bf16.msra.mxu0 0
  %977 = vmatprep.subr.bf16.mxu0 0
  %978 = vmatpush1.bf16.msra.mxu0 %v958
  %979 = vmatprep.subr.bf16.mxu0 0
  %980 = vmatpush1.bf16.msra.mxu0 %v957
  %981 = vmatprep.subr.bf16.mxu0 0
  %982 = vmatpush1.bf16.msra.mxu0 %v956
  %983 = vmatprep.subr.bf16.mxu0 0
  %984 = vmatpush1.bf16.msra.mxu0 %v955
  %985 = vmatprep.subr.bf16.mxu0 0
  %986 = vmatpush1.bf16.msra.mxu0 %v954
  %987 = vmatprep.subr.bf16.mxu0 0
  %988 = vmatpush2.bf16.msra.mxu0 0
  %989 = vmatprep.subr.bf16.mxu0 0
  %990 = vmatpush2.bf16.msra.mxu0 0
  %991 = vmatprep.subr.bf16.mxu0 0
  %992 = vmatpush2.bf16.msra.mxu0 0
  %993 = vmatprep.subr.bf16.mxu0 0
  %994 = vmatpush2.bf16.msra.mxu0 0
  %995 = vmatprep.subr.bf16.mxu0 0
  %996 = vmatpush2.bf16.msra.mxu0 0
  %997 = vmatprep.subr.bf16.mxu0 0
  %998 = vmatpush2.bf16.msra.mxu0 0
  %999 = vmatprep.subr.bf16.mxu0 0
  %1000 = vmatpush2.bf16.msra.mxu0 0
  %1001 = vmatprep.subr.bf16.mxu0 0
  %1002 = vmatpush2.bf16.msra.mxu0 0
  %1003 = vmatprep.mubr.bf16.mxu0 0
  %1004 = vmatmul.mubr.bf16.gmra.mxu0 %v966
  %v1005 = vpop.f32.mrf.mxu0
  %v1006 = vadd.f32 0.0, %v1005
  %v1007 = vpop.f32.mrf.mxu0
  %v1008 = vpop.f32.mrf.mxu0
  %v1009 = vadd.f32 0.0, %v1008
  %v1010 = vpop.f32.mrf.mxu0
  %1011 = vmatprep.mubr.bf16.mxu0 0
  %1012 = vmatmul.mubr.bf16.gmra.mxu0 %v969
  %v1013 = vpop.f32.mrf.mxu0
  %v1014 = vadd.f32 0.0, %v1013
  %v1015 = vpop.f32.mrf.mxu0
  %v1016 = vpop.f32.mrf.mxu0
  %v1017 = vadd.f32 0.0, %v1016
  %v1018 = vpop.f32.mrf.mxu0
  %1019 = vdwg.mxu0
  %v1030 = vunpack.c.l.b16 %v911
  %v1031 = vunpack.c.l.b16 %v912
  %v1032 = vunpack.c.l.b16 %v913
  %v1033 = vunpack.c.l.b16 %v914
  %v1034 = vunpack.c.l.b16 %v915
  %v1035 = vunpack.c.l.b16 %v916
  %v1036 = vunpack.c.l.b16 %v917
  %v1037 = vunpack.c.l.b16 %v918
  %v1038 = vunpack.c.l.b16 %v919
  %v1039 = vunpack.c.l.b16 %v920
  %v1040 = vpack.c.b16 %v1031, %v1030
  %v1041 = vpack.c.b16 %v1033, %v1032
  %v1042 = vpack.c.b16 %v1035, %v1034
  %v1043 = vpack.c.b16 %v1037, %v1036
  %v1044 = vpack.c.b16 %v1039, %v1038
  %v1051 = vsel %vm964, %v909, 0
  %v1054 = vsel %vm964, %v910, 0
  %1056 = vmatprep.subr.bf16.mxu0 0
  %1057 = vmatpush1.bf16.msra.mxu0 0
  %1058 = vmatprep.subr.bf16.mxu0 0
  %1059 = vmatpush1.bf16.msra.mxu0 0
  %1060 = vmatprep.subr.bf16.mxu0 0
  %1061 = vmatpush1.bf16.msra.mxu0 0
  %1062 = vmatprep.subr.bf16.mxu0 0
  %1063 = vmatpush1.bf16.msra.mxu0 %v1044
  %1064 = vmatprep.subr.bf16.mxu0 0
  %1065 = vmatpush1.bf16.msra.mxu0 %v1043
  %1066 = vmatprep.subr.bf16.mxu0 0
  %1067 = vmatpush1.bf16.msra.mxu0 %v1042
  %1068 = vmatprep.subr.bf16.mxu0 0
  %1069 = vmatpush1.bf16.msra.mxu0 %v1041
  %1070 = vmatprep.subr.bf16.mxu0 0
  %1071 = vmatpush1.bf16.msra.mxu0 %v1040
  %1072 = vmatprep.subr.bf16.mxu0 0
  %1073 = vmatpush2.bf16.msra.mxu0 0
  %1074 = vmatprep.subr.bf16.mxu0 0
  %1075 = vmatpush2.bf16.msra.mxu0 0
  %1076 = vmatprep.subr.bf16.mxu0 0
  %1077 = vmatpush2.bf16.msra.mxu0 0
  %1078 = vmatprep.subr.bf16.mxu0 0
  %1079 = vmatpush2.bf16.msra.mxu0 0
  %1080 = vmatprep.subr.bf16.mxu0 0
  %1081 = vmatpush2.bf16.msra.mxu0 0
  %1082 = vmatprep.subr.bf16.mxu0 0
  %1083 = vmatpush2.bf16.msra.mxu0 0
  %1084 = vmatprep.subr.bf16.mxu0 0
  %1085 = vmatpush2.bf16.msra.mxu0 0
  %1086 = vmatprep.subr.bf16.mxu0 0
  %1087 = vmatpush2.bf16.msra.mxu0 0
  %1088 = vmatprep.mubr.bf16.mxu0 0
  %1089 = vmatmul.mubr.bf16.gmra.mxu0 %v1051
  %v1090 = vpop.f32.mrf.mxu0
  %v1091 = vadd.f32 %v1006, %v1090
  %v1092 = vpop.f32.mrf.mxu0
  %v1093 = vpop.f32.mrf.mxu0
  %v1094 = vadd.f32 %v1009, %v1093
  %v1095 = vpop.f32.mrf.mxu0
  %1096 = vmatprep.mubr.bf16.mxu0 0
  %1097 = vmatmul.mubr.bf16.gmra.mxu0 %v1054
  %v1098 = vpop.f32.mrf.mxu0
  %v1099 = vadd.f32 %v1014, %v1098
  %v1100 = vpop.f32.mrf.mxu0
  %v1101 = vpop.f32.mrf.mxu0
  %v1102 = vadd.f32 %v1017, %v1101
  %v1103 = vpop.f32.mrf.mxu0
  %1104 = vdwg.mxu0
  %v1105 = vlaneseq
  %v1106 = vshrl.u32 %v1105, 7
  %v1107 = vsub.s32 4, %v1106
  %v1108 = vrot.slane %v42, %v1107
  %v1109 = vadd.f32 %v1091, %v1108
  %v1110 = vadd.f32 %v1094, %v1108
  %v1111 = vadd.f32 %v1099, %v1108
  %v1112 = vadd.f32 %v1102, %v1108
  %v1113 = vpack.c.bf16 %v1110, %v1109
  %v1114 = vpack.c.bf16 %v1112, %v1111
  %v1115 = vld [vmem:[%s3] sm:$0xf]
  %v1116 = vld [vmem:[%s3 + $0x4] sm:$0xf]
  %v1117 = vld [vmem:[%s3 + $0x8] sm:$0xf]
  %v1118 = vld [vmem:[%s3 + $0xc] sm:$0xf]
  %v1119 = vlaneseq
  %v1120 = vshrl.u32 %v1119, 7
  %v1121 = vsub.s32 5, %v1120
  %v1122 = vrot.slane %v42, %v1121
  %v1127 = vunpack.c.l.b16 %v1115
  %v1128 = vunpack.c.l.b16 %v1116
  %v1129 = vunpack.c.l.b16 %v1117
  %v1130 = vunpack.c.l.b16 %v1118
  %v1131 = vpack.c.b16 %v1128, %v1127
  %v1132 = vpack.c.b16 %v1130, %v1129
  %v1136 = vsel %vm163, %v1113, 0
  %v1139 = vsel %vm163, %v1114, 0
  %1141 = vmatprep.subr.bf16.mxu0 0
  %1142 = vmatpush1.bf16.msra.mxu0 0
  %1143 = vmatprep.subr.bf16.mxu0 0
  %1144 = vmatpush1.bf16.msra.mxu0 0
  %1145 = vmatprep.subr.bf16.mxu0 0
  %1146 = vmatpush1.bf16.msra.mxu0 0
  %1147 = vmatprep.subr.bf16.mxu0 0
  %1148 = vmatpush1.bf16.msra.mxu0 0
  %1149 = vmatprep.subr.bf16.mxu0 0
  %1150 = vmatpush1.bf16.msra.mxu0 0
  %1151 = vmatprep.subr.bf16.mxu0 0
  %1152 = vmatpush1.bf16.msra.mxu0 0
  %1153 = vmatprep.subr.bf16.mxu0 0
  %1154 = vmatpush1.bf16.msra.mxu0 %v1132
  %1155 = vmatprep.subr.bf16.mxu0 0
  %1156 = vmatpush1.bf16.msra.mxu0 %v1131
  %1157 = vmatprep.subr.bf16.mxu0 0
  %1158 = vmatpush2.bf16.msra.mxu0 0
  %1159 = vmatprep.subr.bf16.mxu0 0
  %1160 = vmatpush2.bf16.msra.mxu0 0
  %1161 = vmatprep.subr.bf16.mxu0 0
  %1162 = vmatpush2.bf16.msra.mxu0 0
  %1163 = vmatprep.subr.bf16.mxu0 0
  %1164 = vmatpush2.bf16.msra.mxu0 0
  %1165 = vmatprep.subr.bf16.mxu0 0
  %1166 = vmatpush2.bf16.msra.mxu0 0
  %1167 = vmatprep.subr.bf16.mxu0 0
  %1168 = vmatpush2.bf16.msra.mxu0 0
  %1169 = vmatprep.subr.bf16.mxu0 0
  %1170 = vmatpush2.bf16.msra.mxu0 0
  %1171 = vmatprep.subr.bf16.mxu0 0
  %1172 = vmatpush2.bf16.msra.mxu0 0
  %1173 = vmatprep.mubr.bf16.mxu0 0
  %1174 = vmatmul.mubr.bf16.gmra.mxu0 %v1136
  %v1175 = vpop.f32.mrf.mxu0
  %v1176 = vadd.f32 %v1122, %v1175
  %v1177 = vpop.f32.mrf.mxu0
  %v1178 = vpop.f32.mrf.mxu0
  %v1179 = vadd.f32 %v1122, %v1178
  %v1180 = vpop.f32.mrf.mxu0
  %1181 = vmatprep.mubr.bf16.mxu0 0
  %1182 = vmatmul.mubr.bf16.gmra.mxu0 %v1139
  %v1183 = vpop.f32.mrf.mxu0
  %v1184 = vadd.f32 %v1122, %v1183
  %v1185 = vpop.f32.mrf.mxu0
  %v1186 = vpop.f32.mrf.mxu0
  %v1187 = vadd.f32 %v1122, %v1186
  %v1188 = vpop.f32.mrf.mxu0
  %1189 = vdwg.mxu0
  %v1190 = vadd.f32 %v159, %v1176
  %v1191 = vadd.f32 %v160, %v1179
  %v1192 = vadd.f32 %v161, %v1184
  %v1193 = vadd.f32 %v162, %v1187
  %v1194 = vsel %vm163, %v1190, 0.0
  %1195 = vadd.xlane.f32.xlu0 %v1194
  %v1196 = vpop.xlane.xlu0 %1195
  %v1197 = vsel %vm163, %v1191, 0.0
  %1198 = vadd.xlane.f32.xlu0 %v1197
  %v1199 = vpop.xlane.xlu0 %1198
  %v1200 = vsel %vm163, %v1192, 0.0
  %1201 = vadd.xlane.f32.xlu0 %v1200
  %v1202 = vpop.xlane.xlu0 %1201
  %v1203 = vsel %vm163, %v1193, 0.0
  %1204 = vadd.xlane.f32.xlu0 %v1203
  %v1205 = vpop.xlane.xlu0 %1204
  %v1206 = vmul.f32 %v1196, %v176
  %v1207 = vmul.f32 %v1199, %v176
  %v1208 = vmul.f32 %v1202, %v176
  %v1209 = vmul.f32 %v1205, %v176
  %v1210 = vsub.f32 %v1190, %v1206
  %v1211 = vsub.f32 %v1191, %v1207
  %v1212 = vsub.f32 %v1192, %v1208
  %v1213 = vsub.f32 %v1193, %v1209
  %v1214 = vmul.f32 %v1210, %v1210
  %v1215 = vmul.f32 %v1211, %v1211
  %v1216 = vmul.f32 %v1212, %v1212
  %v1217 = vmul.f32 %v1213, %v1213
  %v1218 = vsel %vm163, %v1214, 0.0
  %1219 = vadd.xlane.f32.xlu0 %v1218
  %v1220 = vpop.xlane.xlu0 %1219
  %v1221 = vsel %vm163, %v1215, 0.0
  %1222 = vadd.xlane.f32.xlu0 %v1221
  %v1223 = vpop.xlane.xlu0 %1222
  %v1224 = vsel %vm163, %v1216, 0.0
  %1225 = vadd.xlane.f32.xlu0 %v1224
  %v1226 = vpop.xlane.xlu0 %1225
  %v1227 = vsel %vm163, %v1217, 0.0
  %1228 = vadd.xlane.f32.xlu0 %v1227
  %v1229 = vpop.xlane.xlu0 %1228
  %v1230 = vmul.f32 %v1220, %v176
  %v1231 = vmul.f32 %v1223, %v176
  %v1232 = vmul.f32 %v1226, %v176
  %v1233 = vmul.f32 %v1229, %v176
  %v1234 = vadd.f32 %v1230, 1e-05
  %v1235 = vadd.f32 %v1231, 1e-05
  %v1236 = vadd.f32 %v1232, 1e-05
  %v1237 = vadd.f32 %v1233, 1e-05
  %v1238 = vrsqrt.pop %v1234
  %v1239 = vrsqrt.pop %v1235
  %v1240 = vrsqrt.pop %v1236
  %v1241 = vrsqrt.pop %v1237
  %v1242 = vmul.f32 %v1210, %v1238
  %v1243 = vmul.f32 %v1211, %v1239
  %v1244 = vmul.f32 %v1212, %v1240
  %v1245 = vmul.f32 %v1213, %v1241
  %v1246 = vlaneseq
  %v1247 = vshrl.u32 %v1246, 7
  %v1248 = vsub.s32 6, %v1247
  %v1249 = vrot.slane %v42, %v1248
  %v1250 = vmul.f32 %v1242, %v1249
  %v1251 = vmul.f32 %v1243, %v1249
  %v1252 = vmul.f32 %v1244, %v1249
  %v1253 = vmul.f32 %v1245, %v1249
  %v1254 = vlaneseq
  %v1255 = vshrl.u32 %v1254, 7
  %v1256 = vsub.s32 7, %v1255
  %v1257 = vrot.slane %v42, %v1256
  %v1258 = vadd.f32 %v1250, %v1257
  %v1259 = vadd.f32 %v1251, %v1257
  %v1260 = vadd.f32 %v1252, %v1257
  %v1261 = vadd.f32 %v1253, %v1257
  %v1262 = vpack.c.bf16 %v1259, %v1258
  %v1263 = vpack.c.bf16 %v1261, %v1260
  %v1264 = vld [vmem:[%s7] sm:$0xf]
  %v1265 = vld [vmem:[%s7 + $0x4] sm:$0xf]
  %v1266 = vld [vmem:[%s7 + $0x8] sm:$0xf]
  %v1267 = vld [vmem:[%s7 + $0xc] sm:$0xf]
  %v1268 = vlaneseq
  %v1269 = vshrl.u32 %v1268, 7
  %v1270 = vsub.s32 0, %v1269
  %v1271 = vrot.slane %v43, %v1270
  %v1276 = vunpack.c.l.b16 %v1264
  %v1277 = vunpack.c.l.b16 %v1265
  %v1278 = vunpack.c.l.b16 %v1266
  %v1279 = vunpack.c.l.b16 %v1267
  %v1280 = vpack.c.b16 %v1277, %v1276
  %v1281 = vpack.c.b16 %v1279, %v1278
  %v1285 = vsel %vm163, %v1262, 0
  %v1288 = vsel %vm163, %v1263, 0
  %1290 = vmatprep.subr.bf16.mxu0 0
  %1291 = vmatpush1.bf16.msra.mxu0 0
  %1292 = vmatprep.subr.bf16.mxu0 0
  %1293 = vmatpush1.bf16.msra.mxu0 0
  %1294 = vmatprep.subr.bf16.mxu0 0
  %1295 = vmatpush1.bf16.msra.mxu0 0
  %1296 = vmatprep.subr.bf16.mxu0 0
  %1297 = vmatpush1.bf16.msra.mxu0 0
  %1298 = vmatprep.subr.bf16.mxu0 0
  %1299 = vmatpush1.bf16.msra.mxu0 0
  %1300 = vmatprep.subr.bf16.mxu0 0
  %1301 = vmatpush1.bf16.msra.mxu0 0
  %1302 = vmatprep.subr.bf16.mxu0 0
  %1303 = vmatpush1.bf16.msra.mxu0 %v1281
  %1304 = vmatprep.subr.bf16.mxu0 0
  %1305 = vmatpush1.bf16.msra.mxu0 %v1280
  %1306 = vmatprep.subr.bf16.mxu0 0
  %1307 = vmatpush2.bf16.msra.mxu0 0
  %1308 = vmatprep.subr.bf16.mxu0 0
  %1309 = vmatpush2.bf16.msra.mxu0 0
  %1310 = vmatprep.subr.bf16.mxu0 0
  %1311 = vmatpush2.bf16.msra.mxu0 0
  %1312 = vmatprep.subr.bf16.mxu0 0
  %1313 = vmatpush2.bf16.msra.mxu0 0
  %1314 = vmatprep.subr.bf16.mxu0 0
  %1315 = vmatpush2.bf16.msra.mxu0 0
  %1316 = vmatprep.subr.bf16.mxu0 0
  %1317 = vmatpush2.bf16.msra.mxu0 0
  %1318 = vmatprep.subr.bf16.mxu0 0
  %1319 = vmatpush2.bf16.msra.mxu0 0
  %1320 = vmatprep.subr.bf16.mxu0 0
  %1321 = vmatpush2.bf16.msra.mxu0 0
  %1322 = vmatprep.mubr.bf16.mxu0 0
  %1323 = vmatmul.mubr.bf16.gmra.mxu0 %v1285
  %v1324 = vpop.f32.mrf.mxu0
  %v1325 = vadd.f32 %v1271, %v1324
  %v1326 = vpop.f32.mrf.mxu0
  %v1327 = vpop.f32.mrf.mxu0
  %v1328 = vadd.f32 %v1271, %v1327
  %v1329 = vpop.f32.mrf.mxu0
  %1330 = vmatprep.mubr.bf16.mxu0 0
  %1331 = vmatmul.mubr.bf16.gmra.mxu0 %v1288
  %v1332 = vpop.f32.mrf.mxu0
  %v1333 = vadd.f32 %v1271, %v1332
  %v1334 = vpop.f32.mrf.mxu0
  %v1335 = vpop.f32.mrf.mxu0
  %v1336 = vadd.f32 %v1271, %v1335
  %v1337 = vpop.f32.mrf.mxu0
  %1338 = vdwg.mxu0
  %v1339 = vmul.f32 %v1325, 0.5
  %v1340 = vmul.f32 %v1328, 0.5
  %v1341 = vmul.f32 %v1333, 0.5
  %v1342 = vmul.f32 %v1336, 0.5
  %v1343 = vmul.f32 %v1325, 0.70710677
  %v1344 = vmul.f32 %v1328, 0.70710677
  %v1345 = vmul.f32 %v1333, 0.70710677
  %v1346 = vmul.f32 %v1336, 0.70710677
  %v1347 = vand.u32 2147483647, %v1343
  %v1348 = vand.u32 2147483647, %v1344
  %v1349 = vand.u32 2147483647, %v1345
  %v1350 = vand.u32 2147483647, %v1346
  %v1351 = vmul.f32 %v1347, 0.3275911
  %v1352 = vmul.f32 %v1348, 0.3275911
  %v1353 = vmul.f32 %v1349, 0.3275911
  %v1354 = vmul.f32 %v1350, 0.3275911
  %v1355 = vadd.f32 %v1351, 1.0
  %v1356 = vadd.f32 %v1352, 1.0
  %v1357 = vadd.f32 %v1353, 1.0
  %v1358 = vadd.f32 %v1354, 1.0
  %v1359 = vrcp.pop %v1355
  %v1360 = vrcp.pop %v1356
  %v1361 = vrcp.pop %v1357
  %v1362 = vrcp.pop %v1358
  %v1363 = vmul.f32 %v1359, 1.0614054
  %v1364 = vmul.f32 %v1360, 1.0614054
  %v1365 = vmul.f32 %v1361, 1.0614054
  %v1366 = vmul.f32 %v1362, 1.0614054
  %v1367 = vadd.f32 %v1363, -1.4531521
  %v1368 = vadd.f32 %v1364, -1.4531521
  %v1369 = vadd.f32 %v1365, -1.4531521
  %v1370 = vadd.f32 %v1366, -1.4531521
  %v1371 = vmul.f32 %v1367, %v1359
  %v1372 = vmul.f32 %v1368, %v1360
  %v1373 = vmul.f32 %v1369, %v1361
  %v1374 = vmul.f32 %v1370, %v1362
  %v1375 = vadd.f32 %v1371, 1.4214138
  %v1376 = vadd.f32 %v1372, 1.4214138
  %v1377 = vadd.f32 %v1373, 1.4214138
  %v1378 = vadd.f32 %v1374, 1.4214138
  %v1379 = vmul.f32 %v1375, %v1359
  %v1380 = vmul.f32 %v1376, %v1360
  %v1381 = vmul.f32 %v1377, %v1361
  %v1382 = vmul.f32 %v1378, %v1362
  %v1383 = vadd.f32 %v1379, -0.28449672
  %v1384 = vadd.f32 %v1380, -0.28449672
  %v1385 = vadd.f32 %v1381, -0.28449672
  %v1386 = vadd.f32 %v1382, -0.28449672
  %v1387 = vmul.f32 %v1383, %v1359
  %v1388 = vmul.f32 %v1384, %v1360
  %v1389 = vmul.f32 %v1385, %v1361
  %v1390 = vmul.f32 %v1386, %v1362
  %v1391 = vadd.f32 %v1387, 0.2548296
  %v1392 = vadd.f32 %v1388, 0.2548296
  %v1393 = vadd.f32 %v1389, 0.2548296
  %v1394 = vadd.f32 %v1390, 0.2548296
  %v1395 = vmul.f32 %v1391, %v1359
  %v1396 = vmul.f32 %v1392, %v1360
  %v1397 = vmul.f32 %v1393, %v1361
  %v1398 = vmul.f32 %v1394, %v1362
  %v1399 = vsub.f32 0.0, %v1347
  %v1400 = vsub.f32 0.0, %v1348
  %v1401 = vsub.f32 0.0, %v1349
  %v1402 = vsub.f32 0.0, %v1350
  %v1403 = vmul.f32 %v1399, %v1347
  %v1404 = vmul.f32 %v1400, %v1348
  %v1405 = vmul.f32 %v1401, %v1349
  %v1406 = vmul.f32 %v1402, %v1350
  %v1407 = vmul.f32 %v1403, 1.442695
  %v1408 = vpow.pop %v1407
  %v1409 = vmul.f32 %v1404, 1.442695
  %v1410 = vpow.pop %v1409
  %v1411 = vmul.f32 %v1405, 1.442695
  %v1412 = vpow.pop %v1411
  %v1413 = vmul.f32 %v1406, 1.442695
  %v1414 = vpow.pop %v1413
  %v1415 = vmul.f32 %v1395, %v1408
  %v1416 = vmul.f32 %v1396, %v1410
  %v1417 = vmul.f32 %v1397, %v1412
  %v1418 = vmul.f32 %v1398, %v1414
  %v1419 = vsub.f32 1.0, %v1415
  %v1420 = vsub.f32 1.0, %v1416
  %v1421 = vsub.f32 1.0, %v1417
  %v1422 = vsub.f32 1.0, %v1418
  %vm1423 = vcmp.ge.f32.partialorder %v1343, 0.0
  %vm1424 = vcmp.ge.f32.partialorder %v1344, 0.0
  %vm1425 = vcmp.ge.f32.partialorder %v1345, 0.0
  %vm1426 = vcmp.ge.f32.partialorder %v1346, 0.0
  %v1427 = vsub.f32 0.0, %v1419
  %v1428 = vsub.f32 0.0, %v1420
  %v1429 = vsub.f32 0.0, %v1421
  %v1430 = vsub.f32 0.0, %v1422
  %v1431 = vsel %vm1423, %v1419, %v1427
  %v1432 = vsel %vm1424, %v1420, %v1428
  %v1433 = vsel %vm1425, %v1421, %v1429
  %v1434 = vsel %vm1426, %v1422, %v1430
  %v1435 = vadd.f32 %v1431, 1.0
  %v1436 = vadd.f32 %v1432, 1.0
  %v1437 = vadd.f32 %v1433, 1.0
  %v1438 = vadd.f32 %v1434, 1.0
  %v1439 = vmul.f32 %v1339, %v1435
  %v1440 = vmul.f32 %v1340, %v1436
  %v1441 = vmul.f32 %v1341, %v1437
  %v1442 = vmul.f32 %v1342, %v1438
  %v1443 = vpack.c.bf16 %v1440, %v1439
  %v1444 = vpack.c.bf16 %v1442, %v1441
  %v1445 = vld [vmem:[%s8] sm:$0xf]
  %v1446 = vld [vmem:[%s8 + $0x4] sm:$0xf]
  %v1447 = vld [vmem:[%s8 + $0x8] sm:$0xf]
  %v1448 = vld [vmem:[%s8 + $0xc] sm:$0xf]
  %v1449 = vld [vmem:[%s8 + $0x10] sm:$0xf]
  %v1450 = vld [vmem:[%s8 + $0x14] sm:$0xf]
  %v1451 = vld [vmem:[%s8 + $0x18] sm:$0xf]
  %v1452 = vld [vmem:[%s8 + $0x1c] sm:$0xf]
  %v1453 = vld [vmem:[%s8 + $0x20] sm:$0xf]
  %v1454 = vld [vmem:[%s8 + $0x24] sm:$0xf]
  %v1455 = vld [vmem:[%s8 + $0x28] sm:$0xf]
  %v1456 = vld [vmem:[%s8 + $0x2c] sm:$0xf]
  %v1457 = vld [vmem:[%s8 + $0x30] sm:$0xf]
  %v1458 = vld [vmem:[%s8 + $0x34] sm:$0xf]
  %v1459 = vld [vmem:[%s8 + $0x38] sm:$0xf]
  %v1460 = vld [vmem:[%s8 + $0x3c] sm:$0xf]
  %v1461 = vlaneseq
  %v1462 = vshrl.u32 %v1461, 7
  %v1463 = vsub.s32 1, %v1462
  %v1464 = vrot.slane %v43, %v1463
  %v1481 = vunpack.c.l.b16 %v1445
  %v1482 = vunpack.c.l.b16 %v1446
  %v1483 = vunpack.c.l.b16 %v1447
  %v1484 = vunpack.c.l.b16 %v1448
  %v1485 = vunpack.c.l.b16 %v1449
  %v1486 = vunpack.c.l.b16 %v1450
  %v1487 = vunpack.c.l.b16 %v1451
  %v1488 = vunpack.c.l.b16 %v1452
  %v1489 = vunpack.c.l.b16 %v1453
  %v1490 = vunpack.c.l.b16 %v1454
  %v1491 = vunpack.c.l.b16 %v1455
  %v1492 = vunpack.c.l.b16 %v1456
  %v1493 = vunpack.c.l.b16 %v1457
  %v1494 = vunpack.c.l.b16 %v1458
  %v1495 = vunpack.c.l.b16 %v1459
  %v1496 = vunpack.c.l.b16 %v1460
  %v1497 = vpack.c.b16 %v1482, %v1481
  %v1498 = vpack.c.b16 %v1484, %v1483
  %v1499 = vpack.c.b16 %v1486, %v1485
  %v1500 = vpack.c.b16 %v1488, %v1487
  %v1501 = vpack.c.b16 %v1490, %v1489
  %v1502 = vpack.c.b16 %v1492, %v1491
  %v1503 = vpack.c.b16 %v1494, %v1493
  %v1504 = vpack.c.b16 %v1496, %v1495
  %1513 = vmatprep.subr.bf16.mxu0 0
  %1514 = vmatpush1.bf16.msra.mxu0 %v1504
  %1515 = vmatprep.subr.bf16.mxu0 0
  %1516 = vmatpush1.bf16.msra.mxu0 %v1503
  %1517 = vmatprep.subr.bf16.mxu0 0
  %1518 = vmatpush1.bf16.msra.mxu0 %v1502
  %1519 = vmatprep.subr.bf16.mxu0 0
  %1520 = vmatpush1.bf16.msra.mxu0 %v1501
  %1521 = vmatprep.subr.bf16.mxu0 0
  %1522 = vmatpush1.bf16.msra.mxu0 %v1500
  %1523 = vmatprep.subr.bf16.mxu0 0
  %1524 = vmatpush1.bf16.msra.mxu0 %v1499
  %1525 = vmatprep.subr.bf16.mxu0 0
  %1526 = vmatpush1.bf16.msra.mxu0 %v1498
  %1527 = vmatprep.subr.bf16.mxu0 0
  %1528 = vmatpush1.bf16.msra.mxu0 %v1497
  %1529 = vmatprep.subr.bf16.mxu0 0
  %1530 = vmatpush2.bf16.msra.mxu0 0
  %1531 = vmatprep.subr.bf16.mxu0 0
  %1532 = vmatpush2.bf16.msra.mxu0 0
  %1533 = vmatprep.subr.bf16.mxu0 0
  %1534 = vmatpush2.bf16.msra.mxu0 0
  %1535 = vmatprep.subr.bf16.mxu0 0
  %1536 = vmatpush2.bf16.msra.mxu0 0
  %1537 = vmatprep.subr.bf16.mxu0 0
  %1538 = vmatpush2.bf16.msra.mxu0 0
  %1539 = vmatprep.subr.bf16.mxu0 0
  %1540 = vmatpush2.bf16.msra.mxu0 0
  %1541 = vmatprep.subr.bf16.mxu0 0
  %1542 = vmatpush2.bf16.msra.mxu0 0
  %1543 = vmatprep.subr.bf16.mxu0 0
  %1544 = vmatpush2.bf16.msra.mxu0 0
  %1545 = vmatprep.mubr.bf16.mxu0 0
  %1546 = vmatmul.mubr.bf16.gmra.mxu0 %v1443
  %v1547 = vpop.f32.mrf.mxu0
  %v1548 = vadd.f32 %v1464, %v1547
  %v1549 = vpop.f32.mrf.mxu0
  %v1550 = vpop.f32.mrf.mxu0
  %v1551 = vadd.f32 %v1464, %v1550
  %v1552 = vpop.f32.mrf.mxu0
  %1553 = vmatprep.mubr.bf16.mxu0 0
  %1554 = vmatmul.mubr.bf16.gmra.mxu0 %v1444
  %v1555 = vpop.f32.mrf.mxu0
  %v1556 = vadd.f32 %v1464, %v1555
  %v1557 = vpop.f32.mrf.mxu0
  %v1558 = vpop.f32.mrf.mxu0
  %v1559 = vadd.f32 %v1464, %v1558
  %v1560 = vpop.f32.mrf.mxu0
  %1561 = vdwg.mxu0
  %v1562 = vadd.f32 %v1190, %v1548
  %v1563 = vadd.f32 %v1191, %v1551
  %v1564 = vadd.f32 %v1192, %v1556
  %v1565 = vadd.f32 %v1193, %v1559
  %v1566 = vsel %vm163, %v1562, 0.0
  %1567 = vadd.xlane.f32.xlu0 %v1566
  %v1568 = vpop.xlane.xlu0 %1567
  %v1569 = vsel %vm163, %v1563, 0.0
  %1570 = vadd.xlane.f32.xlu0 %v1569
  %v1571 = vpop.xlane.xlu0 %1570
  %v1572 = vsel %vm163, %v1564, 0.0
  %1573 = vadd.xlane.f32.xlu0 %v1572
  %v1574 = vpop.xlane.xlu0 %1573
  %v1575 = vsel %vm163, %v1565, 0.0
  %1576 = vadd.xlane.f32.xlu0 %v1575
  %v1577 = vpop.xlane.xlu0 %1576
  %v1578 = vmul.f32 %v1568, %v176
  %v1579 = vmul.f32 %v1571, %v176
  %v1580 = vmul.f32 %v1574, %v176
  %v1581 = vmul.f32 %v1577, %v176
  %v1582 = vsub.f32 %v1562, %v1578
  %v1583 = vsub.f32 %v1563, %v1579
  %v1584 = vsub.f32 %v1564, %v1580
  %v1585 = vsub.f32 %v1565, %v1581
  %v1586 = vmul.f32 %v1582, %v1582
  %v1587 = vmul.f32 %v1583, %v1583
  %v1588 = vmul.f32 %v1584, %v1584
  %v1589 = vmul.f32 %v1585, %v1585
  %v1590 = vsel %vm163, %v1586, 0.0
  %1591 = vadd.xlane.f32.xlu0 %v1590
  %v1592 = vpop.xlane.xlu0 %1591
  %v1593 = vsel %vm163, %v1587, 0.0
  %1594 = vadd.xlane.f32.xlu0 %v1593
  %v1595 = vpop.xlane.xlu0 %1594
  %v1596 = vsel %vm163, %v1588, 0.0
  %1597 = vadd.xlane.f32.xlu0 %v1596
  %v1598 = vpop.xlane.xlu0 %1597
  %v1599 = vsel %vm163, %v1589, 0.0
  %1600 = vadd.xlane.f32.xlu0 %v1599
  %v1601 = vpop.xlane.xlu0 %1600
  %v1602 = vmul.f32 %v1592, %v176
  %v1603 = vmul.f32 %v1595, %v176
  %v1604 = vmul.f32 %v1598, %v176
  %v1605 = vmul.f32 %v1601, %v176
  %v1606 = vadd.f32 %v1602, 1e-05
  %v1607 = vadd.f32 %v1603, 1e-05
  %v1608 = vadd.f32 %v1604, 1e-05
  %v1609 = vadd.f32 %v1605, 1e-05
  %v1610 = vrsqrt.pop %v1606
  %v1611 = vrsqrt.pop %v1607
  %v1612 = vrsqrt.pop %v1608
  %v1613 = vrsqrt.pop %v1609
  %v1614 = vmul.f32 %v1582, %v1610
  %v1615 = vmul.f32 %v1583, %v1611
  %v1616 = vmul.f32 %v1584, %v1612
  %v1617 = vmul.f32 %v1585, %v1613
  %v1618 = vlaneseq
  %v1619 = vshrl.u32 %v1618, 7
  %v1620 = vsub.s32 2, %v1619
  %v1621 = vrot.slane %v43, %v1620
  %v1622 = vmul.f32 %v1614, %v1621
  %v1623 = vmul.f32 %v1615, %v1621
  %v1624 = vmul.f32 %v1616, %v1621
  %v1625 = vmul.f32 %v1617, %v1621
  %v1626 = vlaneseq
  %v1627 = vshrl.u32 %v1626, 7
  %v1628 = vsub.s32 3, %v1627
  %v1629 = vrot.slane %v43, %v1628
  %v1630 = vadd.f32 %v1622, %v1629
  %v1631 = vadd.f32 %v1623, %v1629
  %v1632 = vadd.f32 %v1624, %v1629
  %v1633 = vadd.f32 %v1625, %v1629
  %v1634 = vpack.c.bf16 %v1631, %v1630
  %v1635 = vpack.c.bf16 %v1633, %v1632
  %s1636 = scalar_lea.vmem %s4, 16
  %v1637 = vld [vmem:[%s1636] sm:$0xf]
  %v1638 = vld [vmem:[%s1636 + $0x4] sm:$0xf]
  %v1639 = vld [vmem:[%s1636 + $0x8] sm:$0xf]
  %v1640 = vld [vmem:[%s1636 + $0xc] sm:$0xf]
  %v1641 = vlaneseq
  %v1642 = vshrl.u32 %v1641, 7
  %v1643 = vsub.s32 4, %v1642
  %v1644 = vrot.slane %v43, %v1643
  %v1649 = vunpack.c.l.b16 %v1637
  %v1650 = vunpack.c.l.b16 %v1638
  %v1651 = vunpack.c.l.b16 %v1639
  %v1652 = vunpack.c.l.b16 %v1640
  %v1653 = vpack.c.b16 %v1650, %v1649
  %v1654 = vpack.c.b16 %v1652, %v1651
  %v1658 = vsel %vm163, %v1634, 0
  %v1661 = vsel %vm163, %v1635, 0
  %1663 = vmatprep.subr.bf16.mxu0 0
  %1664 = vmatpush1.bf16.msra.mxu0 0
  %1665 = vmatprep.subr.bf16.mxu0 0
  %1666 = vmatpush1.bf16.msra.mxu0 0
  %1667 = vmatprep.subr.bf16.mxu0 0
  %1668 = vmatpush1.bf16.msra.mxu0 0
  %1669 = vmatprep.subr.bf16.mxu0 0
  %1670 = vmatpush1.bf16.msra.mxu0 0
  %1671 = vmatprep.subr.bf16.mxu0 0
  %1672 = vmatpush1.bf16.msra.mxu0 0
  %1673 = vmatprep.subr.bf16.mxu0 0
  %1674 = vmatpush1.bf16.msra.mxu0 0
  %1675 = vmatprep.subr.bf16.mxu0 0
  %1676 = vmatpush1.bf16.msra.mxu0 %v1654
  %1677 = vmatprep.subr.bf16.mxu0 0
  %1678 = vmatpush1.bf16.msra.mxu0 %v1653
  %1679 = vmatprep.subr.bf16.mxu0 0
  %1680 = vmatpush2.bf16.msra.mxu0 0
  %1681 = vmatprep.subr.bf16.mxu0 0
  %1682 = vmatpush2.bf16.msra.mxu0 0
  %1683 = vmatprep.subr.bf16.mxu0 0
  %1684 = vmatpush2.bf16.msra.mxu0 0
  %1685 = vmatprep.subr.bf16.mxu0 0
  %1686 = vmatpush2.bf16.msra.mxu0 0
  %1687 = vmatprep.subr.bf16.mxu0 0
  %1688 = vmatpush2.bf16.msra.mxu0 0
  %1689 = vmatprep.subr.bf16.mxu0 0
  %1690 = vmatpush2.bf16.msra.mxu0 0
  %1691 = vmatprep.subr.bf16.mxu0 0
  %1692 = vmatpush2.bf16.msra.mxu0 0
  %1693 = vmatprep.subr.bf16.mxu0 0
  %1694 = vmatpush2.bf16.msra.mxu0 0
  %1695 = vmatprep.mubr.bf16.mxu0 0
  %1696 = vmatmul.mubr.bf16.gmra.mxu0 %v1658
  %v1697 = vpop.f32.mrf.mxu0
  %v1698 = vadd.f32 %v1644, %v1697
  %v1699 = vpop.f32.mrf.mxu0
  %v1700 = vpop.f32.mrf.mxu0
  %v1701 = vadd.f32 %v1644, %v1700
  %v1702 = vpop.f32.mrf.mxu0
  %1703 = vmatprep.mubr.bf16.mxu0 0
  %1704 = vmatmul.mubr.bf16.gmra.mxu0 %v1661
  %v1705 = vpop.f32.mrf.mxu0
  %v1706 = vadd.f32 %v1644, %v1705
  %v1707 = vpop.f32.mrf.mxu0
  %v1708 = vpop.f32.mrf.mxu0
  %v1709 = vadd.f32 %v1644, %v1708
  %v1710 = vpop.f32.mrf.mxu0
  %1711 = vdwg.mxu0
  %v1712 = vmul.f32 %v1698, %v1698
  %v1713 = vmul.f32 %v1701, %v1701
  %v1714 = vmul.f32 %v1706, %v1706
  %v1715 = vmul.f32 %v1709, %v1709
  %v1716 = vpack.c.bf16 %v1713, %v1712
  %v1717 = vpack.c.bf16 %v1715, %v1714
  %v1719 = vsel %vm99, %v1716, 0
  %v1722 = vsel %vm99, %v1717, 0
  %1724 = vmatprep.subr.bf16.mxu0 0
  %1725 = vmatpush1.bf16.msra.mxu0 0
  %1726 = vmatprep.subr.bf16.mxu0 0
  %1727 = vmatpush1.bf16.msra.mxu0 0
  %1728 = vmatprep.subr.bf16.mxu0 0
  %1729 = vmatpush1.bf16.msra.mxu0 0
  %1730 = vmatprep.subr.bf16.mxu0 0
  %1731 = vmatpush1.bf16.msra.mxu0 0
  %1732 = vmatprep.subr.bf16.mxu0 0
  %1733 = vmatpush1.bf16.msra.mxu0 %v335
  %1734 = vmatprep.subr.bf16.mxu0 0
  %1735 = vmatpush1.bf16.msra.mxu0 %v334
  %1736 = vmatprep.subr.bf16.mxu0 0
  %1737 = vmatpush1.bf16.msra.mxu0 %v333
  %1738 = vmatprep.subr.bf16.mxu0 0
  %1739 = vmatpush1.bf16.msra.mxu0 %v332
  %1740 = vmatprep.subr.bf16.mxu0 0
  %1741 = vmatpush2.bf16.msra.mxu0 0
  %1742 = vmatprep.subr.bf16.mxu0 0
  %1743 = vmatpush2.bf16.msra.mxu0 0
  %1744 = vmatprep.subr.bf16.mxu0 0
  %1745 = vmatpush2.bf16.msra.mxu0 0
  %1746 = vmatprep.subr.bf16.mxu0 0
  %1747 = vmatpush2.bf16.msra.mxu0 0
  %1748 = vmatprep.subr.bf16.mxu0 0
  %1749 = vmatpush2.bf16.msra.mxu0 0
  %1750 = vmatprep.subr.bf16.mxu0 0
  %1751 = vmatpush2.bf16.msra.mxu0 0
  %1752 = vmatprep.subr.bf16.mxu0 0
  %1753 = vmatpush2.bf16.msra.mxu0 0
  %1754 = vmatprep.subr.bf16.mxu0 0
  %1755 = vmatpush2.bf16.msra.mxu0 0
  %1756 = vmatprep.mubr.bf16.mxu0 0
  %1757 = vmatmul.mubr.bf16.gmra.mxu0 %v1719
  %v1758 = vpop.f32.mrf.mxu0
  %v1759 = vadd.f32 0.0, %v1758
  %v1760 = vpop.f32.mrf.mxu0
  %v1761 = vpop.f32.mrf.mxu0
  %v1762 = vadd.f32 0.0, %v1761
  %v1763 = vpop.f32.mrf.mxu0
  %1764 = vmatprep.mubr.bf16.mxu0 0
  %1765 = vmatmul.mubr.bf16.gmra.mxu0 %v1722
  %v1766 = vpop.f32.mrf.mxu0
  %v1767 = vadd.f32 0.0, %v1766
  %v1768 = vpop.f32.mrf.mxu0
  %v1769 = vpop.f32.mrf.mxu0
  %v1770 = vadd.f32 0.0, %v1769
  %v1771 = vpop.f32.mrf.mxu0
  %1772 = vdwg.mxu0
  %v1773 = vmax.f32 %v1759, 1e-24
  %v1774 = vmax.f32 %v1762, 1e-24
  %v1775 = vmax.f32 %v1767, 1e-24
  %v1776 = vmax.f32 %v1770, 1e-24
  %v1777 = vrsqrt.pop %v1773
  %v1778 = vrsqrt.pop %v1774
  %v1779 = vrsqrt.pop %v1775
  %v1780 = vrsqrt.pop %v1776
  %v1781 = vmul.f32 %v1698, %v1777
  %v1782 = vmul.f32 %v1701, %v1778
  %v1783 = vmul.f32 %v1706, %v1779
  %v1784 = vmul.f32 %v1709, %v1780
  %s1785 = scalar_lea.vmem %s5, 16
  %v1786 = vld [vmem:[%s1785] sm:$0xf]
  %v1787 = vld [vmem:[%s1785 + $0x4] sm:$0xf]
  %s1788 = scalar_lea.vmem %s5, 24
  %v1789 = vld [vmem:[%s1788] sm:$0xf]
  %v1790 = vld [vmem:[%s1788 + $0x4] sm:$0xf]
  %1791 = vxpose.xlu0.b32.start [1/16] %v1630, 128
  %1792 = vxpose.xlu0.b32.cont [2/16] %v1631, 128
  %1793 = vxpose.xlu0.b32.cont [3/16] 0.0, 128
  %1794 = vxpose.xlu0.b32.cont [4/16] 0.0, 128
  %1795 = vxpose.xlu0.b32.cont [5/16] 0.0, 128
  %1796 = vxpose.xlu0.b32.cont [6/16] 0.0, 128
  %1797 = vxpose.xlu0.b32.cont [7/16] 0.0, 128
  %1798 = vxpose.xlu0.b32.cont [8/16] 0.0, 128
  %1799 = vxpose.xlu0.b32.cont [9/16] 0.0, 128
  %1800 = vxpose.xlu0.b32.cont [10/16] 0.0, 128
  %1801 = vxpose.xlu0.b32.cont [11/16] 0.0, 128
  %1802 = vxpose.xlu0.b32.cont [12/16] 0.0, 128
  %1803 = vxpose.xlu0.b32.cont [13/16] 0.0, 128
  %1804 = vxpose.xlu0.b32.cont [14/16] 0.0, 128
  %1805 = vxpose.xlu0.b32.cont [15/16] 0.0, 128
  %1806 = vxpose.xlu0.b32.end [16/16] 0.0, 128
  %v1807 = vpop.trf.xlu0
  %v1808 = vpop.trf.xlu0
  %v1809 = vpop.trf.xlu0
  %v1810 = vpop.trf.xlu0
  %v1811 = vpop.trf.xlu0
  %v1812 = vpop.trf.xlu0
  %v1813 = vpop.trf.xlu0
  %v1814 = vpop.trf.xlu0
  %v1815 = vpop.trf.xlu0
  %v1816 = vpop.trf.xlu0
  %v1817 = vpop.trf.xlu0
  %v1818 = vpop.trf.xlu0
  %v1819 = vpop.trf.xlu0
  %v1820 = vpop.trf.xlu0
  %v1821 = vpop.trf.xlu0
  %v1822 = vpop.trf.xlu0
  %v1823 = vpack.c.bf16 %v1808, %v1807
  %v1824 = vpack.c.bf16 %v1810, %v1809
  %v1827 = vunpack.c.l.b16 %v1786
  %v1828 = vunpack.c.l.b16 %v1787
  %v1829 = vpack.c.b16 %v1828, %v1827
  %v1832 = vsel %vm452, %v1823, 0
  %v1835 = vsel %vm452, %v1824, 0
  %1837 = vmatprep.subr.bf16.mxu0 0
  %1838 = vmatpush1.bf16.msra.mxu0 0
  %1839 = vmatprep.subr.bf16.mxu0 0
  %1840 = vmatpush1.bf16.msra.mxu0 0
  %1841 = vmatprep.subr.bf16.mxu0 0
  %1842 = vmatpush1.bf16.msra.mxu0 0
  %1843 = vmatprep.subr.bf16.mxu0 0
  %1844 = vmatpush1.bf16.msra.mxu0 0
  %1845 = vmatprep.subr.bf16.mxu0 0
  %1846 = vmatpush1.bf16.msra.mxu0 0
  %1847 = vmatprep.subr.bf16.mxu0 0
  %1848 = vmatpush1.bf16.msra.mxu0 0
  %1849 = vmatprep.subr.bf16.mxu0 0
  %1850 = vmatpush1.bf16.msra.mxu0 0
  %1851 = vmatprep.subr.bf16.mxu0 0
  %1852 = vmatpush1.bf16.msra.mxu0 %v1829
  %1853 = vmatprep.subr.bf16.mxu0 0
  %1854 = vmatpush2.bf16.msra.mxu0 0
  %1855 = vmatprep.subr.bf16.mxu0 0
  %1856 = vmatpush2.bf16.msra.mxu0 0
  %1857 = vmatprep.subr.bf16.mxu0 0
  %1858 = vmatpush2.bf16.msra.mxu0 0
  %1859 = vmatprep.subr.bf16.mxu0 0
  %1860 = vmatpush2.bf16.msra.mxu0 0
  %1861 = vmatprep.subr.bf16.mxu0 0
  %1862 = vmatpush2.bf16.msra.mxu0 0
  %1863 = vmatprep.subr.bf16.mxu0 0
  %1864 = vmatpush2.bf16.msra.mxu0 0
  %1865 = vmatprep.subr.bf16.mxu0 0
  %1866 = vmatpush2.bf16.msra.mxu0 0
  %1867 = vmatprep.subr.bf16.mxu0 0
  %1868 = vmatpush2.bf16.msra.mxu0 0
  %1869 = vmatprep.mubr.bf16.mxu0 0
  %1870 = vmatmul.mubr.bf16.gmra.mxu0 %v1832
  %v1871 = vpop.f32.mrf.mxu0
  %v1872 = vadd.f32 0.0, %v1871
  %v1873 = vpop.f32.mrf.mxu0
  %v1874 = vpop.f32.mrf.mxu0
  %v1875 = vadd.f32 0.0, %v1874
  %v1876 = vpop.f32.mrf.mxu0
  %1877 = vmatprep.mubr.bf16.mxu0 0
  %1878 = vmatmul.mubr.bf16.gmra.mxu0 %v1835
  %v1879 = vpop.f32.mrf.mxu0
  %v1880 = vadd.f32 0.0, %v1879
  %v1881 = vpop.f32.mrf.mxu0
  %v1882 = vpop.f32.mrf.mxu0
  %v1883 = vadd.f32 0.0, %v1882
  %v1884 = vpop.f32.mrf.mxu0
  %1885 = vdwg.mxu0
  %v1888 = vunpack.c.l.b16 %v1789
  %v1889 = vunpack.c.l.b16 %v1790
  %v1890 = vpack.c.b16 %v1889, %v1888
  %1892 = vmatprep.subr.bf16.mxu0 0
  %1893 = vmatpush1.bf16.msra.mxu0 0
  %1894 = vmatprep.subr.bf16.mxu0 0
  %1895 = vmatpush1.bf16.msra.mxu0 0
  %1896 = vmatprep.subr.bf16.mxu0 0
  %1897 = vmatpush1.bf16.msra.mxu0 0
  %1898 = vmatprep.subr.bf16.mxu0 0
  %1899 = vmatpush1.bf16.msra.mxu0 0
  %1900 = vmatprep.subr.bf16.mxu0 0
  %1901 = vmatpush1.bf16.msra.mxu0 0
  %1902 = vmatprep.subr.bf16.mxu0 0
  %1903 = vmatpush1.bf16.msra.mxu0 0
  %1904 = vmatprep.subr.bf16.mxu0 0
  %1905 = vmatpush1.bf16.msra.mxu0 0
  %1906 = vmatprep.subr.bf16.mxu0 0
  %1907 = vmatpush1.bf16.msra.mxu0 %v1890
  %1908 = vmatprep.subr.bf16.mxu0 0
  %1909 = vmatpush2.bf16.msra.mxu0 0
  %1910 = vmatprep.subr.bf16.mxu0 0
  %1911 = vmatpush2.bf16.msra.mxu0 0
  %1912 = vmatprep.subr.bf16.mxu0 0
  %1913 = vmatpush2.bf16.msra.mxu0 0
  %1914 = vmatprep.subr.bf16.mxu0 0
  %1915 = vmatpush2.bf16.msra.mxu0 0
  %1916 = vmatprep.subr.bf16.mxu0 0
  %1917 = vmatpush2.bf16.msra.mxu0 0
  %1918 = vmatprep.subr.bf16.mxu0 0
  %1919 = vmatpush2.bf16.msra.mxu0 0
  %1920 = vmatprep.subr.bf16.mxu0 0
  %1921 = vmatpush2.bf16.msra.mxu0 0
  %1922 = vmatprep.subr.bf16.mxu0 0
  %1923 = vmatpush2.bf16.msra.mxu0 0
  %1924 = vmatprep.mubr.bf16.mxu0 0
  %1925 = vmatmul.mubr.bf16.gmra.mxu0 %v1832
  %v1926 = vpop.f32.mrf.mxu0
  %v1927 = vadd.f32 0.0, %v1926
  %v1928 = vpop.f32.mrf.mxu0
  %v1929 = vpop.f32.mrf.mxu0
  %v1930 = vadd.f32 0.0, %v1929
  %v1931 = vpop.f32.mrf.mxu0
  %1932 = vmatprep.mubr.bf16.mxu0 0
  %1933 = vmatmul.mubr.bf16.gmra.mxu0 %v1835
  %v1934 = vpop.f32.mrf.mxu0
  %v1935 = vadd.f32 0.0, %v1934
  %v1936 = vpop.f32.mrf.mxu0
  %v1937 = vpop.f32.mrf.mxu0
  %v1938 = vadd.f32 0.0, %v1937
  %v1939 = vpop.f32.mrf.mxu0
  %1940 = vdwg.mxu0
  %v1941 = vmul.f32 %v1872, %v45
  %v1942 = vmul.f32 %v1875, %v46
  %v1943 = vmul.f32 %v1880, %v47
  %v1944 = vmul.f32 %v1883, %v48
  %v1945 = vpack.c.bf16 %v1942, %v1941
  %v1946 = vpack.c.bf16 %v1944, %v1943
  %v1947 = vmul.f32 %v1927, %v45
  %v1948 = vmul.f32 %v1930, %v46
  %v1949 = vmul.f32 %v1935, %v47
  %v1950 = vmul.f32 %v1938, %v48
  %v1951 = vpack.c.bf16 %v1948, %v1947
  %v1952 = vpack.c.bf16 %v1950, %v1949
  %v1953 = vpack.c.bf16 %v1782, %v1781
  %v1955 = vsel %vm163, %v1953, 0
  %1957 = vmatprep.subr.bf16.mxu0 0
  %1958 = vmatpush1.bf16.msra.mxu0 0
  %1959 = vmatprep.subr.bf16.mxu0 0
  %1960 = vmatpush1.bf16.msra.mxu0 0
  %1961 = vmatprep.subr.bf16.mxu0 0
  %1962 = vmatpush1.bf16.msra.mxu0 0
  %1963 = vmatprep.subr.bf16.mxu0 0
  %1964 = vmatpush1.bf16.msra.mxu0 0
  %1965 = vmatprep.subr.bf16.mxu0 0
  %1966 = vmatpush1.bf16.msra.mxu0 0
  %1967 = vmatprep.subr.bf16.mxu0 0
  %1968 = vmatpush1.bf16.msra.mxu0 0
  %1969 = vmatprep.subr.bf16.mxu0 0
  %1970 = vmatpush1.bf16.msra.mxu0 %v1946
  %1971 = vmatprep.subr.bf16.mxu0 0
  %1972 = vmatpush1.bf16.msra.mxu0 %v1945
  %1973 = vmatprep.subr.bf16.mxu0 0
  %1974 = vmatpush2.bf16.msra.mxu0 0
  %1975 = vmatprep.subr.bf16.mxu0 0
  %1976 = vmatpush2.bf16.msra.mxu0 0
  %1977 = vmatprep.subr.bf16.mxu0 0
  %1978 = vmatpush2.bf16.msra.mxu0 0
  %1979 = vmatprep.subr.bf16.mxu0 0
  %1980 = vmatpush2.bf16.msra.mxu0 0
  %1981 = vmatprep.subr.bf16.mxu0 0
  %1982 = vmatpush2.bf16.msra.mxu0 0
  %1983 = vmatprep.subr.bf16.mxu0 0
  %1984 = vmatpush2.bf16.msra.mxu0 0
  %1985 = vmatprep.subr.bf16.mxu0 0
  %1986 = vmatpush2.bf16.msra.mxu0 0
  %1987 = vmatprep.subr.bf16.mxu0 0
  %1988 = vmatpush2.bf16.msra.mxu0 0
  %1989 = vmatprep.mubr.bf16.mxu0 0
  %1990 = vmatmul.mubr.bf16.gmra.mxu0 %v1955
  %v1991 = vpop.f32.mrf.mxu0
  %v1992 = vadd.f32 0.0, %v1991
  %v1993 = vpop.f32.mrf.mxu0
  %v1994 = vpop.f32.mrf.mxu0
  %v1995 = vadd.f32 0.0, %v1994
  %v1996 = vpop.f32.mrf.mxu0
  %1997 = vdwg.mxu0
  %1999 = vrot.lane.b32.xlu0 %v1953, 96
  %v2000 = vpop.permute.xlu0 %1999
  %v2002 = vsel %vm163, %v2000, 0
  %2004 = vmatprep.subr.bf16.mxu0 0
  %2005 = vmatpush1.bf16.msra.mxu0 0
  %2006 = vmatprep.subr.bf16.mxu0 0
  %2007 = vmatpush1.bf16.msra.mxu0 0
  %2008 = vmatprep.subr.bf16.mxu0 0
  %2009 = vmatpush1.bf16.msra.mxu0 0
  %2010 = vmatprep.subr.bf16.mxu0 0
  %2011 = vmatpush1.bf16.msra.mxu0 0
  %2012 = vmatprep.subr.bf16.mxu0 0
  %2013 = vmatpush1.bf16.msra.mxu0 0
  %2014 = vmatprep.subr.bf16.mxu0 0
  %2015 = vmatpush1.bf16.msra.mxu0 0
  %2016 = vmatprep.subr.bf16.mxu0 0
  %2017 = vmatpush1.bf16.msra.mxu0 %v1952
  %2018 = vmatprep.subr.bf16.mxu0 0
  %2019 = vmatpush1.bf16.msra.mxu0 %v1951
  %2020 = vmatprep.subr.bf16.mxu0 0
  %2021 = vmatpush2.bf16.msra.mxu0 0
  %2022 = vmatprep.subr.bf16.mxu0 0
  %2023 = vmatpush2.bf16.msra.mxu0 0
  %2024 = vmatprep.subr.bf16.mxu0 0
  %2025 = vmatpush2.bf16.msra.mxu0 0
  %2026 = vmatprep.subr.bf16.mxu0 0
  %2027 = vmatpush2.bf16.msra.mxu0 0
  %2028 = vmatprep.subr.bf16.mxu0 0
  %2029 = vmatpush2.bf16.msra.mxu0 0
  %2030 = vmatprep.subr.bf16.mxu0 0
  %2031 = vmatpush2.bf16.msra.mxu0 0
  %2032 = vmatprep.subr.bf16.mxu0 0
  %2033 = vmatpush2.bf16.msra.mxu0 0
  %2034 = vmatprep.subr.bf16.mxu0 0
  %2035 = vmatpush2.bf16.msra.mxu0 0
  %2036 = vmatprep.mubr.bf16.mxu0 0
  %2037 = vmatmul.mubr.bf16.gmra.mxu0 %v2002
  %v2038 = vpop.f32.mrf.mxu0
  %v2039 = vadd.f32 0.0, %v2038
  %v2040 = vpop.f32.mrf.mxu0
  %v2041 = vpop.f32.mrf.mxu0
  %v2042 = vadd.f32 0.0, %v2041
  %v2043 = vpop.f32.mrf.mxu0
  %2044 = vdwg.mxu0
  %2045 = vxpose.xlu0.b32.start [1/16] %v1632, 128
  %2046 = vxpose.xlu0.b32.cont [2/16] %v1633, 128
  %2047 = vxpose.xlu0.b32.cont [3/16] 0.0, 128
  %2048 = vxpose.xlu0.b32.cont [4/16] 0.0, 128
  %2049 = vxpose.xlu0.b32.cont [5/16] 0.0, 128
  %2050 = vxpose.xlu0.b32.cont [6/16] 0.0, 128
  %2051 = vxpose.xlu0.b32.cont [7/16] 0.0, 128
  %2052 = vxpose.xlu0.b32.cont [8/16] 0.0, 128
  %2053 = vxpose.xlu0.b32.cont [9/16] 0.0, 128
  %2054 = vxpose.xlu0.b32.cont [10/16] 0.0, 128
  %2055 = vxpose.xlu0.b32.cont [11/16] 0.0, 128
  %2056 = vxpose.xlu0.b32.cont [12/16] 0.0, 128
  %2057 = vxpose.xlu0.b32.cont [13/16] 0.0, 128
  %2058 = vxpose.xlu0.b32.cont [14/16] 0.0, 128
  %2059 = vxpose.xlu0.b32.cont [15/16] 0.0, 128
  %2060 = vxpose.xlu0.b32.end [16/16] 0.0, 128
  %v2061 = vpop.trf.xlu0
  %v2062 = vpop.trf.xlu0
  %v2063 = vpop.trf.xlu0
  %v2064 = vpop.trf.xlu0
  %v2065 = vpop.trf.xlu0
  %v2066 = vpop.trf.xlu0
  %v2067 = vpop.trf.xlu0
  %v2068 = vpop.trf.xlu0
  %v2069 = vpop.trf.xlu0
  %v2070 = vpop.trf.xlu0
  %v2071 = vpop.trf.xlu0
  %v2072 = vpop.trf.xlu0
  %v2073 = vpop.trf.xlu0
  %v2074 = vpop.trf.xlu0
  %v2075 = vpop.trf.xlu0
  %v2076 = vpop.trf.xlu0
  %v2077 = vpack.c.bf16 %v2062, %v2061
  %v2078 = vpack.c.bf16 %v2064, %v2063
  %v2080 = vsel %vm452, %v2077, 0
  %v2083 = vsel %vm452, %v2078, 0
  %2085 = vmatprep.subr.bf16.mxu0 0
  %2086 = vmatpush1.bf16.msra.mxu0 0
  %2087 = vmatprep.subr.bf16.mxu0 0
  %2088 = vmatpush1.bf16.msra.mxu0 0
  %2089 = vmatprep.subr.bf16.mxu0 0
  %2090 = vmatpush1.bf16.msra.mxu0 0
  %2091 = vmatprep.subr.bf16.mxu0 0
  %2092 = vmatpush1.bf16.msra.mxu0 0
  %2093 = vmatprep.subr.bf16.mxu0 0
  %2094 = vmatpush1.bf16.msra.mxu0 0
  %2095 = vmatprep.subr.bf16.mxu0 0
  %2096 = vmatpush1.bf16.msra.mxu0 0
  %2097 = vmatprep.subr.bf16.mxu0 0
  %2098 = vmatpush1.bf16.msra.mxu0 0
  %2099 = vmatprep.subr.bf16.mxu0 0
  %2100 = vmatpush1.bf16.msra.mxu0 %v1829
  %2101 = vmatprep.subr.bf16.mxu0 0
  %2102 = vmatpush2.bf16.msra.mxu0 0
  %2103 = vmatprep.subr.bf16.mxu0 0
  %2104 = vmatpush2.bf16.msra.mxu0 0
  %2105 = vmatprep.subr.bf16.mxu0 0
  %2106 = vmatpush2.bf16.msra.mxu0 0
  %2107 = vmatprep.subr.bf16.mxu0 0
  %2108 = vmatpush2.bf16.msra.mxu0 0
  %2109 = vmatprep.subr.bf16.mxu0 0
  %2110 = vmatpush2.bf16.msra.mxu0 0
  %2111 = vmatprep.subr.bf16.mxu0 0
  %2112 = vmatpush2.bf16.msra.mxu0 0
  %2113 = vmatprep.subr.bf16.mxu0 0
  %2114 = vmatpush2.bf16.msra.mxu0 0
  %2115 = vmatprep.subr.bf16.mxu0 0
  %2116 = vmatpush2.bf16.msra.mxu0 0
  %2117 = vmatprep.mubr.bf16.mxu0 0
  %2118 = vmatmul.mubr.bf16.gmra.mxu0 %v2080
  %v2119 = vpop.f32.mrf.mxu0
  %v2120 = vadd.f32 0.0, %v2119
  %v2121 = vpop.f32.mrf.mxu0
  %v2122 = vpop.f32.mrf.mxu0
  %v2123 = vadd.f32 0.0, %v2122
  %v2124 = vpop.f32.mrf.mxu0
  %2125 = vmatprep.mubr.bf16.mxu0 0
  %2126 = vmatmul.mubr.bf16.gmra.mxu0 %v2083
  %v2127 = vpop.f32.mrf.mxu0
  %v2128 = vadd.f32 0.0, %v2127
  %v2129 = vpop.f32.mrf.mxu0
  %v2130 = vpop.f32.mrf.mxu0
  %v2131 = vadd.f32 0.0, %v2130
  %v2132 = vpop.f32.mrf.mxu0
  %2133 = vdwg.mxu0
  %2134 = vmatprep.subr.bf16.mxu0 0
  %2135 = vmatpush1.bf16.msra.mxu0 0
  %2136 = vmatprep.subr.bf16.mxu0 0
  %2137 = vmatpush1.bf16.msra.mxu0 0
  %2138 = vmatprep.subr.bf16.mxu0 0
  %2139 = vmatpush1.bf16.msra.mxu0 0
  %2140 = vmatprep.subr.bf16.mxu0 0
  %2141 = vmatpush1.bf16.msra.mxu0 0
  %2142 = vmatprep.subr.bf16.mxu0 0
  %2143 = vmatpush1.bf16.msra.mxu0 0
  %2144 = vmatprep.subr.bf16.mxu0 0
  %2145 = vmatpush1.bf16.msra.mxu0 0
  %2146 = vmatprep.subr.bf16.mxu0 0
  %2147 = vmatpush1.bf16.msra.mxu0 0
  %2148 = vmatprep.subr.bf16.mxu0 0
  %2149 = vmatpush1.bf16.msra.mxu0 %v1890
  %2150 = vmatprep.subr.bf16.mxu0 0
  %2151 = vmatpush2.bf16.msra.mxu0 0
  %2152 = vmatprep.subr.bf16.mxu0 0
  %2153 = vmatpush2.bf16.msra.mxu0 0
  %2154 = vmatprep.subr.bf16.mxu0 0
  %2155 = vmatpush2.bf16.msra.mxu0 0
  %2156 = vmatprep.subr.bf16.mxu0 0
  %2157 = vmatpush2.bf16.msra.mxu0 0
  %2158 = vmatprep.subr.bf16.mxu0 0
  %2159 = vmatpush2.bf16.msra.mxu0 0
  %2160 = vmatprep.subr.bf16.mxu0 0
  %2161 = vmatpush2.bf16.msra.mxu0 0
  %2162 = vmatprep.subr.bf16.mxu0 0
  %2163 = vmatpush2.bf16.msra.mxu0 0
  %2164 = vmatprep.subr.bf16.mxu0 0
  %2165 = vmatpush2.bf16.msra.mxu0 0
  %2166 = vmatprep.mubr.bf16.mxu0 0
  %2167 = vmatmul.mubr.bf16.gmra.mxu0 %v2080
  %v2168 = vpop.f32.mrf.mxu0
  %v2169 = vadd.f32 0.0, %v2168
  %v2170 = vpop.f32.mrf.mxu0
  %v2171 = vpop.f32.mrf.mxu0
  %v2172 = vadd.f32 0.0, %v2171
  %v2173 = vpop.f32.mrf.mxu0
  %2174 = vmatprep.mubr.bf16.mxu0 0
  %2175 = vmatmul.mubr.bf16.gmra.mxu0 %v2083
  %v2176 = vpop.f32.mrf.mxu0
  %v2177 = vadd.f32 0.0, %v2176
  %v2178 = vpop.f32.mrf.mxu0
  %v2179 = vpop.f32.mrf.mxu0
  %v2180 = vadd.f32 0.0, %v2179
  %v2181 = vpop.f32.mrf.mxu0
  %2182 = vdwg.mxu0
  %v2183 = vmul.f32 %v2120, %v45
  %v2184 = vmul.f32 %v2123, %v46
  %v2185 = vmul.f32 %v2128, %v47
  %v2186 = vmul.f32 %v2131, %v48
  %v2187 = vpack.c.bf16 %v2184, %v2183
  %v2188 = vpack.c.bf16 %v2186, %v2185
  %v2189 = vmul.f32 %v2169, %v45
  %v2190 = vmul.f32 %v2172, %v46
  %v2191 = vmul.f32 %v2177, %v47
  %v2192 = vmul.f32 %v2180, %v48
  %v2193 = vpack.c.bf16 %v2190, %v2189
  %v2194 = vpack.c.bf16 %v2192, %v2191
  %v2195 = vpack.c.bf16 %v1784, %v1783
  %v2197 = vsel %vm163, %v2195, 0
  %2199 = vmatprep.subr.bf16.mxu0 0
  %2200 = vmatpush1.bf16.msra.mxu0 0
  %2201 = vmatprep.subr.bf16.mxu0 0
  %2202 = vmatpush1.bf16.msra.mxu0 0
  %2203 = vmatprep.subr.bf16.mxu0 0
  %2204 = vmatpush1.bf16.msra.mxu0 0
  %2205 = vmatprep.subr.bf16.mxu0 0
  %2206 = vmatpush1.bf16.msra.mxu0 0
  %2207 = vmatprep.subr.bf16.mxu0 0
  %2208 = vmatpush1.bf16.msra.mxu0 0
  %2209 = vmatprep.subr.bf16.mxu0 0
  %2210 = vmatpush1.bf16.msra.mxu0 0
  %2211 = vmatprep.subr.bf16.mxu0 0
  %2212 = vmatpush1.bf16.msra.mxu0 %v2188
  %2213 = vmatprep.subr.bf16.mxu0 0
  %2214 = vmatpush1.bf16.msra.mxu0 %v2187
  %2215 = vmatprep.subr.bf16.mxu0 0
  %2216 = vmatpush2.bf16.msra.mxu0 0
  %2217 = vmatprep.subr.bf16.mxu0 0
  %2218 = vmatpush2.bf16.msra.mxu0 0
  %2219 = vmatprep.subr.bf16.mxu0 0
  %2220 = vmatpush2.bf16.msra.mxu0 0
  %2221 = vmatprep.subr.bf16.mxu0 0
  %2222 = vmatpush2.bf16.msra.mxu0 0
  %2223 = vmatprep.subr.bf16.mxu0 0
  %2224 = vmatpush2.bf16.msra.mxu0 0
  %2225 = vmatprep.subr.bf16.mxu0 0
  %2226 = vmatpush2.bf16.msra.mxu0 0
  %2227 = vmatprep.subr.bf16.mxu0 0
  %2228 = vmatpush2.bf16.msra.mxu0 0
  %2229 = vmatprep.subr.bf16.mxu0 0
  %2230 = vmatpush2.bf16.msra.mxu0 0
  %2231 = vmatprep.mubr.bf16.mxu0 0
  %2232 = vmatmul.mubr.bf16.gmra.mxu0 %v2197
  %v2233 = vpop.f32.mrf.mxu0
  %v2234 = vadd.f32 0.0, %v2233
  %v2235 = vpop.f32.mrf.mxu0
  %v2236 = vpop.f32.mrf.mxu0
  %v2237 = vadd.f32 0.0, %v2236
  %v2238 = vpop.f32.mrf.mxu0
  %2239 = vdwg.mxu0
  %2241 = vrot.lane.b32.xlu0 %v2195, 96
  %v2242 = vpop.permute.xlu0 %2241
  %v2244 = vsel %vm163, %v2242, 0
  %2246 = vmatprep.subr.bf16.mxu0 0
  %2247 = vmatpush1.bf16.msra.mxu0 0
  %2248 = vmatprep.subr.bf16.mxu0 0
  %2249 = vmatpush1.bf16.msra.mxu0 0
  %2250 = vmatprep.subr.bf16.mxu0 0
  %2251 = vmatpush1.bf16.msra.mxu0 0
  %2252 = vmatprep.subr.bf16.mxu0 0
  %2253 = vmatpush1.bf16.msra.mxu0 0
  %2254 = vmatprep.subr.bf16.mxu0 0
  %2255 = vmatpush1.bf16.msra.mxu0 0
  %2256 = vmatprep.subr.bf16.mxu0 0
  %2257 = vmatpush1.bf16.msra.mxu0 0
  %2258 = vmatprep.subr.bf16.mxu0 0
  %2259 = vmatpush1.bf16.msra.mxu0 %v2194
  %2260 = vmatprep.subr.bf16.mxu0 0
  %2261 = vmatpush1.bf16.msra.mxu0 %v2193
  %2262 = vmatprep.subr.bf16.mxu0 0
  %2263 = vmatpush2.bf16.msra.mxu0 0
  %2264 = vmatprep.subr.bf16.mxu0 0
  %2265 = vmatpush2.bf16.msra.mxu0 0
  %2266 = vmatprep.subr.bf16.mxu0 0
  %2267 = vmatpush2.bf16.msra.mxu0 0
  %2268 = vmatprep.subr.bf16.mxu0 0
  %2269 = vmatpush2.bf16.msra.mxu0 0
  %2270 = vmatprep.subr.bf16.mxu0 0
  %2271 = vmatpush2.bf16.msra.mxu0 0
  %2272 = vmatprep.subr.bf16.mxu0 0
  %2273 = vmatpush2.bf16.msra.mxu0 0
  %2274 = vmatprep.subr.bf16.mxu0 0
  %2275 = vmatpush2.bf16.msra.mxu0 0
  %2276 = vmatprep.subr.bf16.mxu0 0
  %2277 = vmatpush2.bf16.msra.mxu0 0
  %2278 = vmatprep.mubr.bf16.mxu0 0
  %2279 = vmatmul.mubr.bf16.gmra.mxu0 %v2244
  %v2280 = vpop.f32.mrf.mxu0
  %v2281 = vadd.f32 0.0, %v2280
  %v2282 = vpop.f32.mrf.mxu0
  %v2283 = vpop.f32.mrf.mxu0
  %v2284 = vadd.f32 0.0, %v2283
  %v2285 = vpop.f32.mrf.mxu0
  %2286 = vdwg.mxu0
  %v2287 = vpack.c.bf16 %v1995, %v1992
  %v2288 = vpack.c.bf16 %v2237, %v2234
  %s2289 = scalar_lea.vmem %s6, 80
  %v2290 = vld [vmem:[%s2289] sm:$0xf]
  %v2291 = vld [vmem:[%s2289 + $0x4] sm:$0xf]
  %v2292 = vld [vmem:[%s2289 + $0x8] sm:$0xf]
  %v2293 = vld [vmem:[%s2289 + $0xc] sm:$0xf]
  %v2294 = vld [vmem:[%s2289 + $0x10] sm:$0xf]
  %v2295 = vld [vmem:[%s2289 + $0x14] sm:$0xf]
  %v2296 = vld [vmem:[%s2289 + $0x18] sm:$0xf]
  %v2297 = vld [vmem:[%s2289 + $0x1c] sm:$0xf]
  %v2298 = vld [vmem:[%s2289 + $0x20] sm:$0xf]
  %v2299 = vld [vmem:[%s2289 + $0x24] sm:$0xf]
  %v2300 = vpack.c.bf16 %v2042, %v2039
  %v2301 = vpack.c.bf16 %v2284, %v2281
  %s2302 = scalar_lea.vmem %s6, 120
  %v2303 = vld [vmem:[%s2302] sm:$0xf]
  %v2304 = vld [vmem:[%s2302 + $0x4] sm:$0xf]
  %v2305 = vld [vmem:[%s2302 + $0x8] sm:$0xf]
  %v2306 = vld [vmem:[%s2302 + $0xc] sm:$0xf]
  %v2307 = vld [vmem:[%s2302 + $0x10] sm:$0xf]
  %v2308 = vld [vmem:[%s2302 + $0x14] sm:$0xf]
  %v2309 = vld [vmem:[%s2302 + $0x18] sm:$0xf]
  %v2310 = vld [vmem:[%s2302 + $0x1c] sm:$0xf]
  %v2311 = vld [vmem:[%s2302 + $0x20] sm:$0xf]
  %v2312 = vld [vmem:[%s2302 + $0x24] sm:$0xf]
  %v2323 = vunpack.c.l.b16 %v2303
  %v2324 = vunpack.c.l.b16 %v2304
  %v2325 = vunpack.c.l.b16 %v2305
  %v2326 = vunpack.c.l.b16 %v2306
  %v2327 = vunpack.c.l.b16 %v2307
  %v2328 = vunpack.c.l.b16 %v2308
  %v2329 = vunpack.c.l.b16 %v2309
  %v2330 = vunpack.c.l.b16 %v2310
  %v2331 = vunpack.c.l.b16 %v2311
  %v2332 = vunpack.c.l.b16 %v2312
  %v2333 = vpack.c.b16 %v2324, %v2323
  %v2334 = vpack.c.b16 %v2326, %v2325
  %v2335 = vpack.c.b16 %v2328, %v2327
  %v2336 = vpack.c.b16 %v2330, %v2329
  %v2337 = vpack.c.b16 %v2332, %v2331
  %v2344 = vsel %vm964, %v2300, 0
  %v2347 = vsel %vm964, %v2301, 0
  %2349 = vmatprep.subr.bf16.mxu0 0
  %2350 = vmatpush1.bf16.msra.mxu0 0
  %2351 = vmatprep.subr.bf16.mxu0 0
  %2352 = vmatpush1.bf16.msra.mxu0 0
  %2353 = vmatprep.subr.bf16.mxu0 0
  %2354 = vmatpush1.bf16.msra.mxu0 0
  %2355 = vmatprep.subr.bf16.mxu0 0
  %2356 = vmatpush1.bf16.msra.mxu0 %v2337
  %2357 = vmatprep.subr.bf16.mxu0 0
  %2358 = vmatpush1.bf16.msra.mxu0 %v2336
  %2359 = vmatprep.subr.bf16.mxu0 0
  %2360 = vmatpush1.bf16.msra.mxu0 %v2335
  %2361 = vmatprep.subr.bf16.mxu0 0
  %2362 = vmatpush1.bf16.msra.mxu0 %v2334
  %2363 = vmatprep.subr.bf16.mxu0 0
  %2364 = vmatpush1.bf16.msra.mxu0 %v2333
  %2365 = vmatprep.subr.bf16.mxu0 0
  %2366 = vmatpush2.bf16.msra.mxu0 0
  %2367 = vmatprep.subr.bf16.mxu0 0
  %2368 = vmatpush2.bf16.msra.mxu0 0
  %2369 = vmatprep.subr.bf16.mxu0 0
  %2370 = vmatpush2.bf16.msra.mxu0 0
  %2371 = vmatprep.subr.bf16.mxu0 0
  %2372 = vmatpush2.bf16.msra.mxu0 0
  %2373 = vmatprep.subr.bf16.mxu0 0
  %2374 = vmatpush2.bf16.msra.mxu0 0
  %2375 = vmatprep.subr.bf16.mxu0 0
  %2376 = vmatpush2.bf16.msra.mxu0 0
  %2377 = vmatprep.subr.bf16.mxu0 0
  %2378 = vmatpush2.bf16.msra.mxu0 0
  %2379 = vmatprep.subr.bf16.mxu0 0
  %2380 = vmatpush2.bf16.msra.mxu0 0
  %2381 = vmatprep.mubr.bf16.mxu0 0
  %2382 = vmatmul.mubr.bf16.gmra.mxu0 %v2344
  %v2383 = vpop.f32.mrf.mxu0
  %v2384 = vadd.f32 0.0, %v2383
  %v2385 = vpop.f32.mrf.mxu0
  %v2386 = vpop.f32.mrf.mxu0
  %v2387 = vadd.f32 0.0, %v2386
  %v2388 = vpop.f32.mrf.mxu0
  %2389 = vmatprep.mubr.bf16.mxu0 0
  %2390 = vmatmul.mubr.bf16.gmra.mxu0 %v2347
  %v2391 = vpop.f32.mrf.mxu0
  %v2392 = vadd.f32 0.0, %v2391
  %v2393 = vpop.f32.mrf.mxu0
  %v2394 = vpop.f32.mrf.mxu0
  %v2395 = vadd.f32 0.0, %v2394
  %v2396 = vpop.f32.mrf.mxu0
  %2397 = vdwg.mxu0
  %v2408 = vunpack.c.l.b16 %v2290
  %v2409 = vunpack.c.l.b16 %v2291
  %v2410 = vunpack.c.l.b16 %v2292
  %v2411 = vunpack.c.l.b16 %v2293
  %v2412 = vunpack.c.l.b16 %v2294
  %v2413 = vunpack.c.l.b16 %v2295
  %v2414 = vunpack.c.l.b16 %v2296
  %v2415 = vunpack.c.l.b16 %v2297
  %v2416 = vunpack.c.l.b16 %v2298
  %v2417 = vunpack.c.l.b16 %v2299
  %v2418 = vpack.c.b16 %v2409, %v2408
  %v2419 = vpack.c.b16 %v2411, %v2410
  %v2420 = vpack.c.b16 %v2413, %v2412
  %v2421 = vpack.c.b16 %v2415, %v2414
  %v2422 = vpack.c.b16 %v2417, %v2416
  %v2429 = vsel %vm964, %v2287, 0
  %v2432 = vsel %vm964, %v2288, 0
  %2434 = vmatprep.subr.bf16.mxu0 0
  %2435 = vmatpush1.bf16.msra.mxu0 0
  %2436 = vmatprep.subr.bf16.mxu0 0
  %2437 = vmatpush1.bf16.msra.mxu0 0
  %2438 = vmatprep.subr.bf16.mxu0 0
  %2439 = vmatpush1.bf16.msra.mxu0 0
  %2440 = vmatprep.subr.bf16.mxu0 0
  %2441 = vmatpush1.bf16.msra.mxu0 %v2422
  %2442 = vmatprep.subr.bf16.mxu0 0
  %2443 = vmatpush1.bf16.msra.mxu0 %v2421
  %2444 = vmatprep.subr.bf16.mxu0 0
  %2445 = vmatpush1.bf16.msra.mxu0 %v2420
  %2446 = vmatprep.subr.bf16.mxu0 0
  %2447 = vmatpush1.bf16.msra.mxu0 %v2419
  %2448 = vmatprep.subr.bf16.mxu0 0
  %2449 = vmatpush1.bf16.msra.mxu0 %v2418
  %2450 = vmatprep.subr.bf16.mxu0 0
  %2451 = vmatpush2.bf16.msra.mxu0 0
  %2452 = vmatprep.subr.bf16.mxu0 0
  %2453 = vmatpush2.bf16.msra.mxu0 0
  %2454 = vmatprep.subr.bf16.mxu0 0
  %2455 = vmatpush2.bf16.msra.mxu0 0
  %2456 = vmatprep.subr.bf16.mxu0 0
  %2457 = vmatpush2.bf16.msra.mxu0 0
  %2458 = vmatprep.subr.bf16.mxu0 0
  %2459 = vmatpush2.bf16.msra.mxu0 0
  %2460 = vmatprep.subr.bf16.mxu0 0
  %2461 = vmatpush2.bf16.msra.mxu0 0
  %2462 = vmatprep.subr.bf16.mxu0 0
  %2463 = vmatpush2.bf16.msra.mxu0 0
  %2464 = vmatprep.subr.bf16.mxu0 0
  %2465 = vmatpush2.bf16.msra.mxu0 0
  %2466 = vmatprep.mubr.bf16.mxu0 0
  %2467 = vmatmul.mubr.bf16.gmra.mxu0 %v2429
  %v2468 = vpop.f32.mrf.mxu0
  %v2469 = vadd.f32 %v2384, %v2468
  %v2470 = vpop.f32.mrf.mxu0
  %v2471 = vpop.f32.mrf.mxu0
  %v2472 = vadd.f32 %v2387, %v2471
  %v2473 = vpop.f32.mrf.mxu0
  %2474 = vmatprep.mubr.bf16.mxu0 0
  %2475 = vmatmul.mubr.bf16.gmra.mxu0 %v2432
  %v2476 = vpop.f32.mrf.mxu0
  %v2477 = vadd.f32 %v2392, %v2476
  %v2478 = vpop.f32.mrf.mxu0
  %v2479 = vpop.f32.mrf.mxu0
  %v2480 = vadd.f32 %v2395, %v2479
  %v2481 = vpop.f32.mrf.mxu0
  %2482 = vdwg.mxu0
  %v2483 = vlaneseq
  %v2484 = vshrl.u32 %v2483, 7
  %v2485 = vsub.s32 5, %v2484
  %v2486 = vrot.slane %v43, %v2485
  %v2487 = vadd.f32 %v2469, %v2486
  %v2488 = vadd.f32 %v2472, %v2486
  %v2489 = vadd.f32 %v2477, %v2486
  %v2490 = vadd.f32 %v2480, %v2486
  %v2491 = vpack.c.bf16 %v2488, %v2487
  %v2492 = vpack.c.bf16 %v2490, %v2489
  %s2493 = scalar_lea.vmem %s3, 16
  %v2494 = vld [vmem:[%s2493] sm:$0xf]
  %v2495 = vld [vmem:[%s2493 + $0x4] sm:$0xf]
  %v2496 = vld [vmem:[%s2493 + $0x8] sm:$0xf]
  %v2497 = vld [vmem:[%s2493 + $0xc] sm:$0xf]
  %v2498 = vlaneseq
  %v2499 = vshrl.u32 %v2498, 7
  %v2500 = vsub.s32 6, %v2499
  %v2501 = vrot.slane %v43, %v2500
  %v2506 = vunpack.c.l.b16 %v2494
  %v2507 = vunpack.c.l.b16 %v2495
  %v2508 = vunpack.c.l.b16 %v2496
  %v2509 = vunpack.c.l.b16 %v2497
  %v2510 = vpack.c.b16 %v2507, %v2506
  %v2511 = vpack.c.b16 %v2509, %v2508
  %v2515 = vsel %vm163, %v2491, 0
  %v2518 = vsel %vm163, %v2492, 0
  %2520 = vmatprep.subr.bf16.mxu0 0
  %2521 = vmatpush1.bf16.msra.mxu0 0
  %2522 = vmatprep.subr.bf16.mxu0 0
  %2523 = vmatpush1.bf16.msra.mxu0 0
  %2524 = vmatprep.subr.bf16.mxu0 0
  %2525 = vmatpush1.bf16.msra.mxu0 0
  %2526 = vmatprep.subr.bf16.mxu0 0
  %2527 = vmatpush1.bf16.msra.mxu0 0
  %2528 = vmatprep.subr.bf16.mxu0 0
  %2529 = vmatpush1.bf16.msra.mxu0 0
  %2530 = vmatprep.subr.bf16.mxu0 0
  %2531 = vmatpush1.bf16.msra.mxu0 0
  %2532 = vmatprep.subr.bf16.mxu0 0
  %2533 = vmatpush1.bf16.msra.mxu0 %v2511
  %2534 = vmatprep.subr.bf16.mxu0 0
  %2535 = vmatpush1.bf16.msra.mxu0 %v2510
  %2536 = vmatprep.subr.bf16.mxu0 0
  %2537 = vmatpush2.bf16.msra.mxu0 0
  %2538 = vmatprep.subr.bf16.mxu0 0
  %2539 = vmatpush2.bf16.msra.mxu0 0
  %2540 = vmatprep.subr.bf16.mxu0 0
  %2541 = vmatpush2.bf16.msra.mxu0 0
  %2542 = vmatprep.subr.bf16.mxu0 0
  %2543 = vmatpush2.bf16.msra.mxu0 0
  %2544 = vmatprep.subr.bf16.mxu0 0
  %2545 = vmatpush2.bf16.msra.mxu0 0
  %2546 = vmatprep.subr.bf16.mxu0 0
  %2547 = vmatpush2.bf16.msra.mxu0 0
  %2548 = vmatprep.subr.bf16.mxu0 0
  %2549 = vmatpush2.bf16.msra.mxu0 0
  %2550 = vmatprep.subr.bf16.mxu0 0
  %2551 = vmatpush2.bf16.msra.mxu0 0
  %2552 = vmatprep.mubr.bf16.mxu0 0
  %2553 = vmatmul.mubr.bf16.gmra.mxu0 %v2515
  %v2554 = vpop.f32.mrf.mxu0
  %v2555 = vadd.f32 %v2501, %v2554
  %v2556 = vpop.f32.mrf.mxu0
  %v2557 = vpop.f32.mrf.mxu0
  %v2558 = vadd.f32 %v2501, %v2557
  %v2559 = vpop.f32.mrf.mxu0
  %2560 = vmatprep.mubr.bf16.mxu0 0
  %2561 = vmatmul.mubr.bf16.gmra.mxu0 %v2518
  %v2562 = vpop.f32.mrf.mxu0
  %v2563 = vadd.f32 %v2501, %v2562
  %v2564 = vpop.f32.mrf.mxu0
  %v2565 = vpop.f32.mrf.mxu0
  %v2566 = vadd.f32 %v2501, %v2565
  %v2567 = vpop.f32.mrf.mxu0
  %2568 = vdwg.mxu0
  %v2569 = vadd.f32 %v1562, %v2555
  %v2570 = vadd.f32 %v1563, %v2558
  %v2571 = vadd.f32 %v1564, %v2563
  %v2572 = vadd.f32 %v1565, %v2566
  %v2573 = vsel %vm163, %v2569, 0.0
  %2574 = vadd.xlane.f32.xlu0 %v2573
  %v2575 = vpop.xlane.xlu0 %2574
  %v2576 = vsel %vm163, %v2570, 0.0
  %2577 = vadd.xlane.f32.xlu0 %v2576
  %v2578 = vpop.xlane.xlu0 %2577
  %v2579 = vsel %vm163, %v2571, 0.0
  %2580 = vadd.xlane.f32.xlu0 %v2579
  %v2581 = vpop.xlane.xlu0 %2580
  %v2582 = vsel %vm163, %v2572, 0.0
  %2583 = vadd.xlane.f32.xlu0 %v2582
  %v2584 = vpop.xlane.xlu0 %2583
  %v2585 = vmul.f32 %v2575, %v176
  %v2586 = vmul.f32 %v2578, %v176
  %v2587 = vmul.f32 %v2581, %v176
  %v2588 = vmul.f32 %v2584, %v176
  %v2589 = vsub.f32 %v2569, %v2585
  %v2590 = vsub.f32 %v2570, %v2586
  %v2591 = vsub.f32 %v2571, %v2587
  %v2592 = vsub.f32 %v2572, %v2588
  %v2593 = vmul.f32 %v2589, %v2589
  %v2594 = vmul.f32 %v2590, %v2590
  %v2595 = vmul.f32 %v2591, %v2591
  %v2596 = vmul.f32 %v2592, %v2592
  %v2597 = vsel %vm163, %v2593, 0.0
  %2598 = vadd.xlane.f32.xlu0 %v2597
  %v2599 = vpop.xlane.xlu0 %2598
  %v2600 = vsel %vm163, %v2594, 0.0
  %2601 = vadd.xlane.f32.xlu0 %v2600
  %v2602 = vpop.xlane.xlu0 %2601
  %v2603 = vsel %vm163, %v2595, 0.0
  %2604 = vadd.xlane.f32.xlu0 %v2603
  %v2605 = vpop.xlane.xlu0 %2604
  %v2606 = vsel %vm163, %v2596, 0.0
  %2607 = vadd.xlane.f32.xlu0 %v2606
  %v2608 = vpop.xlane.xlu0 %2607
  %v2609 = vmul.f32 %v2599, %v176
  %v2610 = vmul.f32 %v2602, %v176
  %v2611 = vmul.f32 %v2605, %v176
  %v2612 = vmul.f32 %v2608, %v176
  %v2613 = vadd.f32 %v2609, 1e-05
  %v2614 = vadd.f32 %v2610, 1e-05
  %v2615 = vadd.f32 %v2611, 1e-05
  %v2616 = vadd.f32 %v2612, 1e-05
  %v2617 = vrsqrt.pop %v2613
  %v2618 = vrsqrt.pop %v2614
  %v2619 = vrsqrt.pop %v2615
  %v2620 = vrsqrt.pop %v2616
  %v2621 = vmul.f32 %v2589, %v2617
  %v2622 = vmul.f32 %v2590, %v2618
  %v2623 = vmul.f32 %v2591, %v2619
  %v2624 = vmul.f32 %v2592, %v2620
  %v2625 = vlaneseq
  %v2626 = vshrl.u32 %v2625, 7
  %v2627 = vsub.s32 7, %v2626
  %v2628 = vrot.slane %v43, %v2627
  %v2629 = vmul.f32 %v2621, %v2628
  %v2630 = vmul.f32 %v2622, %v2628
  %v2631 = vmul.f32 %v2623, %v2628
  %v2632 = vmul.f32 %v2624, %v2628
  %v2633 = vlaneseq
  %v2634 = vshrl.u32 %v2633, 7
  %v2635 = vsub.s32 0, %v2634
  %v2636 = vrot.slane %v44, %v2635
  %v2637 = vadd.f32 %v2629, %v2636
  %v2638 = vadd.f32 %v2630, %v2636
  %v2639 = vadd.f32 %v2631, %v2636
  %v2640 = vadd.f32 %v2632, %v2636
  %v2641 = vpack.c.bf16 %v2638, %v2637
  %v2642 = vpack.c.bf16 %v2640, %v2639
  %s2643 = scalar_lea.vmem %s7, 16
  %v2644 = vld [vmem:[%s2643] sm:$0xf]
  %v2645 = vld [vmem:[%s2643 + $0x4] sm:$0xf]
  %v2646 = vld [vmem:[%s2643 + $0x8] sm:$0xf]
  %v2647 = vld [vmem:[%s2643 + $0xc] sm:$0xf]
  %v2648 = vlaneseq
  %v2649 = vshrl.u32 %v2648, 7
  %v2650 = vsub.s32 1, %v2649
  %v2651 = vrot.slane %v44, %v2650
  %v2656 = vunpack.c.l.b16 %v2644
  %v2657 = vunpack.c.l.b16 %v2645
  %v2658 = vunpack.c.l.b16 %v2646
  %v2659 = vunpack.c.l.b16 %v2647
  %v2660 = vpack.c.b16 %v2657, %v2656
  %v2661 = vpack.c.b16 %v2659, %v2658
  %v2665 = vsel %vm163, %v2641, 0
  %v2668 = vsel %vm163, %v2642, 0
  %2670 = vmatprep.subr.bf16.mxu0 0
  %2671 = vmatpush1.bf16.msra.mxu0 0
  %2672 = vmatprep.subr.bf16.mxu0 0
  %2673 = vmatpush1.bf16.msra.mxu0 0
  %2674 = vmatprep.subr.bf16.mxu0 0
  %2675 = vmatpush1.bf16.msra.mxu0 0
  %2676 = vmatprep.subr.bf16.mxu0 0
  %2677 = vmatpush1.bf16.msra.mxu0 0
  %2678 = vmatprep.subr.bf16.mxu0 0
  %2679 = vmatpush1.bf16.msra.mxu0 0
  %2680 = vmatprep.subr.bf16.mxu0 0
  %2681 = vmatpush1.bf16.msra.mxu0 0
  %2682 = vmatprep.subr.bf16.mxu0 0
  %2683 = vmatpush1.bf16.msra.mxu0 %v2661
  %2684 = vmatprep.subr.bf16.mxu0 0
  %2685 = vmatpush1.bf16.msra.mxu0 %v2660
  %2686 = vmatprep.subr.bf16.mxu0 0
  %2687 = vmatpush2.bf16.msra.mxu0 0
  %2688 = vmatprep.subr.bf16.mxu0 0
  %2689 = vmatpush2.bf16.msra.mxu0 0
  %2690 = vmatprep.subr.bf16.mxu0 0
  %2691 = vmatpush2.bf16.msra.mxu0 0
  %2692 = vmatprep.subr.bf16.mxu0 0
  %2693 = vmatpush2.bf16.msra.mxu0 0
  %2694 = vmatprep.subr.bf16.mxu0 0
  %2695 = vmatpush2.bf16.msra.mxu0 0
  %2696 = vmatprep.subr.bf16.mxu0 0
  %2697 = vmatpush2.bf16.msra.mxu0 0
  %2698 = vmatprep.subr.bf16.mxu0 0
  %2699 = vmatpush2.bf16.msra.mxu0 0
  %2700 = vmatprep.subr.bf16.mxu0 0
  %2701 = vmatpush2.bf16.msra.mxu0 0
  %2702 = vmatprep.mubr.bf16.mxu0 0
  %2703 = vmatmul.mubr.bf16.gmra.mxu0 %v2665
  %v2704 = vpop.f32.mrf.mxu0
  %v2705 = vadd.f32 %v2651, %v2704
  %v2706 = vpop.f32.mrf.mxu0
  %v2707 = vpop.f32.mrf.mxu0
  %v2708 = vadd.f32 %v2651, %v2707
  %v2709 = vpop.f32.mrf.mxu0
  %2710 = vmatprep.mubr.bf16.mxu0 0
  %2711 = vmatmul.mubr.bf16.gmra.mxu0 %v2668
  %v2712 = vpop.f32.mrf.mxu0
  %v2713 = vadd.f32 %v2651, %v2712
  %v2714 = vpop.f32.mrf.mxu0
  %v2715 = vpop.f32.mrf.mxu0
  %v2716 = vadd.f32 %v2651, %v2715
  %v2717 = vpop.f32.mrf.mxu0
  %2718 = vdwg.mxu0
  %v2719 = vmul.f32 %v2705, 0.5
  %v2720 = vmul.f32 %v2708, 0.5
  %v2721 = vmul.f32 %v2713, 0.5
  %v2722 = vmul.f32 %v2716, 0.5
  %v2723 = vmul.f32 %v2705, 0.70710677
  %v2724 = vmul.f32 %v2708, 0.70710677
  %v2725 = vmul.f32 %v2713, 0.70710677
  %v2726 = vmul.f32 %v2716, 0.70710677
  %v2727 = vand.u32 2147483647, %v2723
  %v2728 = vand.u32 2147483647, %v2724
  %v2729 = vand.u32 2147483647, %v2725
  %v2730 = vand.u32 2147483647, %v2726
  %v2731 = vmul.f32 %v2727, 0.3275911
  %v2732 = vmul.f32 %v2728, 0.3275911
  %v2733 = vmul.f32 %v2729, 0.3275911
  %v2734 = vmul.f32 %v2730, 0.3275911
  %v2735 = vadd.f32 %v2731, 1.0
  %v2736 = vadd.f32 %v2732, 1.0
  %v2737 = vadd.f32 %v2733, 1.0
  %v2738 = vadd.f32 %v2734, 1.0
  %v2739 = vrcp.pop %v2735
  %v2740 = vrcp.pop %v2736
  %v2741 = vrcp.pop %v2737
  %v2742 = vrcp.pop %v2738
  %v2743 = vmul.f32 %v2739, 1.0614054
  %v2744 = vmul.f32 %v2740, 1.0614054
  %v2745 = vmul.f32 %v2741, 1.0614054
  %v2746 = vmul.f32 %v2742, 1.0614054
  %v2747 = vadd.f32 %v2743, -1.4531521
  %v2748 = vadd.f32 %v2744, -1.4531521
  %v2749 = vadd.f32 %v2745, -1.4531521
  %v2750 = vadd.f32 %v2746, -1.4531521
  %v2751 = vmul.f32 %v2747, %v2739
  %v2752 = vmul.f32 %v2748, %v2740
  %v2753 = vmul.f32 %v2749, %v2741
  %v2754 = vmul.f32 %v2750, %v2742
  %v2755 = vadd.f32 %v2751, 1.4214138
  %v2756 = vadd.f32 %v2752, 1.4214138
  %v2757 = vadd.f32 %v2753, 1.4214138
  %v2758 = vadd.f32 %v2754, 1.4214138
  %v2759 = vmul.f32 %v2755, %v2739
  %v2760 = vmul.f32 %v2756, %v2740
  %v2761 = vmul.f32 %v2757, %v2741
  %v2762 = vmul.f32 %v2758, %v2742
  %v2763 = vadd.f32 %v2759, -0.28449672
  %v2764 = vadd.f32 %v2760, -0.28449672
  %v2765 = vadd.f32 %v2761, -0.28449672
  %v2766 = vadd.f32 %v2762, -0.28449672
  %v2767 = vmul.f32 %v2763, %v2739
  %v2768 = vmul.f32 %v2764, %v2740
  %v2769 = vmul.f32 %v2765, %v2741
  %v2770 = vmul.f32 %v2766, %v2742
  %v2771 = vadd.f32 %v2767, 0.2548296
  %v2772 = vadd.f32 %v2768, 0.2548296
  %v2773 = vadd.f32 %v2769, 0.2548296
  %v2774 = vadd.f32 %v2770, 0.2548296
  %v2775 = vmul.f32 %v2771, %v2739
  %v2776 = vmul.f32 %v2772, %v2740
  %v2777 = vmul.f32 %v2773, %v2741
  %v2778 = vmul.f32 %v2774, %v2742
  %v2779 = vsub.f32 0.0, %v2727
  %v2780 = vsub.f32 0.0, %v2728
  %v2781 = vsub.f32 0.0, %v2729
  %v2782 = vsub.f32 0.0, %v2730
  %v2783 = vmul.f32 %v2779, %v2727
  %v2784 = vmul.f32 %v2780, %v2728
  %v2785 = vmul.f32 %v2781, %v2729
  %v2786 = vmul.f32 %v2782, %v2730
  %v2787 = vmul.f32 %v2783, 1.442695
  %v2788 = vpow.pop %v2787
  %v2789 = vmul.f32 %v2784, 1.442695
  %v2790 = vpow.pop %v2789
  %v2791 = vmul.f32 %v2785, 1.442695
  %v2792 = vpow.pop %v2791
  %v2793 = vmul.f32 %v2786, 1.442695
  %v2794 = vpow.pop %v2793
  %v2795 = vmul.f32 %v2775, %v2788
  %v2796 = vmul.f32 %v2776, %v2790
  %v2797 = vmul.f32 %v2777, %v2792
  %v2798 = vmul.f32 %v2778, %v2794
  %v2799 = vsub.f32 1.0, %v2795
  %v2800 = vsub.f32 1.0, %v2796
  %v2801 = vsub.f32 1.0, %v2797
  %v2802 = vsub.f32 1.0, %v2798
  %vm2803 = vcmp.ge.f32.partialorder %v2723, 0.0
  %vm2804 = vcmp.ge.f32.partialorder %v2724, 0.0
  %vm2805 = vcmp.ge.f32.partialorder %v2725, 0.0
  %vm2806 = vcmp.ge.f32.partialorder %v2726, 0.0
  %v2807 = vsub.f32 0.0, %v2799
  %v2808 = vsub.f32 0.0, %v2800
  %v2809 = vsub.f32 0.0, %v2801
  %v2810 = vsub.f32 0.0, %v2802
  %v2811 = vsel %vm2803, %v2799, %v2807
  %v2812 = vsel %vm2804, %v2800, %v2808
  %v2813 = vsel %vm2805, %v2801, %v2809
  %v2814 = vsel %vm2806, %v2802, %v2810
  %v2815 = vadd.f32 %v2811, 1.0
  %v2816 = vadd.f32 %v2812, 1.0
  %v2817 = vadd.f32 %v2813, 1.0
  %v2818 = vadd.f32 %v2814, 1.0
  %v2819 = vmul.f32 %v2719, %v2815
  %v2820 = vmul.f32 %v2720, %v2816
  %v2821 = vmul.f32 %v2721, %v2817
  %v2822 = vmul.f32 %v2722, %v2818
  %v2823 = vpack.c.bf16 %v2820, %v2819
  %v2824 = vpack.c.bf16 %v2822, %v2821
  %s2825 = scalar_lea.vmem %s8, 64
  %v2826 = vld [vmem:[%s2825] sm:$0xf]
  %v2827 = vld [vmem:[%s2825 + $0x4] sm:$0xf]
  %v2828 = vld [vmem:[%s2825 + $0x8] sm:$0xf]
  %v2829 = vld [vmem:[%s2825 + $0xc] sm:$0xf]
  %v2830 = vld [vmem:[%s2825 + $0x10] sm:$0xf]
  %v2831 = vld [vmem:[%s2825 + $0x14] sm:$0xf]
  %v2832 = vld [vmem:[%s2825 + $0x18] sm:$0xf]
  %v2833 = vld [vmem:[%s2825 + $0x1c] sm:$0xf]
  %v2834 = vld [vmem:[%s2825 + $0x20] sm:$0xf]
  %v2835 = vld [vmem:[%s2825 + $0x24] sm:$0xf]
  %v2836 = vld [vmem:[%s2825 + $0x28] sm:$0xf]
  %v2837 = vld [vmem:[%s2825 + $0x2c] sm:$0xf]
  %v2838 = vld [vmem:[%s2825 + $0x30] sm:$0xf]
  %v2839 = vld [vmem:[%s2825 + $0x34] sm:$0xf]
  %v2840 = vld [vmem:[%s2825 + $0x38] sm:$0xf]
  %v2841 = vld [vmem:[%s2825 + $0x3c] sm:$0xf]
  %v2842 = vlaneseq
  %v2843 = vshrl.u32 %v2842, 7
  %v2844 = vsub.s32 2, %v2843
  %v2845 = vrot.slane %v44, %v2844
  %v2862 = vunpack.c.l.b16 %v2826
  %v2863 = vunpack.c.l.b16 %v2827
  %v2864 = vunpack.c.l.b16 %v2828
  %v2865 = vunpack.c.l.b16 %v2829
  %v2866 = vunpack.c.l.b16 %v2830
  %v2867 = vunpack.c.l.b16 %v2831
  %v2868 = vunpack.c.l.b16 %v2832
  %v2869 = vunpack.c.l.b16 %v2833
  %v2870 = vunpack.c.l.b16 %v2834
  %v2871 = vunpack.c.l.b16 %v2835
  %v2872 = vunpack.c.l.b16 %v2836
  %v2873 = vunpack.c.l.b16 %v2837
  %v2874 = vunpack.c.l.b16 %v2838
  %v2875 = vunpack.c.l.b16 %v2839
  %v2876 = vunpack.c.l.b16 %v2840
  %v2877 = vunpack.c.l.b16 %v2841
  %v2878 = vpack.c.b16 %v2863, %v2862
  %v2879 = vpack.c.b16 %v2865, %v2864
  %v2880 = vpack.c.b16 %v2867, %v2866
  %v2881 = vpack.c.b16 %v2869, %v2868
  %v2882 = vpack.c.b16 %v2871, %v2870
  %v2883 = vpack.c.b16 %v2873, %v2872
  %v2884 = vpack.c.b16 %v2875, %v2874
  %v2885 = vpack.c.b16 %v2877, %v2876
  %2894 = vmatprep.subr.bf16.mxu0 0
  %2895 = vmatpush1.bf16.msra.mxu0 %v2885
  %2896 = vmatprep.subr.bf16.mxu0 0
  %2897 = vmatpush1.bf16.msra.mxu0 %v2884
  %2898 = vmatprep.subr.bf16.mxu0 0
  %2899 = vmatpush1.bf16.msra.mxu0 %v2883
  %2900 = vmatprep.subr.bf16.mxu0 0
  %2901 = vmatpush1.bf16.msra.mxu0 %v2882
  %2902 = vmatprep.subr.bf16.mxu0 0
  %2903 = vmatpush1.bf16.msra.mxu0 %v2881
  %2904 = vmatprep.subr.bf16.mxu0 0
  %2905 = vmatpush1.bf16.msra.mxu0 %v2880
  %2906 = vmatprep.subr.bf16.mxu0 0
  %2907 = vmatpush1.bf16.msra.mxu0 %v2879
  %2908 = vmatprep.subr.bf16.mxu0 0
  %2909 = vmatpush1.bf16.msra.mxu0 %v2878
  %2910 = vmatprep.subr.bf16.mxu0 0
  %2911 = vmatpush2.bf16.msra.mxu0 0
  %2912 = vmatprep.subr.bf16.mxu0 0
  %2913 = vmatpush2.bf16.msra.mxu0 0
  %2914 = vmatprep.subr.bf16.mxu0 0
  %2915 = vmatpush2.bf16.msra.mxu0 0
  %2916 = vmatprep.subr.bf16.mxu0 0
  %2917 = vmatpush2.bf16.msra.mxu0 0
  %2918 = vmatprep.subr.bf16.mxu0 0
  %2919 = vmatpush2.bf16.msra.mxu0 0
  %2920 = vmatprep.subr.bf16.mxu0 0
  %2921 = vmatpush2.bf16.msra.mxu0 0
  %2922 = vmatprep.subr.bf16.mxu0 0
  %2923 = vmatpush2.bf16.msra.mxu0 0
  %2924 = vmatprep.subr.bf16.mxu0 0
  %2925 = vmatpush2.bf16.msra.mxu0 0
  %2926 = vmatprep.mubr.bf16.mxu0 0
  %2927 = vmatmul.mubr.bf16.gmra.mxu0 %v2823
  %v2928 = vpop.f32.mrf.mxu0
  %v2929 = vadd.f32 %v2845, %v2928
  %v2930 = vpop.f32.mrf.mxu0
  %v2931 = vpop.f32.mrf.mxu0
  %v2932 = vadd.f32 %v2845, %v2931
  %v2933 = vpop.f32.mrf.mxu0
  %2934 = vmatprep.mubr.bf16.mxu0 0
  %2935 = vmatmul.mubr.bf16.gmra.mxu0 %v2824
  %v2936 = vpop.f32.mrf.mxu0
  %v2937 = vadd.f32 %v2845, %v2936
  %v2938 = vpop.f32.mrf.mxu0
  %v2939 = vpop.f32.mrf.mxu0
  %v2940 = vadd.f32 %v2845, %v2939
  %v2941 = vpop.f32.mrf.mxu0
  %2942 = vdwg.mxu0
  %v2943 = vadd.f32 %v2569, %v2929
  %v2944 = vadd.f32 %v2570, %v2932
  %v2945 = vadd.f32 %v2571, %v2937
  %v2946 = vadd.f32 %v2572, %v2940
  %v2947 = vsel %vm163, %v2943, 0.0
  %2948 = vadd.xlane.f32.xlu0 %v2947
  %v2949 = vpop.xlane.xlu0 %2948
  %v2950 = vsel %vm163, %v2944, 0.0
  %2951 = vadd.xlane.f32.xlu0 %v2950
  %v2952 = vpop.xlane.xlu0 %2951
  %v2953 = vsel %vm163, %v2945, 0.0
  %2954 = vadd.xlane.f32.xlu0 %v2953
  %v2955 = vpop.xlane.xlu0 %2954
  %v2956 = vsel %vm163, %v2946, 0.0
  %2957 = vadd.xlane.f32.xlu0 %v2956
  %v2958 = vpop.xlane.xlu0 %2957
  %v2959 = vmul.f32 %v2949, %v176
  %v2960 = vmul.f32 %v2952, %v176
  %v2961 = vmul.f32 %v2955, %v176
  %v2962 = vmul.f32 %v2958, %v176
  %v2963 = vsub.f32 %v2943, %v2959
  %v2964 = vsub.f32 %v2944, %v2960
  %v2965 = vsub.f32 %v2945, %v2961
  %v2966 = vsub.f32 %v2946, %v2962
  %v2967 = vmul.f32 %v2963, %v2963
  %v2968 = vmul.f32 %v2964, %v2964
  %v2969 = vmul.f32 %v2965, %v2965
  %v2970 = vmul.f32 %v2966, %v2966
  %v2971 = vsel %vm163, %v2967, 0.0
  %2972 = vadd.xlane.f32.xlu0 %v2971
  %v2973 = vpop.xlane.xlu0 %2972
  %v2974 = vsel %vm163, %v2968, 0.0
  %2975 = vadd.xlane.f32.xlu0 %v2974
  %v2976 = vpop.xlane.xlu0 %2975
  %v2977 = vsel %vm163, %v2969, 0.0
  %2978 = vadd.xlane.f32.xlu0 %v2977
  %v2979 = vpop.xlane.xlu0 %2978
  %v2980 = vsel %vm163, %v2970, 0.0
  %2981 = vadd.xlane.f32.xlu0 %v2980
  %v2982 = vpop.xlane.xlu0 %2981
  %v2983 = vmul.f32 %v2973, %v176
  %v2984 = vmul.f32 %v2976, %v176
  %v2985 = vmul.f32 %v2979, %v176
  %v2986 = vmul.f32 %v2982, %v176
  %v2987 = vadd.f32 %v2983, 1e-05
  %v2988 = vadd.f32 %v2984, 1e-05
  %v2989 = vadd.f32 %v2985, 1e-05
  %v2990 = vadd.f32 %v2986, 1e-05
  %v2991 = vrsqrt.pop %v2987
  %v2992 = vrsqrt.pop %v2988
  %v2993 = vrsqrt.pop %v2989
  %v2994 = vrsqrt.pop %v2990
  %v2995 = vmul.f32 %v2963, %v2991
  %v2996 = vmul.f32 %v2964, %v2992
  %v2997 = vmul.f32 %v2965, %v2993
  %v2998 = vmul.f32 %v2966, %v2994
  %v2999 = vlaneseq
  %v3000 = vshrl.u32 %v2999, 7
  %v3001 = vsub.s32 3, %v3000
  %v3002 = vrot.slane %v44, %v3001
  %v3003 = vmul.f32 %v2995, %v3002
  %v3004 = vmul.f32 %v2996, %v3002
  %v3005 = vmul.f32 %v2997, %v3002
  %v3006 = vmul.f32 %v2998, %v3002
  %v3007 = vlaneseq
  %v3008 = vshrl.u32 %v3007, 7
  %v3009 = vsub.s32 4, %v3008
  %v3010 = vrot.slane %v44, %v3009
  %v3011 = vadd.f32 %v3003, %v3010
  %v3012 = vadd.f32 %v3004, %v3010
  %v3013 = vadd.f32 %v3005, %v3010
  %v3014 = vadd.f32 %v3006, %v3010
  %v3015 = vpack.c.bf16 %v3012, %v3011
  %v3016 = vpack.c.bf16 %v3014, %v3013
  %s3017 = scalar_lea.vmem %s3, 32
  %v3018 = vld [vmem:[%s3017] sm:$0xf]
  %v3019 = vld [vmem:[%s3017 + $0x4] sm:$0xf]
  %v3020 = vld [vmem:[%s3017 + $0x8] sm:$0xf]
  %v3021 = vld [vmem:[%s3017 + $0xc] sm:$0xf]
  %v3022 = vlaneseq
  %v3023 = vshrl.u32 %v3022, 7
  %v3024 = vsub.s32 5, %v3023
  %v3025 = vrot.slane %v44, %v3024
  %v3030 = vunpack.c.l.b16 %v3018
  %v3031 = vunpack.c.l.b16 %v3019
  %v3032 = vunpack.c.l.b16 %v3020
  %v3033 = vunpack.c.l.b16 %v3021
  %v3034 = vpack.c.b16 %v3031, %v3030
  %v3035 = vpack.c.b16 %v3033, %v3032
  %v3039 = vsel %vm163, %v3015, 0
  %v3042 = vsel %vm163, %v3016, 0
  %3044 = vmatprep.subr.bf16.mxu0 0
  %3045 = vmatpush1.bf16.msra.mxu0 0
  %3046 = vmatprep.subr.bf16.mxu0 0
  %3047 = vmatpush1.bf16.msra.mxu0 0
  %3048 = vmatprep.subr.bf16.mxu0 0
  %3049 = vmatpush1.bf16.msra.mxu0 0
  %3050 = vmatprep.subr.bf16.mxu0 0
  %3051 = vmatpush1.bf16.msra.mxu0 0
  %3052 = vmatprep.subr.bf16.mxu0 0
  %3053 = vmatpush1.bf16.msra.mxu0 0
  %3054 = vmatprep.subr.bf16.mxu0 0
  %3055 = vmatpush1.bf16.msra.mxu0 0
  %3056 = vmatprep.subr.bf16.mxu0 0
  %3057 = vmatpush1.bf16.msra.mxu0 %v3035
  %3058 = vmatprep.subr.bf16.mxu0 0
  %3059 = vmatpush1.bf16.msra.mxu0 %v3034
  %3060 = vmatprep.subr.bf16.mxu0 0
  %3061 = vmatpush2.bf16.msra.mxu0 0
  %3062 = vmatprep.subr.bf16.mxu0 0
  %3063 = vmatpush2.bf16.msra.mxu0 0
  %3064 = vmatprep.subr.bf16.mxu0 0
  %3065 = vmatpush2.bf16.msra.mxu0 0
  %3066 = vmatprep.subr.bf16.mxu0 0
  %3067 = vmatpush2.bf16.msra.mxu0 0
  %3068 = vmatprep.subr.bf16.mxu0 0
  %3069 = vmatpush2.bf16.msra.mxu0 0
  %3070 = vmatprep.subr.bf16.mxu0 0
  %3071 = vmatpush2.bf16.msra.mxu0 0
  %3072 = vmatprep.subr.bf16.mxu0 0
  %3073 = vmatpush2.bf16.msra.mxu0 0
  %3074 = vmatprep.subr.bf16.mxu0 0
  %3075 = vmatpush2.bf16.msra.mxu0 0
  %3076 = vmatprep.mubr.bf16.mxu0 0
  %3077 = vmatmul.mubr.bf16.gmra.mxu0 %v3039
  %v3078 = vpop.f32.mrf.mxu0
  %v3079 = vadd.f32 %v3025, %v3078
  %v3080 = vpop.f32.mrf.mxu0
  %v3081 = vpop.f32.mrf.mxu0
  %v3082 = vadd.f32 %v3025, %v3081
  %v3083 = vpop.f32.mrf.mxu0
  %3084 = vmatprep.mubr.bf16.mxu0 0
  %3085 = vmatmul.mubr.bf16.gmra.mxu0 %v3042
  %v3086 = vpop.f32.mrf.mxu0
  %v3087 = vadd.f32 %v3025, %v3086
  %v3088 = vpop.f32.mrf.mxu0
  %v3089 = vpop.f32.mrf.mxu0
  %v3090 = vadd.f32 %v3025, %v3089
  %v3091 = vpop.f32.mrf.mxu0
  %3092 = vdwg.mxu0
  %v3093 = vmul.f32 %v3079, 0.5
  %v3094 = vmul.f32 %v3082, 0.5
  %v3095 = vmul.f32 %v3087, 0.5
  %v3096 = vmul.f32 %v3090, 0.5
  %v3097 = vmul.f32 %v3079, 0.70710677
  %v3098 = vmul.f32 %v3082, 0.70710677
  %v3099 = vmul.f32 %v3087, 0.70710677
  %v3100 = vmul.f32 %v3090, 0.70710677
  %v3101 = vand.u32 2147483647, %v3097
  %v3102 = vand.u32 2147483647, %v3098
  %v3103 = vand.u32 2147483647, %v3099
  %v3104 = vand.u32 2147483647, %v3100
  %v3105 = vmul.f32 %v3101, 0.3275911
  %v3106 = vmul.f32 %v3102, 0.3275911
  %v3107 = vmul.f32 %v3103, 0.3275911
  %v3108 = vmul.f32 %v3104, 0.3275911
  %v3109 = vadd.f32 %v3105, 1.0
  %v3110 = vadd.f32 %v3106, 1.0
  %v3111 = vadd.f32 %v3107, 1.0
  %v3112 = vadd.f32 %v3108, 1.0
  %v3113 = vrcp.pop %v3109
  %v3114 = vrcp.pop %v3110
  %v3115 = vrcp.pop %v3111
  %v3116 = vrcp.pop %v3112
  %v3117 = vmul.f32 %v3113, 1.0614054
  %v3118 = vmul.f32 %v3114, 1.0614054
  %v3119 = vmul.f32 %v3115, 1.0614054
  %v3120 = vmul.f32 %v3116, 1.0614054
  %v3121 = vadd.f32 %v3117, -1.4531521
  %v3122 = vadd.f32 %v3118, -1.4531521
  %v3123 = vadd.f32 %v3119, -1.4531521
  %v3124 = vadd.f32 %v3120, -1.4531521
  %v3125 = vmul.f32 %v3121, %v3113
  %v3126 = vmul.f32 %v3122, %v3114
  %v3127 = vmul.f32 %v3123, %v3115
  %v3128 = vmul.f32 %v3124, %v3116
  %v3129 = vadd.f32 %v3125, 1.4214138
  %v3130 = vadd.f32 %v3126, 1.4214138
  %v3131 = vadd.f32 %v3127, 1.4214138
  %v3132 = vadd.f32 %v3128, 1.4214138
  %v3133 = vmul.f32 %v3129, %v3113
  %v3134 = vmul.f32 %v3130, %v3114
  %v3135 = vmul.f32 %v3131, %v3115
  %v3136 = vmul.f32 %v3132, %v3116
  %v3137 = vadd.f32 %v3133, -0.28449672
  %v3138 = vadd.f32 %v3134, -0.28449672
  %v3139 = vadd.f32 %v3135, -0.28449672
  %v3140 = vadd.f32 %v3136, -0.28449672
  %v3141 = vmul.f32 %v3137, %v3113
  %v3142 = vmul.f32 %v3138, %v3114
  %v3143 = vmul.f32 %v3139, %v3115
  %v3144 = vmul.f32 %v3140, %v3116
  %v3145 = vadd.f32 %v3141, 0.2548296
  %v3146 = vadd.f32 %v3142, 0.2548296
  %v3147 = vadd.f32 %v3143, 0.2548296
  %v3148 = vadd.f32 %v3144, 0.2548296
  %v3149 = vmul.f32 %v3145, %v3113
  %v3150 = vmul.f32 %v3146, %v3114
  %v3151 = vmul.f32 %v3147, %v3115
  %v3152 = vmul.f32 %v3148, %v3116
  %v3153 = vsub.f32 0.0, %v3101
  %v3154 = vsub.f32 0.0, %v3102
  %v3155 = vsub.f32 0.0, %v3103
  %v3156 = vsub.f32 0.0, %v3104
  %v3157 = vmul.f32 %v3153, %v3101
  %v3158 = vmul.f32 %v3154, %v3102
  %v3159 = vmul.f32 %v3155, %v3103
  %v3160 = vmul.f32 %v3156, %v3104
  %v3161 = vmul.f32 %v3157, 1.442695
  %v3162 = vpow.pop %v3161
  %v3163 = vmul.f32 %v3158, 1.442695
  %v3164 = vpow.pop %v3163
  %v3165 = vmul.f32 %v3159, 1.442695
  %v3166 = vpow.pop %v3165
  %v3167 = vmul.f32 %v3160, 1.442695
  %v3168 = vpow.pop %v3167
  %v3169 = vmul.f32 %v3149, %v3162
  %v3170 = vmul.f32 %v3150, %v3164
  %v3171 = vmul.f32 %v3151, %v3166
  %v3172 = vmul.f32 %v3152, %v3168
  %v3173 = vsub.f32 1.0, %v3169
  %v3174 = vsub.f32 1.0, %v3170
  %v3175 = vsub.f32 1.0, %v3171
  %v3176 = vsub.f32 1.0, %v3172
  %vm3177 = vcmp.ge.f32.partialorder %v3097, 0.0
  %vm3178 = vcmp.ge.f32.partialorder %v3098, 0.0
  %vm3179 = vcmp.ge.f32.partialorder %v3099, 0.0
  %vm3180 = vcmp.ge.f32.partialorder %v3100, 0.0
  %v3181 = vsub.f32 0.0, %v3173
  %v3182 = vsub.f32 0.0, %v3174
  %v3183 = vsub.f32 0.0, %v3175
  %v3184 = vsub.f32 0.0, %v3176
  %v3185 = vsel %vm3177, %v3173, %v3181
  %v3186 = vsel %vm3178, %v3174, %v3182
  %v3187 = vsel %vm3179, %v3175, %v3183
  %v3188 = vsel %vm3180, %v3176, %v3184
  %v3189 = vadd.f32 %v3185, 1.0
  %v3190 = vadd.f32 %v3186, 1.0
  %v3191 = vadd.f32 %v3187, 1.0
  %v3192 = vadd.f32 %v3188, 1.0
  %v3193 = vmul.f32 %v3093, %v3189
  %v3194 = vmul.f32 %v3094, %v3190
  %v3195 = vmul.f32 %v3095, %v3191
  %v3196 = vmul.f32 %v3096, %v3192
  %v3197 = vpack.c.bf16 %v3194, %v3193
  %v3198 = vpack.c.bf16 %v3196, %v3195
  %s3199 = scalar_lea.vmem %s3, 48
  %v3200 = vld [vmem:[%s3199] sm:$0xf]
  %v3201 = vld [vmem:[%s3199 + $0x4] sm:$0xf]
  %v3202 = vld [vmem:[%s3199 + $0x8] sm:$0xf]
  %v3203 = vld [vmem:[%s3199 + $0xc] sm:$0xf]
  %v3204 = vlaneseq
  %v3205 = vshrl.u32 %v3204, 7
  %v3206 = vsub.s32 6, %v3205
  %v3207 = vrot.slane %v44, %v3206
  %v3212 = vunpack.c.l.b16 %v3200
  %v3213 = vunpack.c.l.b16 %v3201
  %v3214 = vunpack.c.l.b16 %v3202
  %v3215 = vunpack.c.l.b16 %v3203
  %v3216 = vpack.c.b16 %v3213, %v3212
  %v3217 = vpack.c.b16 %v3215, %v3214
  %v3221 = vsel %vm163, %v3197, 0
  %v3224 = vsel %vm163, %v3198, 0
  %3226 = vmatprep.subr.bf16.mxu0 0
  %3227 = vmatpush1.bf16.msra.mxu0 0
  %3228 = vmatprep.subr.bf16.mxu0 0
  %3229 = vmatpush1.bf16.msra.mxu0 0
  %3230 = vmatprep.subr.bf16.mxu0 0
  %3231 = vmatpush1.bf16.msra.mxu0 0
  %3232 = vmatprep.subr.bf16.mxu0 0
  %3233 = vmatpush1.bf16.msra.mxu0 0
  %3234 = vmatprep.subr.bf16.mxu0 0
  %3235 = vmatpush1.bf16.msra.mxu0 0
  %3236 = vmatprep.subr.bf16.mxu0 0
  %3237 = vmatpush1.bf16.msra.mxu0 0
  %3238 = vmatprep.subr.bf16.mxu0 0
  %3239 = vmatpush1.bf16.msra.mxu0 %v3217
  %3240 = vmatprep.subr.bf16.mxu0 0
  %3241 = vmatpush1.bf16.msra.mxu0 %v3216
  %3242 = vmatprep.subr.bf16.mxu0 0
  %3243 = vmatpush2.bf16.msra.mxu0 0
  %3244 = vmatprep.subr.bf16.mxu0 0
  %3245 = vmatpush2.bf16.msra.mxu0 0
  %3246 = vmatprep.subr.bf16.mxu0 0
  %3247 = vmatpush2.bf16.msra.mxu0 0
  %3248 = vmatprep.subr.bf16.mxu0 0
  %3249 = vmatpush2.bf16.msra.mxu0 0
  %3250 = vmatprep.subr.bf16.mxu0 0
  %3251 = vmatpush2.bf16.msra.mxu0 0
  %3252 = vmatprep.subr.bf16.mxu0 0
  %3253 = vmatpush2.bf16.msra.mxu0 0
  %3254 = vmatprep.subr.bf16.mxu0 0
  %3255 = vmatpush2.bf16.msra.mxu0 0
  %3256 = vmatprep.subr.bf16.mxu0 0
  %3257 = vmatpush2.bf16.msra.mxu0 0
  %3258 = vmatprep.mubr.bf16.mxu0 0
  %3259 = vmatmul.mubr.bf16.gmra.mxu0 %v3221
  %v3260 = vpop.f32.mrf.mxu0
  %v3261 = vadd.f32 %v3207, %v3260
  %v3262 = vpop.f32.mrf.mxu0
  %v3263 = vpop.f32.mrf.mxu0
  %v3264 = vadd.f32 %v3207, %v3263
  %v3265 = vpop.f32.mrf.mxu0
  %3266 = vmatprep.mubr.bf16.mxu0 0
  %3267 = vmatmul.mubr.bf16.gmra.mxu0 %v3224
  %v3268 = vpop.f32.mrf.mxu0
  %v3269 = vadd.f32 %v3207, %v3268
  %v3270 = vpop.f32.mrf.mxu0
  %v3271 = vpop.f32.mrf.mxu0
  %v3272 = vadd.f32 %v3207, %v3271
  %v3273 = vpop.f32.mrf.mxu0
  %3274 = vdwg.mxu0
  %v3275 = vmul.f32 %v3261, 0.5
  %v3276 = vmul.f32 %v3264, 0.5
  %v3277 = vmul.f32 %v3269, 0.5
  %v3278 = vmul.f32 %v3272, 0.5
  %v3279 = vmul.f32 %v3261, 0.70710677
  %v3280 = vmul.f32 %v3264, 0.70710677
  %v3281 = vmul.f32 %v3269, 0.70710677
  %v3282 = vmul.f32 %v3272, 0.70710677
  %v3283 = vand.u32 2147483647, %v3279
  %v3284 = vand.u32 2147483647, %v3280
  %v3285 = vand.u32 2147483647, %v3281
  %v3286 = vand.u32 2147483647, %v3282
  %v3287 = vmul.f32 %v3283, 0.3275911
  %v3288 = vmul.f32 %v3284, 0.3275911
  %v3289 = vmul.f32 %v3285, 0.3275911
  %v3290 = vmul.f32 %v3286, 0.3275911
  %v3291 = vadd.f32 %v3287, 1.0
  %v3292 = vadd.f32 %v3288, 1.0
  %v3293 = vadd.f32 %v3289, 1.0
  %v3294 = vadd.f32 %v3290, 1.0
  %v3295 = vrcp.pop %v3291
  %v3296 = vrcp.pop %v3292
  %v3297 = vrcp.pop %v3293
  %v3298 = vrcp.pop %v3294
  %v3299 = vmul.f32 %v3295, 1.0614054
  %v3300 = vmul.f32 %v3296, 1.0614054
  %v3301 = vmul.f32 %v3297, 1.0614054
  %v3302 = vmul.f32 %v3298, 1.0614054
  %v3303 = vadd.f32 %v3299, -1.4531521
  %v3304 = vadd.f32 %v3300, -1.4531521
  %v3305 = vadd.f32 %v3301, -1.4531521
  %v3306 = vadd.f32 %v3302, -1.4531521
  %v3307 = vmul.f32 %v3303, %v3295
  %v3308 = vmul.f32 %v3304, %v3296
  %v3309 = vmul.f32 %v3305, %v3297
  %v3310 = vmul.f32 %v3306, %v3298
  %v3311 = vadd.f32 %v3307, 1.4214138
  %v3312 = vadd.f32 %v3308, 1.4214138
  %v3313 = vadd.f32 %v3309, 1.4214138
  %v3314 = vadd.f32 %v3310, 1.4214138
  %v3315 = vmul.f32 %v3311, %v3295
  %v3316 = vmul.f32 %v3312, %v3296
  %v3317 = vmul.f32 %v3313, %v3297
  %v3318 = vmul.f32 %v3314, %v3298
  %v3319 = vadd.f32 %v3315, -0.28449672
  %v3320 = vadd.f32 %v3316, -0.28449672
  %v3321 = vadd.f32 %v3317, -0.28449672
  %v3322 = vadd.f32 %v3318, -0.28449672
  %v3323 = vmul.f32 %v3319, %v3295
  %v3324 = vmul.f32 %v3320, %v3296
  %v3325 = vmul.f32 %v3321, %v3297
  %v3326 = vmul.f32 %v3322, %v3298
  %v3327 = vadd.f32 %v3323, 0.2548296
  %v3328 = vadd.f32 %v3324, 0.2548296
  %v3329 = vadd.f32 %v3325, 0.2548296
  %v3330 = vadd.f32 %v3326, 0.2548296
  %v3331 = vmul.f32 %v3327, %v3295
  %v3332 = vmul.f32 %v3328, %v3296
  %v3333 = vmul.f32 %v3329, %v3297
  %v3334 = vmul.f32 %v3330, %v3298
  %v3335 = vsub.f32 0.0, %v3283
  %v3336 = vsub.f32 0.0, %v3284
  %v3337 = vsub.f32 0.0, %v3285
  %v3338 = vsub.f32 0.0, %v3286
  %v3339 = vmul.f32 %v3335, %v3283
  %v3340 = vmul.f32 %v3336, %v3284
  %v3341 = vmul.f32 %v3337, %v3285
  %v3342 = vmul.f32 %v3338, %v3286
  %v3343 = vmul.f32 %v3339, 1.442695
  %v3344 = vpow.pop %v3343
  %v3345 = vmul.f32 %v3340, 1.442695
  %v3346 = vpow.pop %v3345
  %v3347 = vmul.f32 %v3341, 1.442695
  %v3348 = vpow.pop %v3347
  %v3349 = vmul.f32 %v3342, 1.442695
  %v3350 = vpow.pop %v3349
  %v3351 = vmul.f32 %v3331, %v3344
  %v3352 = vmul.f32 %v3332, %v3346
  %v3353 = vmul.f32 %v3333, %v3348
  %v3354 = vmul.f32 %v3334, %v3350
  %v3355 = vsub.f32 1.0, %v3351
  %v3356 = vsub.f32 1.0, %v3352
  %v3357 = vsub.f32 1.0, %v3353
  %v3358 = vsub.f32 1.0, %v3354
  %vm3359 = vcmp.ge.f32.partialorder %v3279, 0.0
  %vm3360 = vcmp.ge.f32.partialorder %v3280, 0.0
  %vm3361 = vcmp.ge.f32.partialorder %v3281, 0.0
  %vm3362 = vcmp.ge.f32.partialorder %v3282, 0.0
  %v3363 = vsub.f32 0.0, %v3355
  %v3364 = vsub.f32 0.0, %v3356
  %v3365 = vsub.f32 0.0, %v3357
  %v3366 = vsub.f32 0.0, %v3358
  %v3367 = vsel %vm3359, %v3355, %v3363
  %v3368 = vsel %vm3360, %v3356, %v3364
  %v3369 = vsel %vm3361, %v3357, %v3365
  %v3370 = vsel %vm3362, %v3358, %v3366
  %v3371 = vadd.f32 %v3367, 1.0
  %v3372 = vadd.f32 %v3368, 1.0
  %v3373 = vadd.f32 %v3369, 1.0
  %v3374 = vadd.f32 %v3370, 1.0
  %v3375 = vmul.f32 %v3275, %v3371
  %v3376 = vmul.f32 %v3276, %v3372
  %v3377 = vmul.f32 %v3277, %v3373
  %v3378 = vmul.f32 %v3278, %v3374
  %v3379 = vpack.c.bf16 %v3376, %v3375
  %v3380 = vpack.c.bf16 %v3378, %v3377
  %s3381 = scalar_lea.vmem %s3, 64
  %v3382 = vld [vmem:[%s3381] sm:$0xf]
  %v3383 = vld [vmem:[%s3381 + $0x4] sm:$0xf]
  %v3384 = vld [vmem:[%s3381 + $0x8] sm:$0xf]
  %v3385 = vld [vmem:[%s3381 + $0xc] sm:$0xf]
  %v3386 = vlaneseq
  %v3387 = vshrl.u32 %v3386, 7
  %v3388 = vsub.s32 7, %v3387
  %v3389 = vrot.slane %v44, %v3388
  %v3394 = vunpack.c.l.b16 %v3382
  %v3395 = vunpack.c.l.b16 %v3383
  %v3396 = vunpack.c.l.b16 %v3384
  %v3397 = vunpack.c.l.b16 %v3385
  %v3398 = vpack.c.b16 %v3395, %v3394
  %v3399 = vpack.c.b16 %v3397, %v3396
  %v3403 = vsel %vm163, %v3379, 0
  %v3406 = vsel %vm163, %v3380, 0
  %3408 = vmatprep.subr.bf16.mxu0 0
  %3409 = vmatpush1.bf16.msra.mxu0 0
  %3410 = vmatprep.subr.bf16.mxu0 0
  %3411 = vmatpush1.bf16.msra.mxu0 0
  %3412 = vmatprep.subr.bf16.mxu0 0
  %3413 = vmatpush1.bf16.msra.mxu0 0
  %3414 = vmatprep.subr.bf16.mxu0 0
  %3415 = vmatpush1.bf16.msra.mxu0 0
  %3416 = vmatprep.subr.bf16.mxu0 0
  %3417 = vmatpush1.bf16.msra.mxu0 0
  %3418 = vmatprep.subr.bf16.mxu0 0
  %3419 = vmatpush1.bf16.msra.mxu0 0
  %3420 = vmatprep.subr.bf16.mxu0 0
  %3421 = vmatpush1.bf16.msra.mxu0 %v3399
  %3422 = vmatprep.subr.bf16.mxu0 0
  %3423 = vmatpush1.bf16.msra.mxu0 %v3398
  %3424 = vmatprep.subr.bf16.mxu0 0
  %3425 = vmatpush2.bf16.msra.mxu0 0
  %3426 = vmatprep.subr.bf16.mxu0 0
  %3427 = vmatpush2.bf16.msra.mxu0 0
  %3428 = vmatprep.subr.bf16.mxu0 0
  %3429 = vmatpush2.bf16.msra.mxu0 0
  %3430 = vmatprep.subr.bf16.mxu0 0
  %3431 = vmatpush2.bf16.msra.mxu0 0
  %3432 = vmatprep.subr.bf16.mxu0 0
  %3433 = vmatpush2.bf16.msra.mxu0 0
  %3434 = vmatprep.subr.bf16.mxu0 0
  %3435 = vmatpush2.bf16.msra.mxu0 0
  %3436 = vmatprep.subr.bf16.mxu0 0
  %3437 = vmatpush2.bf16.msra.mxu0 0
  %3438 = vmatprep.subr.bf16.mxu0 0
  %3439 = vmatpush2.bf16.msra.mxu0 0
  %3440 = vmatprep.mubr.bf16.mxu0 0
  %3441 = vmatmul.mubr.bf16.gmra.mxu0 %v3403
  %v3442 = vpop.f32.mrf.mxu0
  %v3443 = vadd.f32 %v3389, %v3442
  %v3444 = vpop.f32.mrf.mxu0
  %v3445 = vpop.f32.mrf.mxu0
  %v3446 = vadd.f32 %v3389, %v3445
  %v3447 = vpop.f32.mrf.mxu0
  %3448 = vmatprep.mubr.bf16.mxu0 0
  %3449 = vmatmul.mubr.bf16.gmra.mxu0 %v3406
  %v3450 = vpop.f32.mrf.mxu0
  %v3451 = vadd.f32 %v3389, %v3450
  %v3452 = vpop.f32.mrf.mxu0
  %v3453 = vpop.f32.mrf.mxu0
  %v3454 = vadd.f32 %v3389, %v3453
  %v3455 = vpop.f32.mrf.mxu0
  %3456 = vdwg.mxu0
  %3457 = vst.msk [vmem:[%s12] sm:$0xff] %vm163, %v3443
  %3458 = vst.msk [vmem:[%s12 + $0x8] sm:$0xff] %vm163, %v3446
  %3459 = vst.msk [vmem:[%s12 + $0x10] sm:$0xff] %vm163, %v3451
  %3460 = vst.msk [vmem:[%s12 + $0x18] sm:$0xff] %vm163, %v3454
  // Predicated region
  $region50: #{forward.1} parent=0 // pred_check
    _
  $region51: #{forward.1} parent=0 // pred_check_branch
    %3462 = sbr.rel (0) target = $region53
  $region52: #{forward.1} parent=0 // pred_region
    _
  $region53: #{forward.1} parent=0 // pred_fallthru
    _
  // Predicated region
  $region54: #{forward.1} parent=0 // pred_check
    _
  $region55: #{forward.1} parent=0 // pred_check_branch
    %3464 = sbr.rel (0) target = $region57
  $region56: #{forward.1} parent=0 // pred_region
    _
  $region57: #{forward.1} parent=0 // pred_fallthru
    _

</llo_original>
